<compile_context>
chip_gen: v6e
topology: v6e:2x2x1
jax: 0.10.0
libtpu: 0.0.40
codegen_flags: <defaults>
</compile_context>

<pallas_src>
import functools

import jax
import jax.numpy as jnp
from jax.experimental import pallas as pl
from jax.experimental.pallas import tpu as pltpu

LANE = 128


def _round_up(n, m):
    return ((n + m - 1) // m) * m


# ----------------------------------------------------------------------------
# Kernel
# ----------------------------------------------------------------------------
def dgm_kernel(x_ref, xw_ref, xb_ref, w3_ref, wh_ref, fw_ref, fb_ref,
               out_ref, *, L, hidden):
    """Whole DGM forward (starter -> L DGM layers -> finisher) on one batch
    tile.  `hidden` is the lane-padded hidden size (multiple of 128).  Weights
    arrive in bf16 and are consumed directly by the MXU; activations are cast
    to bf16 right before each dot; all accumulation is f32."""
    h = hidden
    x = x_ref[...].astype(jnp.bfloat16)                       # (tn, dim)

    # One fused MXU matmul covers the starter and all L*4 U-projections of x
    # (x never changes across layers).  xb already holds sb and the pre-summed
    # (Ub + Wb) per gate, so every bias is added exactly once, in f32.
    xproj = jnp.dot(x, xw_ref[...],
                    preferred_element_type=jnp.float32) + xb_ref[...]

    s = xproj[:, :h]                                          # starter output
    for l in range(L):                                        # static -> unrolled
        base = (1 + 4 * l) * h
        # [Wz|Wg|Wr] fused into one lane-dense (h, 3h) matmul; bf16 in, f32 acc.
        sp = jnp.dot(s.astype(jnp.bfloat16), w3_ref[l],
                     preferred_element_type=jnp.float32)      # (tn, 3h)
        # uz|ug|ur are contiguous in xproj -> one VPU add + one EUP tanh stream
        # over the whole (tn, 3h) slab; Z/G/R are then 128-aligned views.
        zgr = jnp.tanh(xproj[:, base: base + 3 * h] + sp)
        Z = zgr[:, 0 * h: 1 * h]
        G = zgr[:, 1 * h: 2 * h]
        R = zgr[:, 2 * h: 3 * h]
        H = jnp.tanh(xproj[:, base + 3 * h: base + 4 * h]
                     + jnp.dot((s * R).astype(jnp.bfloat16), wh_ref[l],
                               preferred_element_type=jnp.float32))
        s = (1.0 - G) * H + Z * s

    # Finisher kept off the MXU (an N=1 matmul uses 1/128 of the output width):
    # VPU row-broadcast multiply + XLU lane reduction; bias is an SMEM scalar.
    res = jnp.sum(s * fw_ref[...], axis=-1, keepdims=True) + fb_ref[0]
    out_ref[...] = res.astype(out_ref.dtype)
    # TODO(synk): (tile_n, 1) output block still uses masked vst (1/128 lanes);
    # negligible unless N is huge — a lane-dense (grid, tile_n) slab + wrapper
    # reshape would remove it.


# ----------------------------------------------------------------------------
# Wrapper
# ----------------------------------------------------------------------------
def dgm_net_forward(x, params, *, tile_n=512, vmem_limit_bytes=None):
    N, dim = x.shape
    hidden = params["fw"].shape[1]          # lane-padded hidden (multiple of 128)
    L = params["w3"].shape[0]
    C = params["xw"].shape[1]
    assert C == (1 + 4 * L) * hidden
    assert hidden % LANE == 0

    tile_n = int(tile_n)
    # The batch axis is the only 'parallel' grid axis; keep >= 2 grid steps
    # once the batch is big enough so both v7x TensorCores stay busy.
    if _round_up(N, 8) >= 256:
        tile_n = min(tile_n, _round_up((N + 1) // 2, 8))
    tile_n = _round_up(min(tile_n, max(N, 1)), 8)
    N_pad = _round_up(N, tile_n)
    if N_pad != N:                          # ragged batch: zero-pad, slice back
        x = jnp.pad(x, ((0, N_pad - N), (0, 0)))
    grid = (N_pad // tile_n,)

    kernel = functools.partial(dgm_kernel, L=L, hidden=hidden)

    # Weight blocks never change with the batch index -> single-buffer them
    # (halves resident weight VMEM vs. the default double-buffering).
    const = pl.Buffered(buffer_count=1)

    grid_spec = pltpu.PrefetchScalarGridSpec(
        num_scalar_prefetch=0,
        grid=grid,
        in_specs=[
            pl.BlockSpec((tile_n, dim), lambda i: (i, 0)),                  # x
            pl.BlockSpec((dim, C), lambda i: (0, 0),
                         pipeline_mode=const),                              # fused x-weights (bf16)
            pl.BlockSpec((1, C), lambda i: (0, 0),
                         pipeline_mode=const),                              # fused biases (f32)
            pl.BlockSpec((L, hidden, 3 * hidden), lambda i: (0, 0, 0),
                         pipeline_mode=const),                              # [Wz|Wg|Wr] (bf16)
            pl.BlockSpec((L, hidden, hidden), lambda i: (0, 0, 0),
                         pipeline_mode=const),                              # Wh (bf16)
            pl.BlockSpec((1, hidden), lambda i: (0, 0),
                         pipeline_mode=const),                              # finisher row (f32)
            pl.BlockSpec(memory_space=pltpu.MemorySpace.SMEM),              # finisher bias scalar
        ],
        out_specs=pl.BlockSpec((tile_n, 1), lambda i: (i, 0)),
    )

    out = pl.pallas_call(
        kernel,
        out_shape=jax.ShapeDtypeStruct((N_pad, 1), x.dtype),
        grid_spec=grid_spec,
        compiler_params=pltpu.CompilerParams(
            dimension_semantics=("parallel",),   # shards the batch grid across TCs
            vmem_limit_bytes=vmem_limit_bytes,   # raise toward 64 MiB (v7x) / 128 MiB (v5e/v6e)
        ),
    )(x, params["xw"], params["xb"], params["w3"], params["wh"],
      params["fw"], params["fb"])
    return out[:N]


# ----------------------------------------------------------------------------
# Deterministic parameter construction (PyTorch-Linear-style uniform init),
# plus host-side packing into the fused / lane-padded kernel layout.
# ----------------------------------------------------------------------------
def _linear_init(key, fan_in, fan_out):
    k = 1.0 / jnp.sqrt(jnp.float32(fan_in))
    kw, kb = jax.random.split(key)
    w = jax.random.uniform(kw, (fan_in, fan_out), jnp.float32, -k, k)
    b = jax.random.uniform(kb, (1, fan_out), jnp.float32, -k, k)
    return w, b


def make_raw_params(key, dim, hidden, L):
    keys = jax.random.split(key, 2 + 8 * L)
    ki = iter(keys)
    sw, sb = _linear_init(next(ki), dim, hidden)
    fw, fb = _linear_init(next(ki), hidden, 1)

    uw_l, ub_l, ww_l, wb_l = [], [], [], []
    for _ in range(L):
        us, ubs, ws, wbs = [], [], [], []
        for _gate in range(4):          # Uz, Ug, Ur, Uh
            w, b = _linear_init(next(ki), dim, hidden)
            us.append(w); ubs.append(b)
        for _gate in range(4):          # Wz, Wg, Wr, Wh
            w, b = _linear_init(next(ki), hidden, hidden)
            ws.append(w); wbs.append(b)
        uw_l.append(jnp.stack(us)); ub_l.append(jnp.stack(ubs))
        ww_l.append(jnp.stack(ws)); wb_l.append(jnp.stack(wbs))

    return {
        "sw": sw, "sb": sb, "fw": fw, "fb": fb,
        "uw": jnp.stack(uw_l),   # (L, 4, dim, h)
        "ub": jnp.stack(ub_l),   # (L, 4, 1, h)
        "ww": jnp.stack(ww_l),   # (L, 4, h, h)
        "wb": jnp.stack(wb_l),   # (L, 4, 1, h)
    }


def pack_params(raw, weight_dtype=jnp.bfloat16):
    """Pack raw weights into the kernel layout.

    hidden is zero-padded to a multiple of 128 lanes (padded gate columns stay
    exactly 0 through tanh / gating / finisher, so results are unchanged);
    the starter + all U-projections are fused along lanes, per-gate biases are
    pre-summed (Ub + Wb), and Wz|Wg|Wr are fused into one (h, 3h) slab/layer."""
    L = raw["uw"].shape[0]
    dim, hidden = raw["sw"].shape
    h_pad = _round_up(max(hidden, LANE), LANE)
    ph = h_pad - hidden

    pad_cols = lambda w: jnp.pad(w, [(0, 0)] * (w.ndim - 1) + [(0, ph)])
    pad_rows = lambda w: jnp.pad(w, [(0, 0)] * (w.ndim - 2) + [(0, ph), (0, 0)])

    sw = pad_cols(raw["sw"])                    # (dim, h_pad)
    sb = pad_cols(raw["sb"])                    # (1, h_pad)
    uw = pad_cols(raw["uw"])                    # (L, 4, dim, h_pad)
    ub = pad_cols(raw["ub"])                    # (L, 4, 1, h_pad)
    ww = pad_cols(pad_rows(raw["ww"]))          # (L, 4, h_pad, h_pad)
    wb = pad_cols(raw["wb"])                    # (L, 4, 1, h_pad)

    xw_cols = [sw] + [uw[l, g] for l in range(L) for g in range(4)]
    xb_cols = [sb] + [ub[l, g] + wb[l, g] for l in range(L) for g in range(4)]
    xw = jnp.concatenate(xw_cols, axis=1).astype(weight_dtype)   # (dim, (1+4L)h_pad)
    xb = jnp.concatenate(xb_cols, axis=1)                        # f32

    w3 = jnp.stack([jnp.concatenate([ww[l, 0], ww[l, 1], ww[l, 2]], axis=1)
                    for l in range(L)]).astype(weight_dtype)     # (L, h_pad, 3h_pad)
    wh = ww[:, 3].astype(weight_dtype)                           # (L, h_pad, h_pad)

    fw = jnp.pad(raw["fw"], ((0, ph), (0, 0))).T                 # (1, h_pad) f32
    fb = raw["fb"].reshape((1,))                                 # (1,) f32 -> SMEM

    return {"xw": xw, "xb": xb, "w3": w3, "wh": wh, "fw": fw, "fb": fb}


# ----------------------------------------------------------------------------
# Pure-JAX reference in the original (unfused) PyTorch form, using the same
# numerical scheme as the kernel: bf16 matmul operands, f32 accumulation.
# ----------------------------------------------------------------------------
def dgm_net_reference(x, raw, weight_dtype=jnp.bfloat16):
    L = raw["uw"].shape[0]
    q = lambda a: a.astype(weight_dtype)
    mm = lambda a, b: jnp.dot(q(a), q(b), preferred_element_type=jnp.float32)
    s = mm(x, raw["sw"]) + raw["sb"]
    for l in range(L):
        Z = jnp.tanh(mm(x, raw["uw"][l, 0]) + raw["ub"][l, 0]
                     + mm(s, raw["ww"][l, 0]) + raw["wb"][l, 0])
        G = jnp.tanh(mm(x, raw["uw"][l, 1]) + raw["ub"][l, 1]
                     + mm(s, raw["ww"][l, 1]) + raw["wb"][l, 1])
        R = jnp.tanh(mm(x, raw["uw"][l, 2]) + raw["ub"][l, 2]
                     + mm(s, raw["ww"][l, 2]) + raw["wb"][l, 2])
        H = jnp.tanh(mm(x, raw["uw"][l, 3]) + raw["ub"][l, 3]
                     + mm(s * R, raw["ww"][l, 3]) + raw["wb"][l, 3])
        s = (1.0 - G) * H + Z * s
    return s @ raw["fw"] + raw["fb"]          # finisher kept in f32 (as in kernel)


if __name__ == "__main__":
    dim, hidden, L = 4, 32, 3
    N = 250   # deliberately ragged: exercises pad + slice-back; grid gets 2 steps

    key = jax.random.PRNGKey(0)
    k_params, k_x = jax.random.split(key)
    raw = make_raw_params(k_params, dim, hidden, L)
    params = pack_params(raw, weight_dtype=jnp.bfloat16)
    x = jax.random.normal(k_x, (N, dim), jnp.float32)

    out = dgm_net_forward(x, params)          # default tiling: auto-clamps to 2 grid steps
    out = jax.block_until_ready(out)

    ref = dgm_net_reference(x, raw, weight_dtype=jnp.bfloat16)
    assert out.shape == (N, 1)
    max_diff = float(jnp.max(jnp.abs(out - ref)))
    # Kernel and reference share the bf16-operand / f32-accumulate scheme, so
    # remaining differences are only accumulation-order / bias-folding rounding.
    assert jnp.allclose(out, ref, atol=2e-3, rtol=2e-3), \
        f"mismatch vs reference: max|diff|={max_diff}"

    print("KERNEL_OK")
</pallas_src>

<mosaic_0001>
module attributes {stable_mosaic.version = 11 : i64} {
  func.func @dgm_kernel(%arg0: i32, %arg1: memref<128x4xf32, #tpu.memory_space<vmem>>, %arg2: memref<4x1664xbf16, #tpu.memory_space<vmem>>, %arg3: memref<1x1664xf32, #tpu.memory_space<vmem>>, %arg4: memref<3x128x384xbf16, #tpu.memory_space<vmem>>, %arg5: memref<3x128x128xbf16, #tpu.memory_space<vmem>>, %arg6: memref<1x128xf32, #tpu.memory_space<vmem>>, %arg7: memref<1xf32, #tpu.memory_space<smem>>, %arg8: memref<128x1xf32, #tpu.memory_space<vmem>>) attributes {dimension_semantics = [#tpu.dimension_semantics<parallel>], iteration_bounds = array<i64: 2>, scalar_prefetch = 0 : i64, scratch_operands = 0 : i64, tpu.core_type = #tpu.core_type<tc>, window_params = [{transform_indices = @transform_0, window_bounds = array<i64: 128, 4>}, {pipeline_mode = #tpu.pipeline_mode<synchronous>, transform_indices = @transform_1, window_bounds = array<i64: 4, 1664>}, {pipeline_mode = #tpu.pipeline_mode<synchronous>, transform_indices = @transform_2, window_bounds = array<i64: 1, 1664>}, {pipeline_mode = #tpu.pipeline_mode<synchronous>, transform_indices = @transform_3, window_bounds = array<i64: 3, 128, 384>}, {pipeline_mode = #tpu.pipeline_mode<synchronous>, transform_indices = @transform_4, window_bounds = array<i64: 3, 128, 128>}, {pipeline_mode = #tpu.pipeline_mode<synchronous>, transform_indices = @transform_5, window_bounds = array<i64: 1, 128>}, {transform_indices = @transform_6, window_bounds = array<i64: 1>}, {transform_indices = @transform_7, window_bounds = array<i64: 128, 1>}]} {
    %c0 = arith.constant 0 : index
    %c0_0 = arith.constant 0 : index
    %0 = vector.load %arg1[%c0, %c0_0] : memref<128x4xf32, #tpu.memory_space<vmem>>, vector<128x4xf32>
    %1 = arith.truncf %0 : vector<128x4xf32> to vector<128x4xbf16>
    %c0_1 = arith.constant 0 : index
    %c0_2 = arith.constant 0 : index
    %2 = vector.load %arg2[%c0_1, %c0_2] : memref<4x1664xbf16, #tpu.memory_space<vmem>>, vector<4x1664xbf16>
    %cst = arith.constant dense<0.000000e+00> : vector<128x1664xf32>
    %3 = tpu.matmul %1, %2, %cst {dimension_numbers = #tpu.dot_dimension_numbers<[1], [0], [0], [1], [0, 0, 1, 1], [], []>} : vector<128x4xbf16>, vector<4x1664xbf16>, vector<128x1664xf32> -> vector<128x1664xf32>
    %c0_3 = arith.constant 0 : index
    %c0_4 = arith.constant 0 : index
    %4 = vector.load %arg3[%c0_3, %c0_4] : memref<1x1664xf32, #tpu.memory_space<vmem>>, vector<1x1664xf32>
    %5 = vector.broadcast %4 : vector<1x1664xf32> to vector<128x1664xf32>
    %6 = arith.addf %3, %5 : vector<128x1664xf32>
    %7 = vector.extract_strided_slice %6 {offsets = [0, 0], sizes = [128, 128], strides = [1, 1]} : vector<128x1664xf32> to vector<128x128xf32>
    %8 = arith.truncf %7 : vector<128x128xf32> to vector<128x128xbf16>
    %c0_5 = arith.constant 0 : index
    %c0_6 = arith.constant 0 : index
    %c0_7 = arith.constant 0 : index
    %9 = vector.load %arg4[%c0_5, %c0_6, %c0_7] : memref<3x128x384xbf16, #tpu.memory_space<vmem>>, vector<1x128x384xbf16>
    %10 = vector.shape_cast %9 : vector<1x128x384xbf16> to vector<128x384xbf16>
    %cst_8 = arith.constant dense<0.000000e+00> : vector<128x384xf32>
    %11 = tpu.matmul %8, %10, %cst_8 {dimension_numbers = #tpu.dot_dimension_numbers<[1], [0], [0], [1], [0, 0, 1, 1], [], []>} : vector<128x128xbf16>, vector<128x384xbf16>, vector<128x384xf32> -> vector<128x384xf32>
    %12 = vector.extract_strided_slice %6 {offsets = [0, 128], sizes = [128, 384], strides = [1, 1]} : vector<128x1664xf32> to vector<128x384xf32>
    %13 = arith.addf %12, %11 : vector<128x384xf32>
    %14 = math.tanh %13 : vector<128x384xf32>
    %15 = vector.extract_strided_slice %14 {offsets = [0, 0], sizes = [128, 128], strides = [1, 1]} : vector<128x384xf32> to vector<128x128xf32>
    %16 = vector.extract_strided_slice %14 {offsets = [0, 128], sizes = [128, 128], strides = [1, 1]} : vector<128x384xf32> to vector<128x128xf32>
    %17 = vector.extract_strided_slice %14 {offsets = [0, 256], sizes = [128, 128], strides = [1, 1]} : vector<128x384xf32> to vector<128x128xf32>
    %18 = vector.extract_strided_slice %6 {offsets = [0, 512], sizes = [128, 128], strides = [1, 1]} : vector<128x1664xf32> to vector<128x128xf32>
    %19 = arith.mulf %7, %17 : vector<128x128xf32>
    %20 = arith.truncf %19 : vector<128x128xf32> to vector<128x128xbf16>
    %c0_9 = arith.constant 0 : index
    %c0_10 = arith.constant 0 : index
    %c0_11 = arith.constant 0 : index
    %21 = vector.load %arg5[%c0_9, %c0_10, %c0_11] : memref<3x128x128xbf16, #tpu.memory_space<vmem>>, vector<1x128x128xbf16>
    %22 = vector.shape_cast %21 : vector<1x128x128xbf16> to vector<128x128xbf16>
    %cst_12 = arith.constant dense<0.000000e+00> : vector<128x128xf32>
    %23 = tpu.matmul %20, %22, %cst_12 {dimension_numbers = #tpu.dot_dimension_numbers<[1], [0], [0], [1], [0, 0, 1, 1], [], []>} : vector<128x128xbf16>, vector<128x128xbf16>, vector<128x128xf32> -> vector<128x128xf32>
    %24 = arith.addf %18, %23 : vector<128x128xf32>
    %25 = math.tanh %24 : vector<128x128xf32>
    %cst_13 = arith.constant 1.000000e+00 : f32
    %26 = vector.broadcast %cst_13 : f32 to vector<128x128xf32>
    %27 = arith.subf %26, %16 : vector<128x128xf32>
    %28 = arith.mulf %27, %25 : vector<128x128xf32>
    %29 = arith.mulf %15, %7 : vector<128x128xf32>
    %30 = arith.addf %28, %29 : vector<128x128xf32>
    %31 = arith.truncf %30 : vector<128x128xf32> to vector<128x128xbf16>
    %c1 = arith.constant 1 : index
    %c0_14 = arith.constant 0 : index
    %c0_15 = arith.constant 0 : index
    %32 = vector.load %arg4[%c1, %c0_14, %c0_15] : memref<3x128x384xbf16, #tpu.memory_space<vmem>>, vector<1x128x384xbf16>
    %33 = vector.shape_cast %32 : vector<1x128x384xbf16> to vector<128x384xbf16>
    %cst_16 = arith.constant dense<0.000000e+00> : vector<128x384xf32>
    %34 = tpu.matmul %31, %33, %cst_16 {dimension_numbers = #tpu.dot_dimension_numbers<[1], [0], [0], [1], [0, 0, 1, 1], [], []>} : vector<128x128xbf16>, vector<128x384xbf16>, vector<128x384xf32> -> vector<128x384xf32>
    %35 = vector.extract_strided_slice %6 {offsets = [0, 640], sizes = [128, 384], strides = [1, 1]} : vector<128x1664xf32> to vector<128x384xf32>
    %36 = arith.addf %35, %34 : vector<128x384xf32>
    %37 = math.tanh %36 : vector<128x384xf32>
    %38 = vector.extract_strided_slice %37 {offsets = [0, 0], sizes = [128, 128], strides = [1, 1]} : vector<128x384xf32> to vector<128x128xf32>
    %39 = vector.extract_strided_slice %37 {offsets = [0, 128], sizes = [128, 128], strides = [1, 1]} : vector<128x384xf32> to vector<128x128xf32>
    %40 = vector.extract_strided_slice %37 {offsets = [0, 256], sizes = [128, 128], strides = [1, 1]} : vector<128x384xf32> to vector<128x128xf32>
    %41 = vector.extract_strided_slice %6 {offsets = [0, 1024], sizes = [128, 128], strides = [1, 1]} : vector<128x1664xf32> to vector<128x128xf32>
    %42 = arith.mulf %30, %40 : vector<128x128xf32>
    %43 = arith.truncf %42 : vector<128x128xf32> to vector<128x128xbf16>
    %c1_17 = arith.constant 1 : index
    %c0_18 = arith.constant 0 : index
    %c0_19 = arith.constant 0 : index
    %44 = vector.load %arg5[%c1_17, %c0_18, %c0_19] : memref<3x128x128xbf16, #tpu.memory_space<vmem>>, vector<1x128x128xbf16>
    %45 = vector.shape_cast %44 : vector<1x128x128xbf16> to vector<128x128xbf16>
    %cst_20 = arith.constant dense<0.000000e+00> : vector<128x128xf32>
    %46 = tpu.matmul %43, %45, %cst_20 {dimension_numbers = #tpu.dot_dimension_numbers<[1], [0], [0], [1], [0, 0, 1, 1], [], []>} : vector<128x128xbf16>, vector<128x128xbf16>, vector<128x128xf32> -> vector<128x128xf32>
    %47 = arith.addf %41, %46 : vector<128x128xf32>
    %48 = math.tanh %47 : vector<128x128xf32>
    %cst_21 = arith.constant 1.000000e+00 : f32
    %49 = vector.broadcast %cst_21 : f32 to vector<128x128xf32>
    %50 = arith.subf %49, %39 : vector<128x128xf32>
    %51 = arith.mulf %50, %48 : vector<128x128xf32>
    %52 = arith.mulf %38, %30 : vector<128x128xf32>
    %53 = arith.addf %51, %52 : vector<128x128xf32>
    %54 = arith.truncf %53 : vector<128x128xf32> to vector<128x128xbf16>
    %c2 = arith.constant 2 : index
    %c0_22 = arith.constant 0 : index
    %c0_23 = arith.constant 0 : index
    %55 = vector.load %arg4[%c2, %c0_22, %c0_23] : memref<3x128x384xbf16, #tpu.memory_space<vmem>>, vector<1x128x384xbf16>
    %56 = vector.shape_cast %55 : vector<1x128x384xbf16> to vector<128x384xbf16>
    %cst_24 = arith.constant dense<0.000000e+00> : vector<128x384xf32>
    %57 = tpu.matmul %54, %56, %cst_24 {dimension_numbers = #tpu.dot_dimension_numbers<[1], [0], [0], [1], [0, 0, 1, 1], [], []>} : vector<128x128xbf16>, vector<128x384xbf16>, vector<128x384xf32> -> vector<128x384xf32>
    %58 = vector.extract_strided_slice %6 {offsets = [0, 1152], sizes = [128, 384], strides = [1, 1]} : vector<128x1664xf32> to vector<128x384xf32>
    %59 = arith.addf %58, %57 : vector<128x384xf32>
    %60 = math.tanh %59 : vector<128x384xf32>
    %61 = vector.extract_strided_slice %60 {offsets = [0, 0], sizes = [128, 128], strides = [1, 1]} : vector<128x384xf32> to vector<128x128xf32>
    %62 = vector.extract_strided_slice %60 {offsets = [0, 128], sizes = [128, 128], strides = [1, 1]} : vector<128x384xf32> to vector<128x128xf32>
    %63 = vector.extract_strided_slice %60 {offsets = [0, 256], sizes = [128, 128], strides = [1, 1]} : vector<128x384xf32> to vector<128x128xf32>
    %64 = vector.extract_strided_slice %6 {offsets = [0, 1536], sizes = [128, 128], strides = [1, 1]} : vector<128x1664xf32> to vector<128x128xf32>
    %65 = arith.mulf %53, %63 : vector<128x128xf32>
    %66 = arith.truncf %65 : vector<128x128xf32> to vector<128x128xbf16>
    %c2_25 = arith.constant 2 : index
    %c0_26 = arith.constant 0 : index
    %c0_27 = arith.constant 0 : index
    %67 = vector.load %arg5[%c2_25, %c0_26, %c0_27] : memref<3x128x128xbf16, #tpu.memory_space<vmem>>, vector<1x128x128xbf16>
    %68 = vector.shape_cast %67 : vector<1x128x128xbf16> to vector<128x128xbf16>
    %cst_28 = arith.constant dense<0.000000e+00> : vector<128x128xf32>
    %69 = tpu.matmul %66, %68, %cst_28 {dimension_numbers = #tpu.dot_dimension_numbers<[1], [0], [0], [1], [0, 0, 1, 1], [], []>} : vector<128x128xbf16>, vector<128x128xbf16>, vector<128x128xf32> -> vector<128x128xf32>
    %70 = arith.addf %64, %69 : vector<128x128xf32>
    %71 = math.tanh %70 : vector<128x128xf32>
    %cst_29 = arith.constant 1.000000e+00 : f32
    %72 = vector.broadcast %cst_29 : f32 to vector<128x128xf32>
    %73 = arith.subf %72, %62 : vector<128x128xf32>
    %74 = arith.mulf %73, %71 : vector<128x128xf32>
    %75 = arith.mulf %61, %53 : vector<128x128xf32>
    %76 = arith.addf %74, %75 : vector<128x128xf32>
    %c0_30 = arith.constant 0 : index
    %c0_31 = arith.constant 0 : index
    %77 = vector.load %arg6[%c0_30, %c0_31] : memref<1x128xf32, #tpu.memory_space<vmem>>, vector<1x128xf32>
    %78 = vector.broadcast %77 : vector<1x128xf32> to vector<128x128xf32>
    %79 = arith.mulf %76, %78 : vector<128x128xf32>
    %cst_32 = arith.constant dense<0.000000e+00> : vector<128xf32>
    %80 = vector.multi_reduction <add>, %79, %cst_32 [1] : vector<128x128xf32> to vector<128xf32>
    %81 = vector.shape_cast %80 : vector<128xf32> to vector<128x1xf32>
    %c0_33 = arith.constant 0 : index
    %82 = memref.load %arg7[%c0_33] : memref<1xf32, #tpu.memory_space<smem>>
    %83 = vector.broadcast %82 : f32 to vector<128x1xf32>
    %84 = arith.addf %81, %83 : vector<128x1xf32>
    %c0_34 = arith.constant 0 : index
    %c0_35 = arith.constant 0 : index
    %85 = vector.load %arg8[%c0_34, %c0_35] : memref<128x1xf32, #tpu.memory_space<vmem>>, vector<128x1xf32>
    tpu.vector_store %arg8[%c0_34, %c0_35], %84 {strides = array<i32>} : memref<128x1xf32, #tpu.memory_space<vmem>>, vector<128x1xf32>,
    return
  }
  func.func @transform_0(%arg0: i32) -> (i32, i32) {
    %c0_i32 = arith.constant 0 : i32
    %c0_i32_0 = arith.constant 0 : i32
    return %arg0, %c0_i32 : i32, i32
  }
  func.func @transform_1(%arg0: i32) -> (i32, i32) {
    %c0_i32 = arith.constant 0 : i32
    %c0_i32_0 = arith.constant 0 : i32
    %c0_i32_1 = arith.constant 0 : i32
    return %c0_i32, %c0_i32_0 : i32, i32
  }
  func.func @transform_2(%arg0: i32) -> (i32, i32) {
    %c0_i32 = arith.constant 0 : i32
    %c0_i32_0 = arith.constant 0 : i32
    %c0_i32_1 = arith.constant 0 : i32
    return %c0_i32, %c0_i32_0 : i32, i32
  }
  func.func @transform_3(%arg0: i32) -> (i32, i32, i32) {
    %c0_i32 = arith.constant 0 : i32
    %c0_i32_0 = arith.constant 0 : i32
    %c0_i32_1 = arith.constant 0 : i32
    %c0_i32_2 = arith.constant 0 : i32
    return %c0_i32, %c0_i32_0, %c0_i32_1 : i32, i32, i32
  }
  func.func @transform_4(%arg0: i32) -> (i32, i32, i32) {
    %c0_i32 = arith.constant 0 : i32
    %c0_i32_0 = arith.constant 0 : i32
    %c0_i32_1 = arith.constant 0 : i32
    %c0_i32_2 = arith.constant 0 : i32
    return %c0_i32, %c0_i32_0, %c0_i32_1 : i32, i32, i32
  }
  func.func @transform_5(%arg0: i32) -> (i32, i32) {
    %c0_i32 = arith.constant 0 : i32
    %c0_i32_0 = arith.constant 0 : i32
    %c0_i32_1 = arith.constant 0 : i32
    return %c0_i32, %c0_i32_0 : i32, i32
  }
  func.func @transform_6(%arg0: i32) -> i32 {
    %c0_i32 = arith.constant 0 : i32
    %c0_i32_0 = arith.constant 0 : i32
    return %c0_i32 : i32
  }
  func.func @transform_7(%arg0: i32) -> (i32, i32) {
    %c0_i32 = arith.constant 0 : i32
    %c0_i32_0 = arith.constant 0 : i32
    return %arg0, %c0_i32 : i32, i32
  }
}

</mosaic_0001>

<llo_original>
// kernel: tpu_custom_call.1
$region0: #{tpu_custom_call.1}
  #allocation0 [shape = 'u32[]', space=smem, size = 0x4, offset = 0x4, fixed_abs, tag = 'smem constant byte address 0x4 - core index']
  #allocation1 [shape = 'u32[144,128]{1,0:T(1,128)}', space=vmem, size = 0x12000, scoped, tag = 'internal scratch']
  #allocation2 [shape = 'f32[1]{0:T(128)S(6)}', space=smem, size = 0x200, scoped, tag = 'scoped memory for tpu_custom_call.1']
  %s0 = inlined_call_operand.vmem [shape: f32[256,4], index: 0, kind: input, shape index: {}]
  %s1 = inlined_call_operand.vmem [shape: bf16[4,1664], index: 1, kind: input, shape index: {}]
  %s2 = inlined_call_operand.vmem [shape: f32[1,1664], index: 2, kind: input, shape index: {}]
  %s3 = inlined_call_operand.hbm [shape: bf16[3,128,384], index: 3, kind: input, shape index: {}]
  %s4 = inlined_call_operand.vmem [shape: bf16[3,128,128], index: 4, kind: input, shape index: {}]
  %s5 = inlined_call_operand.vmem [shape: f32[1,128], index: 5, kind: input, shape index: {}]
  %s6 = inlined_call_operand.<no memory space> [shape: f32[1], index: 6, kind: input, shape index: {}]
  %s7 = inlined_call_operand.vmem [shape: f32[256,1], index: 7, kind: output, shape index: {}]
  %s8 = sld [smem:[#allocation0]]
  $region65: #{tpu_custom_call.1} parent=0
    _
  %s10 = ssub.s32 1, %s8
  %s11 = scalar_select 0, %s10, %s8
  %12 = sst [smem:[#allocation2]] %s6
  $region1: #{tpu_custom_call.1} parent=0
    #allocation3 [shape = 'u8[294912]{0}', space=vmem, size = 0x48000, scoped, tag = 'input window, operand 3, single buffered']
    #allocation4 [shape = 's32[2]{0}', space=sflag, size = 0x8, scoped, tag = 'scoped memory for tpu_custom_call.1']
    %13 = vsyncpa [#allocation4], 0
    loop: start=0, step=1, limit=4
    $region2: #{tpu_custom_call.1} parent=1 // loop_pre_header
      _
    $region3: #{tpu_custom_call.1} parent=1 // loop_header
      %s15 = sphi 0, %s19
      %p16 = scmp.ge.s32.totalorder %s15, 4
      %s25 = sphi 0, %s27
      %s28 = sphi 0, %s25
      %s29 = sphi 0, %s28
      %s45 = sphi 0, %s29
      %s49 = sphi 0, %s49
      %s51 = sphi 0, %s49
      %s52 = sphi 0, %s51
      %s66 = sphi 0, %s52
      %s70 = sphi 0, %s70
      %s72 = sphi 0, %s70
      %s73 = sphi 0, %s72
      %s87 = sphi 0, %s73
      %s91 = sphi 0, %s91
      %s93 = sphi 0, %s91
      %s94 = sphi 0, %s93
      %s108 = sphi 0, %s94
      %s112 = sphi 0, %s112
      %s114 = sphi 0, %s112
      %s115 = sphi 0, %s114
      %s129 = sphi 0, %s115
      %s133 = sphi 0, %s133
      %s135 = sphi 0, %s133
      %s136 = sphi 0, %s135
      %s150 = sphi 0, %s136
      %s154 = sphi 0, %s154
      %s156 = sphi 0, %s154
      %s157 = sphi 0, %s156
      %s171 = sphi 0, %s157
      %s177 = sphi 0, %s179
      %s180 = sphi 0, %s177
      %s181 = sphi 0, %s180
      %s197 = sphi 0, %s181
    $region4: #{tpu_custom_call.1} parent=1 // loop_header_branch
      %18 = sbr.rel (%p16) target = $region8
    $region5: #{tpu_custom_call.1} parent=1 // loop_body
      %s20 = ssub.s32 %s15, 1
      %s21 = ssub.s32 %s15, 2
      %s22 = sadd.s32 %s15, 1
      %s23 = ssub.s32 %s15, %s22
      %p24 = scmp.eq.s32.totalorder %s23, 0
      %s26 = sadd.s32 %s25, 1
      %s27 = scalar_select %p24, %s25, %s26
      %p30 = pneg %p24
      %p31 = scmp.eq.s32.totalorder %s15, 1
      %p32 = por %p30, %p31
      %p33 = scmp.ne.s32.totalorder %s25, %s28
      %p34 = scmp.eq.s32.totalorder %s15, 0
      %p35 = por %p33, %p34
      %p36 = scmp.ne.s32.totalorder %s25, %s28
      %p37 = scmp.eq.s32.totalorder %s20, 1
      %p38 = por %p36, %p37
      %p39 = scmp.ne.s32.totalorder %s28, %s29
      %p40 = scmp.eq.s32.totalorder %s20, 0
      %p41 = por %p39, %p40
      %p42 = scmp.ne.s32.totalorder %s28, %s29
      %p43 = scmp.eq.s32.totalorder %s21, 1
      %p44 = por %p42, %p43
      %p46 = scmp.ne.s32.totalorder %s29, %s45
      %p47 = scmp.eq.s32.totalorder %s21, 0
      %p48 = por %p46, %p47
      %s50 = sadd.s32 %s49, 1
      %p53 = scmp.eq.s32.totalorder %s15, 1
      %p54 = scmp.ne.s32.totalorder %s49, %s51
      %p55 = scmp.eq.s32.totalorder %s15, 0
      %p56 = por %p54, %p55
      %p57 = scmp.ne.s32.totalorder %s49, %s51
      %p58 = scmp.eq.s32.totalorder %s20, 1
      %p59 = por %p57, %p58
      %p60 = scmp.ne.s32.totalorder %s51, %s52
      %p61 = scmp.eq.s32.totalorder %s20, 0
      %p62 = por %p60, %p61
      %p63 = scmp.ne.s32.totalorder %s51, %s52
      %p64 = scmp.eq.s32.totalorder %s21, 1
      %p65 = por %p63, %p64
      %p67 = scmp.ne.s32.totalorder %s52, %s66
      %p68 = scmp.eq.s32.totalorder %s21, 0
      %p69 = por %p67, %p68
      %s71 = sadd.s32 %s70, 1
      %p74 = scmp.eq.s32.totalorder %s15, 1
      %p75 = scmp.ne.s32.totalorder %s70, %s72
      %p76 = scmp.eq.s32.totalorder %s15, 0
      %p77 = por %p75, %p76
      %p78 = scmp.ne.s32.totalorder %s70, %s72
      %p79 = scmp.eq.s32.totalorder %s20, 1
      %p80 = por %p78, %p79
      %p81 = scmp.ne.s32.totalorder %s72, %s73
      %p82 = scmp.eq.s32.totalorder %s20, 0
      %p83 = por %p81, %p82
      %p84 = scmp.ne.s32.totalorder %s72, %s73
      %p85 = scmp.eq.s32.totalorder %s21, 1
      %p86 = por %p84, %p85
      %p88 = scmp.ne.s32.totalorder %s73, %s87
      %p89 = scmp.eq.s32.totalorder %s21, 0
      %p90 = por %p88, %p89
      %s92 = sadd.s32 %s91, 1
      %p95 = scmp.eq.s32.totalorder %s15, 1
      %p96 = scmp.ne.s32.totalorder %s91, %s93
      %p97 = scmp.eq.s32.totalorder %s15, 0
      %p98 = por %p96, %p97
      %p99 = scmp.ne.s32.totalorder %s91, %s93
      %p100 = scmp.eq.s32.totalorder %s20, 1
      %p101 = por %p99, %p100
      %p102 = scmp.ne.s32.totalorder %s93, %s94
      %p103 = scmp.eq.s32.totalorder %s20, 0
      %p104 = por %p102, %p103
      %p105 = scmp.ne.s32.totalorder %s93, %s94
      %p106 = scmp.eq.s32.totalorder %s21, 1
      %p107 = por %p105, %p106
      %p109 = scmp.ne.s32.totalorder %s94, %s108
      %p110 = scmp.eq.s32.totalorder %s21, 0
      %p111 = por %p109, %p110
      %s113 = sadd.s32 %s112, 1
      %p116 = scmp.eq.s32.totalorder %s15, 1
      %p117 = scmp.ne.s32.totalorder %s112, %s114
      %p118 = scmp.eq.s32.totalorder %s15, 0
      %p119 = por %p117, %p118
      %p120 = scmp.ne.s32.totalorder %s112, %s114
      %p121 = scmp.eq.s32.totalorder %s20, 1
      %p122 = por %p120, %p121
      %p123 = scmp.ne.s32.totalorder %s114, %s115
      %p124 = scmp.eq.s32.totalorder %s20, 0
      %p125 = por %p123, %p124
      %p126 = scmp.ne.s32.totalorder %s114, %s115
      %p127 = scmp.eq.s32.totalorder %s21, 1
      %p128 = por %p126, %p127
      %p130 = scmp.ne.s32.totalorder %s115, %s129
      %p131 = scmp.eq.s32.totalorder %s21, 0
      %p132 = por %p130, %p131
      %s134 = sadd.s32 %s133, 1
      %p137 = scmp.eq.s32.totalorder %s15, 1
      %p138 = scmp.ne.s32.totalorder %s133, %s135
      %p139 = scmp.eq.s32.totalorder %s15, 0
      %p140 = por %p138, %p139
      %p141 = scmp.ne.s32.totalorder %s133, %s135
      %p142 = scmp.eq.s32.totalorder %s20, 1
      %p143 = por %p141, %p142
      %p144 = scmp.ne.s32.totalorder %s135, %s136
      %p145 = scmp.eq.s32.totalorder %s20, 0
      %p146 = por %p144, %p145
      %p147 = scmp.ne.s32.totalorder %s135, %s136
      %p148 = scmp.eq.s32.totalorder %s21, 1
      %p149 = por %p147, %p148
      %p151 = scmp.ne.s32.totalorder %s136, %s150
      %p152 = scmp.eq.s32.totalorder %s21, 0
      %p153 = por %p151, %p152
      %s155 = sadd.s32 %s154, 1
      %p158 = scmp.eq.s32.totalorder %s15, 1
      %p159 = scmp.ne.s32.totalorder %s154, %s156
      %p160 = scmp.eq.s32.totalorder %s15, 0
      %p161 = por %p159, %p160
      %p162 = scmp.ne.s32.totalorder %s154, %s156
      %p163 = scmp.eq.s32.totalorder %s20, 1
      %p164 = por %p162, %p163
      %p165 = scmp.ne.s32.totalorder %s156, %s157
      %p166 = scmp.eq.s32.totalorder %s20, 0
      %p167 = por %p165, %p166
      %p168 = scmp.ne.s32.totalorder %s156, %s157
      %p169 = scmp.eq.s32.totalorder %s21, 1
      %p170 = por %p168, %p169
      %p172 = scmp.ne.s32.totalorder %s157, %s171
      %p173 = scmp.eq.s32.totalorder %s21, 0
      %p174 = por %p172, %p173
      %s175 = ssub.s32 %s15, %s22
      %p176 = scmp.eq.s32.totalorder %s175, 0
      %s178 = sadd.s32 %s177, 1
      %s179 = scalar_select %p176, %s177, %s178
      %p182 = pneg %p176
      %p183 = scmp.eq.s32.totalorder %s15, 1
      %p184 = por %p182, %p183
      %p185 = scmp.ne.s32.totalorder %s177, %s180
      %p186 = scmp.eq.s32.totalorder %s15, 0
      %p187 = por %p185, %p186
      %p188 = scmp.ne.s32.totalorder %s177, %s180
      %p189 = scmp.eq.s32.totalorder %s20, 1
      %p190 = por %p188, %p189
      %p191 = scmp.ne.s32.totalorder %s180, %s181
      %p192 = scmp.eq.s32.totalorder %s20, 0
      %p193 = por %p191, %p192
      %p194 = scmp.ne.s32.totalorder %s180, %s181
      %p195 = scmp.eq.s32.totalorder %s21, 1
      %p196 = por %p194, %p195
      %p198 = scmp.ne.s32.totalorder %s181, %s197
      %p199 = scmp.eq.s32.totalorder %s21, 0
      %p200 = por %p198, %p199
      %p201 = scmp.le.s32.totalorder 1, %s15
      %p202 = scmp.lt.s32.totalorder %s15, 3
      %p203 = pnand %p201, %p202
      %p204 = pneg %p203
      // Predicated region
      $region9: #{tpu_custom_call.1} parent=5 // pred_check
        _
      $region10: #{tpu_custom_call.1} parent=5 // pred_check_branch
        %206 = sbr.rel (%p203) target = $region12
      $region11: #{tpu_custom_call.1} parent=5 // pred_region
        %s207 = ssub.s32 %s15, 1
        // Predicated region
        $region13: #{tpu_custom_call.1} parent=11 // pred_check
          %p208 = pneg %p62
        $region14: #{tpu_custom_call.1} parent=11 // pred_check_branch
          %210 = sbr.rel (%p208) target = $region16
        $region15: #{tpu_custom_call.1} parent=11 // pred_region
          _
        $region16: #{tpu_custom_call.1} parent=11 // pred_fallthru
          _
        // Predicated region
        $region17: #{tpu_custom_call.1} parent=11 // pred_check
          %p211 = pneg %p83
        $region18: #{tpu_custom_call.1} parent=11 // pred_check_branch
          %213 = sbr.rel (%p211) target = $region20
        $region19: #{tpu_custom_call.1} parent=11 // pred_region
          _
        $region20: #{tpu_custom_call.1} parent=11 // pred_fallthru
          _
        // Predicated region
        $region21: #{tpu_custom_call.1} parent=11 // pred_check
          %p214 = pneg %p104
        $region22: #{tpu_custom_call.1} parent=11 // pred_check_branch
          %216 = sbr.rel (%p214) target = $region24
        $region23: #{tpu_custom_call.1} parent=11 // pred_region
          %s218 = ssub.s32 9216, 9216
          %219 = vsyncadd [#allocation4], %s218
          %s220 = sshll.u32 [#allocation3], 4
          %s221 = int_to_ptr.vmem [resolvable:$true] %s220
          %226 = dma.hbm_to_vmem [thread:$0]  %s3, 9216, %s221, [#allocation4], 192, 192, 12
        $region24: #{tpu_custom_call.1} parent=11 // pred_fallthru
          _
        // Predicated region
        $region25: #{tpu_custom_call.1} parent=11 // pred_check
          %p227 = pneg %p125
        $region26: #{tpu_custom_call.1} parent=11 // pred_check_branch
          %229 = sbr.rel (%p227) target = $region28
        $region27: #{tpu_custom_call.1} parent=11 // pred_region
          _
        $region28: #{tpu_custom_call.1} parent=11 // pred_fallthru
          _
        // Predicated region
        $region29: #{tpu_custom_call.1} parent=11 // pred_check
          %p230 = pneg %p146
        $region30: #{tpu_custom_call.1} parent=11 // pred_check_branch
          %232 = sbr.rel (%p230) target = $region32
        $region31: #{tpu_custom_call.1} parent=11 // pred_region
          _
        $region32: #{tpu_custom_call.1} parent=11 // pred_fallthru
          _
        // Predicated region
        $region33: #{tpu_custom_call.1} parent=11 // pred_check
          %p233 = pneg %p167
        $region34: #{tpu_custom_call.1} parent=11 // pred_check_branch
          %235 = sbr.rel (%p233) target = $region36
        $region35: #{tpu_custom_call.1} parent=11 // pred_region
          _
        $region36: #{tpu_custom_call.1} parent=11 // pred_fallthru
          _
      $region12: #{tpu_custom_call.1} parent=5 // pred_fallthru
        _
      %p236 = scmp.lt.s32.totalorder %s15, 2
      // Predicated region
      $region37: #{tpu_custom_call.1} parent=5 // pred_check
        %p237 = pneg %p236
      $region38: #{tpu_custom_call.1} parent=5 // pred_check_branch
        %239 = sbr.rel (%p237) target = $region40
      $region39: #{tpu_custom_call.1} parent=5 // pred_region
        // Predicated region
        $region41: #{tpu_custom_call.1} parent=39 // pred_check
          %p240 = pneg %p35
        $region42: #{tpu_custom_call.1} parent=39 // pred_check_branch
          %242 = sbr.rel (%p240) target = $region44
        $region43: #{tpu_custom_call.1} parent=39 // pred_region
          %s243 = smul.u32 16, %s15
          %p244 = scmp.lt.s32.totalorder %s243, 31
          %s245 = scalar_select %p244, %s243, 31
          %s246 = smul.addr %s245, 8
          %s247 = scalar_lea.vmem %s0, %s246
          %s248 = smul.u32 16, %s15
        $region44: #{tpu_custom_call.1} parent=39 // pred_fallthru
          _
      $region40: #{tpu_custom_call.1} parent=5 // pred_fallthru
        _
      %p249 = scmp.le.s32.totalorder 1, %s15
      %p250 = scmp.lt.s32.totalorder %s15, 3
      %p251 = pnand %p249, %p250
      %p252 = pneg %p251
      // Predicated region
      $region45: #{tpu_custom_call.1} parent=5 // pred_check
        _
      $region46: #{tpu_custom_call.1} parent=5 // pred_check_branch
        %254 = sbr.rel (%p251) target = $region48
      $region47: #{tpu_custom_call.1} parent=5 // pred_region
        %s255 = ssub.s32 %s15, 1
        // Predicated region
        $region49: #{tpu_custom_call.1} parent=47 // pred_check
          %p256 = pneg %p104
        $region50: #{tpu_custom_call.1} parent=47 // pred_check_branch
          %258 = sbr.rel (%p256) target = $region52
        $region51: #{tpu_custom_call.1} parent=47 // pred_region
          %259 = dma.done [#allocation4], 9216
        $region52: #{tpu_custom_call.1} parent=47 // pred_fallthru
          _
        %s260 = smul.u32 16, %s20
        %p261 = scmp.lt.s32.totalorder %s260, 31
        %s262 = scalar_select %p261, %s260, 31
        %s263 = smul.addr %s262, 8
        %s264 = scalar_lea.vmem %s0, %s263
        %p265 = pneg %p41
        %p266 = pneg %p38
        %p267 = pneg %p62
        %p268 = pneg %p59
        %p269 = pneg %p83
        %p270 = pneg %p80
        %p271 = pneg %p104
        %p272 = pneg %p101
        %p273 = pneg %p125
        %p274 = pneg %p122
        %p275 = pneg %p146
        %p276 = pneg %p143
        %p277 = pneg %p167
        %p278 = pneg %p164
        %p279 = pneg %p193
        %p280 = pneg %p190
        %s281 = smul.u32 16, %s20
        %p282 = scmp.lt.s32.totalorder %s281, 31
        %s283 = scalar_select %p282, %s281, 31
        %s284 = smul.addr %s283, 8
        %s285 = scalar_lea.vmem %s7, %s284
        %s286 = smul.u32 16, %s20
        %p287 = scmp.lt.s32.totalorder %s286, 31
        %s288 = scalar_select %p287, %s286, 31
        %s289 = smul.addr %s288, 8
        %s290 = scalar_lea.vmem %s0, %s289
        %s291 = smul.u32 16, %s20
        %s292 = smul.u32 16, %s20
        %p293 = scmp.lt.s32.totalorder %s292, 31
        %s294 = scalar_select %p293, %s292, 31
        %s295 = smul.addr %s294, 8
        %s296 = scalar_lea.vmem %s7, %s295
        %s297 = smul.u32 16, %s20
        %v299 = vld [vmem:[%s290] sm:$0xff]
        %v300 = vld [vmem:[%s290 + $0x8] sm:$0xff]
        %v301 = vld [vmem:[%s290 + $0x10] sm:$0xff]
        %v302 = vld [vmem:[%s290 + $0x18] sm:$0xff]
        %v303 = vld [vmem:[%s290 + $0x20] sm:$0xff]
        %v304 = vld [vmem:[%s290 + $0x28] sm:$0xff]
        %v305 = vld [vmem:[%s290 + $0x30] sm:$0xff]
        %v306 = vld [vmem:[%s290 + $0x38] sm:$0xff]
        %v307 = vld [vmem:[%s290 + $0x40] sm:$0xff]
        %v308 = vld [vmem:[%s290 + $0x48] sm:$0xff]
        %v309 = vld [vmem:[%s290 + $0x50] sm:$0xff]
        %v310 = vld [vmem:[%s290 + $0x58] sm:$0xff]
        %v311 = vld [vmem:[%s290 + $0x60] sm:$0xff]
        %v312 = vld [vmem:[%s290 + $0x68] sm:$0xff]
        %v313 = vld [vmem:[%s290 + $0x70] sm:$0xff]
        %v314 = vld [vmem:[%s290 + $0x78] sm:$0xff]
        %v315 = vpack.c.bf16 %v300, %v299
        %v316 = vpack.c.bf16 %v302, %v301
        %v317 = vpack.c.bf16 %v304, %v303
        %v318 = vpack.c.bf16 %v306, %v305
        %v319 = vpack.c.bf16 %v308, %v307
        %v320 = vpack.c.bf16 %v310, %v309
        %v321 = vpack.c.bf16 %v312, %v311
        %v322 = vpack.c.bf16 %v314, %v313
        %v323 = vld [vmem:[%s1] sm:$0xff]
        %v324 = vld [vmem:[%s1 + $0x8] sm:$0xff]
        %v325 = vld [vmem:[%s1 + $0x10] sm:$0xff]
        %v326 = vld [vmem:[%s1 + $0x18] sm:$0x3]
        %v327 = vld [vmem:[%s2] sm:$0xff]
        %v328 = vld [vmem:[%s2 + $0x8] sm:$0x1f]
        %v331 = vlaneseq
        %v332 = vshrl.u32 %v331, 7
        %v333 = vsub.s32 0, %v332
        %v334 = vrot.slane %v327, %v333
        %v335 = vlaneseq
        %v336 = vshrl.u32 %v335, 7
        %v337 = vsub.s32 1, %v336
        %v338 = vrot.slane %v327, %v337
        %v339 = vlaneseq
        %v340 = vshrl.u32 %v339, 7
        %v341 = vsub.s32 2, %v340
        %v342 = vrot.slane %v327, %v341
        %v343 = vlaneseq
        %v344 = vshrl.u32 %v343, 7
        %v345 = vsub.s32 3, %v344
        %v346 = vrot.slane %v327, %v345
        %v347 = vlaneseq
        %v348 = vshrl.u32 %v347, 7
        %v349 = vsub.s32 4, %v348
        %v350 = vrot.slane %v327, %v349
        %v351 = vlaneseq
        %v352 = vshrl.u32 %v351, 7
        %v353 = vsub.s32 5, %v352
        %v354 = vrot.slane %v327, %v353
        %v355 = vlaneseq
        %v356 = vshrl.u32 %v355, 7
        %v357 = vsub.s32 6, %v356
        %v358 = vrot.slane %v327, %v357
        %v359 = vlaneseq
        %v360 = vshrl.u32 %v359, 7
        %v361 = vsub.s32 7, %v360
        %v362 = vrot.slane %v327, %v361
        %v363 = vlaneseq
        %v364 = vshrl.u32 %v363, 7
        %v365 = vsub.s32 0, %v364
        %v366 = vrot.slane %v328, %v365
        %v367 = vlaneseq
        %v368 = vshrl.u32 %v367, 7
        %v369 = vsub.s32 1, %v368
        %v370 = vrot.slane %v328, %v369
        %v371 = vlaneseq
        %v372 = vshrl.u32 %v371, 7
        %v373 = vsub.s32 2, %v372
        %v374 = vrot.slane %v328, %v373
        %v375 = vlaneseq
        %v376 = vshrl.u32 %v375, 7
        %v377 = vsub.s32 3, %v376
        %v378 = vrot.slane %v328, %v377
        %v379 = vlaneseq
        %v380 = vshrl.u32 %v379, 7
        %v381 = vsub.s32 4, %v380
        %v382 = vrot.slane %v328, %v381
        %v400 = vcombine.high %v323, %v323
        %v402 = vunpack.c.l.s4 1983009808
        %v403 = vunpack.c.0.s8 %v402
        %v404 = vlaneseq
        %v405 = vshrl.u32 %v404, 7
        %v406 = vsub.s32 %v403, %v405
        %v407 = vrot.slane %v323, %v406
        %v409 = vunpack.c.l.s4 1983009808
        %v410 = vunpack.c.0.s8 %v409
        %v411 = vlaneseq
        %v412 = vshrl.u32 %v411, 7
        %v413 = vsub.s32 %v410, %v412
        %v414 = vrot.slane %v400, %v413
        %v415 = vcombine.high %v407, %v407
        %v416 = vcombine.high %v414, %v414
        %v417 = vcombine.high %v324, %v324
        %v419 = vunpack.c.l.s4 1983009808
        %v420 = vunpack.c.0.s8 %v419
        %v421 = vlaneseq
        %v422 = vshrl.u32 %v421, 7
        %v423 = vsub.s32 %v420, %v422
        %v424 = vrot.slane %v324, %v423
        %v426 = vunpack.c.l.s4 1983009808
        %v427 = vunpack.c.0.s8 %v426
        %v428 = vlaneseq
        %v429 = vshrl.u32 %v428, 7
        %v430 = vsub.s32 %v427, %v429
        %v431 = vrot.slane %v417, %v430
        %v432 = vcombine.high %v424, %v424
        %v433 = vcombine.high %v431, %v431
        %v434 = vcombine.high %v325, %v325
        %v436 = vunpack.c.l.s4 1983009808
        %v437 = vunpack.c.0.s8 %v436
        %v438 = vlaneseq
        %v439 = vshrl.u32 %v438, 7
        %v440 = vsub.s32 %v437, %v439
        %v441 = vrot.slane %v325, %v440
        %v443 = vunpack.c.l.s4 1983009808
        %v444 = vunpack.c.0.s8 %v443
        %v445 = vlaneseq
        %v446 = vshrl.u32 %v445, 7
        %v447 = vsub.s32 %v444, %v446
        %v448 = vrot.slane %v434, %v447
        %v449 = vcombine.high %v441, %v441
        %v450 = vcombine.high %v448, %v448
        %v452 = vunpack.c.l.s4 1983009808
        %v453 = vunpack.c.0.s8 %v452
        %v454 = vlaneseq
        %v455 = vshrl.u32 %v454, 7
        %v456 = vsub.s32 %v453, %v455
        %v457 = vrot.slane %v326, %v456
        %vm458 = vcmask 31744
        %v460 = vsel %vm458, %v315, 0
        %v463 = vsel %vm458, %v316, 0
        %v466 = vsel %vm458, %v317, 0
        %v469 = vsel %vm458, %v318, 0
        %v472 = vsel %vm458, %v319, 0
        %v475 = vsel %vm458, %v320, 0
        %v478 = vsel %vm458, %v321, 0
        %v481 = vsel %vm458, %v322, 0
        %vm483 = vcmask 1041408
        %v485 = vsel %vm483, %v407, 0
        %v488 = vsel %vm483, %v415, 0
        %v491 = vsel %vm483, %v414, 0
        %v494 = vsel %vm483, %v416, 0
        %v497 = vsel %vm483, %v424, 0
        %v500 = vsel %vm483, %v432, 0
        %v503 = vsel %vm483, %v431, 0
        %v506 = vsel %vm483, %v433, 0
        %v509 = vsel %vm483, %v441, 0
        %v512 = vsel %vm483, %v449, 0
        %v515 = vsel %vm483, %v448, 0
        %v518 = vsel %vm483, %v450, 0
        %v521 = vsel %vm483, %v457, 0
        %523 = vmatprep.subr.bf16.mxu0 0
        %524 = vmatpush1.bf16.msra.mxu0 0
        %525 = vmatprep.subr.bf16.mxu0 0
        %526 = vmatpush1.bf16.msra.mxu0 0
        %527 = vmatprep.subr.bf16.mxu0 0
        %528 = vmatpush1.bf16.msra.mxu0 0
        %529 = vmatprep.subr.bf16.mxu0 0
        %530 = vmatpush1.bf16.msra.mxu0 0
        %531 = vmatprep.subr.bf16.mxu0 0
        %532 = vmatpush1.bf16.msra.mxu0 0
        %533 = vmatprep.subr.bf16.mxu0 0
        %534 = vmatpush1.bf16.msra.mxu0 0
        %535 = vmatprep.subr.bf16.mxu0 0
        %536 = vmatpush1.bf16.msra.mxu0 0
        %537 = vmatprep.subr.bf16.mxu0 %v488
        %538 = vmatpush1.bf16.msra.mxu0 %v485
        %539 = vmatprep.subr.bf16.mxu0 0
        %540 = vmatpush2.bf16.msra.mxu0 0
        %541 = vmatprep.subr.bf16.mxu0 0
        %542 = vmatpush2.bf16.msra.mxu0 0
        %543 = vmatprep.subr.bf16.mxu0 0
        %544 = vmatpush2.bf16.msra.mxu0 0
        %545 = vmatprep.subr.bf16.mxu0 0
        %546 = vmatpush2.bf16.msra.mxu0 0
        %547 = vmatprep.subr.bf16.mxu0 0
        %548 = vmatpush2.bf16.msra.mxu0 0
        %549 = vmatprep.subr.bf16.mxu0 0
        %550 = vmatpush2.bf16.msra.mxu0 0
        %551 = vmatprep.subr.bf16.mxu0 0
        %552 = vmatpush2.bf16.msra.mxu0 0
        %553 = vmatprep.subr.bf16.mxu0 0
        %554 = vmatpush2.bf16.msra.mxu0 0
        %555 = vmatprep.mubr.bf16.mxu0 0
        %556 = vmatmul.mubr.bf16.gmra.mxu0 %v460
        %v557 = vpop.f32.mrf.mxu0
        %v558 = vadd.f32 %v334, %v557
        %v559 = vpop.f32.mrf.mxu0
        %v560 = vadd.f32 %v338, %v559
        %v561 = vpop.f32.mrf.mxu0
        %v562 = vadd.f32 %v334, %v561
        %v563 = vpop.f32.mrf.mxu0
        %v564 = vadd.f32 %v338, %v563
        %565 = vmatprep.mubr.bf16.mxu0 0
        %566 = vmatmul.mubr.bf16.gmra.mxu0 %v463
        %v567 = vpop.f32.mrf.mxu0
        %v568 = vadd.f32 %v334, %v567
        %v569 = vpop.f32.mrf.mxu0
        %v570 = vadd.f32 %v338, %v569
        %v571 = vpop.f32.mrf.mxu0
        %v572 = vadd.f32 %v334, %v571
        %v573 = vpop.f32.mrf.mxu0
        %v574 = vadd.f32 %v338, %v573
        %575 = vmatprep.mubr.bf16.mxu0 0
        %576 = vmatmul.mubr.bf16.gmra.mxu0 %v466
        %v577 = vpop.f32.mrf.mxu0
        %v578 = vadd.f32 %v334, %v577
        %v579 = vpop.f32.mrf.mxu0
        %v580 = vadd.f32 %v338, %v579
        %v581 = vpop.f32.mrf.mxu0
        %v582 = vadd.f32 %v334, %v581
        %v583 = vpop.f32.mrf.mxu0
        %v584 = vadd.f32 %v338, %v583
        %585 = vmatprep.mubr.bf16.mxu0 0
        %586 = vmatmul.mubr.bf16.gmra.mxu0 %v469
        %v587 = vpop.f32.mrf.mxu0
        %v588 = vadd.f32 %v334, %v587
        %v589 = vpop.f32.mrf.mxu0
        %v590 = vadd.f32 %v338, %v589
        %v591 = vpop.f32.mrf.mxu0
        %v592 = vadd.f32 %v334, %v591
        %v593 = vpop.f32.mrf.mxu0
        %v594 = vadd.f32 %v338, %v593
        %595 = vmatprep.mubr.bf16.mxu0 0
        %596 = vmatmul.mubr.bf16.gmra.mxu0 %v472
        %v597 = vpop.f32.mrf.mxu0
        %v598 = vadd.f32 %v334, %v597
        %v599 = vpop.f32.mrf.mxu0
        %v600 = vadd.f32 %v338, %v599
        %v601 = vpop.f32.mrf.mxu0
        %v602 = vadd.f32 %v334, %v601
        %v603 = vpop.f32.mrf.mxu0
        %v604 = vadd.f32 %v338, %v603
        %605 = vmatprep.mubr.bf16.mxu0 0
        %606 = vmatmul.mubr.bf16.gmra.mxu0 %v475
        %v607 = vpop.f32.mrf.mxu0
        %v608 = vadd.f32 %v334, %v607
        %v609 = vpop.f32.mrf.mxu0
        %v610 = vadd.f32 %v338, %v609
        %v611 = vpop.f32.mrf.mxu0
        %v612 = vadd.f32 %v334, %v611
        %v613 = vpop.f32.mrf.mxu0
        %v614 = vadd.f32 %v338, %v613
        %615 = vmatprep.mubr.bf16.mxu0 0
        %616 = vmatmul.mubr.bf16.gmra.mxu0 %v478
        %v617 = vpop.f32.mrf.mxu0
        %v618 = vadd.f32 %v334, %v617
        %v619 = vpop.f32.mrf.mxu0
        %v620 = vadd.f32 %v338, %v619
        %v621 = vpop.f32.mrf.mxu0
        %v622 = vadd.f32 %v334, %v621
        %v623 = vpop.f32.mrf.mxu0
        %v624 = vadd.f32 %v338, %v623
        %625 = vmatprep.mubr.bf16.mxu0 0
        %626 = vmatmul.mubr.bf16.gmra.mxu0 %v481
        %v627 = vpop.f32.mrf.mxu0
        %v628 = vadd.f32 %v334, %v627
        %v629 = vpop.f32.mrf.mxu0
        %v630 = vadd.f32 %v338, %v629
        %v631 = vpop.f32.mrf.mxu0
        %v632 = vadd.f32 %v334, %v631
        %v633 = vpop.f32.mrf.mxu0
        %v634 = vadd.f32 %v338, %v633
        %635 = vdwg.mxu0
        %636 = vmatprep.subr.bf16.mxu0 0
        %637 = vmatpush1.bf16.msra.mxu0 0
        %638 = vmatprep.subr.bf16.mxu0 0
        %639 = vmatpush1.bf16.msra.mxu0 0
        %640 = vmatprep.subr.bf16.mxu0 0
        %641 = vmatpush1.bf16.msra.mxu0 0
        %642 = vmatprep.subr.bf16.mxu0 0
        %643 = vmatpush1.bf16.msra.mxu0 0
        %644 = vmatprep.subr.bf16.mxu0 0
        %645 = vmatpush1.bf16.msra.mxu0 0
        %646 = vmatprep.subr.bf16.mxu0 0
        %647 = vmatpush1.bf16.msra.mxu0 0
        %648 = vmatprep.subr.bf16.mxu0 0
        %649 = vmatpush1.bf16.msra.mxu0 0
        %650 = vmatprep.subr.bf16.mxu0 %v494
        %651 = vmatpush1.bf16.msra.mxu0 %v491
        %652 = vmatprep.subr.bf16.mxu0 0
        %653 = vmatpush2.bf16.msra.mxu0 0
        %654 = vmatprep.subr.bf16.mxu0 0
        %655 = vmatpush2.bf16.msra.mxu0 0
        %656 = vmatprep.subr.bf16.mxu0 0
        %657 = vmatpush2.bf16.msra.mxu0 0
        %658 = vmatprep.subr.bf16.mxu0 0
        %659 = vmatpush2.bf16.msra.mxu0 0
        %660 = vmatprep.subr.bf16.mxu0 0
        %661 = vmatpush2.bf16.msra.mxu0 0
        %662 = vmatprep.subr.bf16.mxu0 0
        %663 = vmatpush2.bf16.msra.mxu0 0
        %664 = vmatprep.subr.bf16.mxu0 0
        %665 = vmatpush2.bf16.msra.mxu0 0
        %666 = vmatprep.subr.bf16.mxu0 0
        %667 = vmatpush2.bf16.msra.mxu0 0
        %668 = vmatprep.mubr.bf16.mxu0 0
        %669 = vmatmul.mubr.bf16.gmra.mxu0 %v460
        %v670 = vpop.f32.mrf.mxu0
        %v671 = vadd.f32 %v342, %v670
        %v672 = vpop.f32.mrf.mxu0
        %v673 = vadd.f32 %v346, %v672
        %v674 = vpop.f32.mrf.mxu0
        %v675 = vadd.f32 %v342, %v674
        %v676 = vpop.f32.mrf.mxu0
        %v677 = vadd.f32 %v346, %v676
        %678 = vmatprep.mubr.bf16.mxu0 0
        %679 = vmatmul.mubr.bf16.gmra.mxu0 %v463
        %v680 = vpop.f32.mrf.mxu0
        %v681 = vadd.f32 %v342, %v680
        %v682 = vpop.f32.mrf.mxu0
        %v683 = vadd.f32 %v346, %v682
        %v684 = vpop.f32.mrf.mxu0
        %v685 = vadd.f32 %v342, %v684
        %v686 = vpop.f32.mrf.mxu0
        %v687 = vadd.f32 %v346, %v686
        %688 = vmatprep.mubr.bf16.mxu0 0
        %689 = vmatmul.mubr.bf16.gmra.mxu0 %v466
        %v690 = vpop.f32.mrf.mxu0
        %v691 = vadd.f32 %v342, %v690
        %v692 = vpop.f32.mrf.mxu0
        %v693 = vadd.f32 %v346, %v692
        %v694 = vpop.f32.mrf.mxu0
        %v695 = vadd.f32 %v342, %v694
        %v696 = vpop.f32.mrf.mxu0
        %v697 = vadd.f32 %v346, %v696
        %698 = vmatprep.mubr.bf16.mxu0 0
        %699 = vmatmul.mubr.bf16.gmra.mxu0 %v469
        %v700 = vpop.f32.mrf.mxu0
        %v701 = vadd.f32 %v342, %v700
        %v702 = vpop.f32.mrf.mxu0
        %v703 = vadd.f32 %v346, %v702
        %v704 = vpop.f32.mrf.mxu0
        %v705 = vadd.f32 %v342, %v704
        %v706 = vpop.f32.mrf.mxu0
        %v707 = vadd.f32 %v346, %v706
        %708 = vmatprep.mubr.bf16.mxu0 0
        %709 = vmatmul.mubr.bf16.gmra.mxu0 %v472
        %v710 = vpop.f32.mrf.mxu0
        %v711 = vadd.f32 %v342, %v710
        %v712 = vpop.f32.mrf.mxu0
        %v713 = vadd.f32 %v346, %v712
        %v714 = vpop.f32.mrf.mxu0
        %v715 = vadd.f32 %v342, %v714
        %v716 = vpop.f32.mrf.mxu0
        %v717 = vadd.f32 %v346, %v716
        %718 = vmatprep.mubr.bf16.mxu0 0
        %719 = vmatmul.mubr.bf16.gmra.mxu0 %v475
        %v720 = vpop.f32.mrf.mxu0
        %v721 = vadd.f32 %v342, %v720
        %v722 = vpop.f32.mrf.mxu0
        %v723 = vadd.f32 %v346, %v722
        %v724 = vpop.f32.mrf.mxu0
        %v725 = vadd.f32 %v342, %v724
        %v726 = vpop.f32.mrf.mxu0
        %v727 = vadd.f32 %v346, %v726
        %728 = vmatprep.mubr.bf16.mxu0 0
        %729 = vmatmul.mubr.bf16.gmra.mxu0 %v478
        %v730 = vpop.f32.mrf.mxu0
        %v731 = vadd.f32 %v342, %v730
        %v732 = vpop.f32.mrf.mxu0
        %v733 = vadd.f32 %v346, %v732
        %v734 = vpop.f32.mrf.mxu0
        %v735 = vadd.f32 %v342, %v734
        %v736 = vpop.f32.mrf.mxu0
        %v737 = vadd.f32 %v346, %v736
        %738 = vmatprep.mubr.bf16.mxu0 0
        %739 = vmatmul.mubr.bf16.gmra.mxu0 %v481
        %v740 = vpop.f32.mrf.mxu0
        %v741 = vadd.f32 %v342, %v740
        %v742 = vpop.f32.mrf.mxu0
        %v743 = vadd.f32 %v346, %v742
        %v744 = vpop.f32.mrf.mxu0
        %v745 = vadd.f32 %v342, %v744
        %v746 = vpop.f32.mrf.mxu0
        %v747 = vadd.f32 %v346, %v746
        %748 = vdwg.mxu0
        %749 = vmatprep.subr.bf16.mxu0 0
        %750 = vmatpush1.bf16.msra.mxu0 0
        %751 = vmatprep.subr.bf16.mxu0 0
        %752 = vmatpush1.bf16.msra.mxu0 0
        %753 = vmatprep.subr.bf16.mxu0 0
        %754 = vmatpush1.bf16.msra.mxu0 0
        %755 = vmatprep.subr.bf16.mxu0 0
        %756 = vmatpush1.bf16.msra.mxu0 0
        %757 = vmatprep.subr.bf16.mxu0 0
        %758 = vmatpush1.bf16.msra.mxu0 0
        %759 = vmatprep.subr.bf16.mxu0 0
        %760 = vmatpush1.bf16.msra.mxu0 0
        %761 = vmatprep.subr.bf16.mxu0 0
        %762 = vmatpush1.bf16.msra.mxu0 0
        %763 = vmatprep.subr.bf16.mxu0 %v500
        %764 = vmatpush1.bf16.msra.mxu0 %v497
        %765 = vmatprep.subr.bf16.mxu0 0
        %766 = vmatpush2.bf16.msra.mxu0 0
        %767 = vmatprep.subr.bf16.mxu0 0
        %768 = vmatpush2.bf16.msra.mxu0 0
        %769 = vmatprep.subr.bf16.mxu0 0
        %770 = vmatpush2.bf16.msra.mxu0 0
        %771 = vmatprep.subr.bf16.mxu0 0
        %772 = vmatpush2.bf16.msra.mxu0 0
        %773 = vmatprep.subr.bf16.mxu0 0
        %774 = vmatpush2.bf16.msra.mxu0 0
        %775 = vmatprep.subr.bf16.mxu0 0
        %776 = vmatpush2.bf16.msra.mxu0 0
        %777 = vmatprep.subr.bf16.mxu0 0
        %778 = vmatpush2.bf16.msra.mxu0 0
        %779 = vmatprep.subr.bf16.mxu0 0
        %780 = vmatpush2.bf16.msra.mxu0 0
        %781 = vmatprep.mubr.bf16.mxu0 0
        %782 = vmatmul.mubr.bf16.gmra.mxu0 %v460
        %v783 = vpop.f32.mrf.mxu0
        %v784 = vadd.f32 %v350, %v783
        %v785 = vpop.f32.mrf.mxu0
        %v786 = vadd.f32 %v354, %v785
        %v787 = vpop.f32.mrf.mxu0
        %v788 = vadd.f32 %v350, %v787
        %v789 = vpop.f32.mrf.mxu0
        %v790 = vadd.f32 %v354, %v789
        %791 = vmatprep.mubr.bf16.mxu0 0
        %792 = vmatmul.mubr.bf16.gmra.mxu0 %v463
        %v793 = vpop.f32.mrf.mxu0
        %v794 = vadd.f32 %v350, %v793
        %v795 = vpop.f32.mrf.mxu0
        %v796 = vadd.f32 %v354, %v795
        %v797 = vpop.f32.mrf.mxu0
        %v798 = vadd.f32 %v350, %v797
        %v799 = vpop.f32.mrf.mxu0
        %v800 = vadd.f32 %v354, %v799
        %801 = vmatprep.mubr.bf16.mxu0 0
        %802 = vmatmul.mubr.bf16.gmra.mxu0 %v466
        %v803 = vpop.f32.mrf.mxu0
        %v804 = vadd.f32 %v350, %v803
        %v805 = vpop.f32.mrf.mxu0
        %v806 = vadd.f32 %v354, %v805
        %v807 = vpop.f32.mrf.mxu0
        %v808 = vadd.f32 %v350, %v807
        %v809 = vpop.f32.mrf.mxu0
        %v810 = vadd.f32 %v354, %v809
        %811 = vmatprep.mubr.bf16.mxu0 0
        %812 = vmatmul.mubr.bf16.gmra.mxu0 %v469
        %v813 = vpop.f32.mrf.mxu0
        %v814 = vadd.f32 %v350, %v813
        %v815 = vpop.f32.mrf.mxu0
        %v816 = vadd.f32 %v354, %v815
        %v817 = vpop.f32.mrf.mxu0
        %v818 = vadd.f32 %v350, %v817
        %v819 = vpop.f32.mrf.mxu0
        %v820 = vadd.f32 %v354, %v819
        %821 = vmatprep.mubr.bf16.mxu0 0
        %822 = vmatmul.mubr.bf16.gmra.mxu0 %v472
        %v823 = vpop.f32.mrf.mxu0
        %v824 = vadd.f32 %v350, %v823
        %v825 = vpop.f32.mrf.mxu0
        %v826 = vadd.f32 %v354, %v825
        %v827 = vpop.f32.mrf.mxu0
        %v828 = vadd.f32 %v350, %v827
        %v829 = vpop.f32.mrf.mxu0
        %v830 = vadd.f32 %v354, %v829
        %831 = vmatprep.mubr.bf16.mxu0 0
        %832 = vmatmul.mubr.bf16.gmra.mxu0 %v475
        %v833 = vpop.f32.mrf.mxu0
        %v834 = vadd.f32 %v350, %v833
        %v835 = vpop.f32.mrf.mxu0
        %v836 = vadd.f32 %v354, %v835
        %v837 = vpop.f32.mrf.mxu0
        %v838 = vadd.f32 %v350, %v837
        %v839 = vpop.f32.mrf.mxu0
        %v840 = vadd.f32 %v354, %v839
        %841 = vmatprep.mubr.bf16.mxu0 0
        %842 = vmatmul.mubr.bf16.gmra.mxu0 %v478
        %v843 = vpop.f32.mrf.mxu0
        %v844 = vadd.f32 %v350, %v843
        %v845 = vpop.f32.mrf.mxu0
        %v846 = vadd.f32 %v354, %v845
        %v847 = vpop.f32.mrf.mxu0
        %v848 = vadd.f32 %v350, %v847
        %v849 = vpop.f32.mrf.mxu0
        %v850 = vadd.f32 %v354, %v849
        %851 = vmatprep.mubr.bf16.mxu0 0
        %852 = vmatmul.mubr.bf16.gmra.mxu0 %v481
        %v853 = vpop.f32.mrf.mxu0
        %v854 = vadd.f32 %v350, %v853
        %v855 = vpop.f32.mrf.mxu0
        %v856 = vadd.f32 %v354, %v855
        %v857 = vpop.f32.mrf.mxu0
        %v858 = vadd.f32 %v350, %v857
        %v859 = vpop.f32.mrf.mxu0
        %v860 = vadd.f32 %v354, %v859
        %861 = vdwg.mxu0
        %862 = vmatprep.subr.bf16.mxu0 0
        %863 = vmatpush1.bf16.msra.mxu0 0
        %864 = vmatprep.subr.bf16.mxu0 0
        %865 = vmatpush1.bf16.msra.mxu0 0
        %866 = vmatprep.subr.bf16.mxu0 0
        %867 = vmatpush1.bf16.msra.mxu0 0
        %868 = vmatprep.subr.bf16.mxu0 0
        %869 = vmatpush1.bf16.msra.mxu0 0
        %870 = vmatprep.subr.bf16.mxu0 0
        %871 = vmatpush1.bf16.msra.mxu0 0
        %872 = vmatprep.subr.bf16.mxu0 0
        %873 = vmatpush1.bf16.msra.mxu0 0
        %874 = vmatprep.subr.bf16.mxu0 0
        %875 = vmatpush1.bf16.msra.mxu0 0
        %876 = vmatprep.subr.bf16.mxu0 %v506
        %877 = vmatpush1.bf16.msra.mxu0 %v503
        %878 = vmatprep.subr.bf16.mxu0 0
        %879 = vmatpush2.bf16.msra.mxu0 0
        %880 = vmatprep.subr.bf16.mxu0 0
        %881 = vmatpush2.bf16.msra.mxu0 0
        %882 = vmatprep.subr.bf16.mxu0 0
        %883 = vmatpush2.bf16.msra.mxu0 0
        %884 = vmatprep.subr.bf16.mxu0 0
        %885 = vmatpush2.bf16.msra.mxu0 0
        %886 = vmatprep.subr.bf16.mxu0 0
        %887 = vmatpush2.bf16.msra.mxu0 0
        %888 = vmatprep.subr.bf16.mxu0 0
        %889 = vmatpush2.bf16.msra.mxu0 0
        %890 = vmatprep.subr.bf16.mxu0 0
        %891 = vmatpush2.bf16.msra.mxu0 0
        %892 = vmatprep.subr.bf16.mxu0 0
        %893 = vmatpush2.bf16.msra.mxu0 0
        %894 = vmatprep.mubr.bf16.mxu0 0
        %895 = vmatmul.mubr.bf16.gmra.mxu0 %v460
        %v896 = vpop.f32.mrf.mxu0
        %v897 = vadd.f32 %v358, %v896
        %v898 = vpop.f32.mrf.mxu0
        %v899 = vadd.f32 %v362, %v898
        %v900 = vpop.f32.mrf.mxu0
        %v901 = vadd.f32 %v358, %v900
        %v902 = vpop.f32.mrf.mxu0
        %v903 = vadd.f32 %v362, %v902
        %904 = vmatprep.mubr.bf16.mxu0 0
        %905 = vmatmul.mubr.bf16.gmra.mxu0 %v463
        %v906 = vpop.f32.mrf.mxu0
        %v907 = vadd.f32 %v358, %v906
        %v908 = vpop.f32.mrf.mxu0
        %v909 = vadd.f32 %v362, %v908
        %v910 = vpop.f32.mrf.mxu0
        %v911 = vadd.f32 %v358, %v910
        %v912 = vpop.f32.mrf.mxu0
        %v913 = vadd.f32 %v362, %v912
        %914 = vmatprep.mubr.bf16.mxu0 0
        %915 = vmatmul.mubr.bf16.gmra.mxu0 %v466
        %v916 = vpop.f32.mrf.mxu0
        %v917 = vadd.f32 %v358, %v916
        %v918 = vpop.f32.mrf.mxu0
        %v919 = vadd.f32 %v362, %v918
        %v920 = vpop.f32.mrf.mxu0
        %v921 = vadd.f32 %v358, %v920
        %v922 = vpop.f32.mrf.mxu0
        %v923 = vadd.f32 %v362, %v922
        %924 = vmatprep.mubr.bf16.mxu0 0
        %925 = vmatmul.mubr.bf16.gmra.mxu0 %v469
        %v926 = vpop.f32.mrf.mxu0
        %v927 = vadd.f32 %v358, %v926
        %v928 = vpop.f32.mrf.mxu0
        %v929 = vadd.f32 %v362, %v928
        %v930 = vpop.f32.mrf.mxu0
        %v931 = vadd.f32 %v358, %v930
        %v932 = vpop.f32.mrf.mxu0
        %v933 = vadd.f32 %v362, %v932
        %934 = vmatprep.mubr.bf16.mxu0 0
        %935 = vmatmul.mubr.bf16.gmra.mxu0 %v472
        %v936 = vpop.f32.mrf.mxu0
        %v937 = vadd.f32 %v358, %v936
        %v938 = vpop.f32.mrf.mxu0
        %v939 = vadd.f32 %v362, %v938
        %v940 = vpop.f32.mrf.mxu0
        %v941 = vadd.f32 %v358, %v940
        %v942 = vpop.f32.mrf.mxu0
        %v943 = vadd.f32 %v362, %v942
        %944 = vmatprep.mubr.bf16.mxu0 0
        %945 = vmatmul.mubr.bf16.gmra.mxu0 %v475
        %v946 = vpop.f32.mrf.mxu0
        %v947 = vadd.f32 %v358, %v946
        %v948 = vpop.f32.mrf.mxu0
        %v949 = vadd.f32 %v362, %v948
        %v950 = vpop.f32.mrf.mxu0
        %v951 = vadd.f32 %v358, %v950
        %v952 = vpop.f32.mrf.mxu0
        %v953 = vadd.f32 %v362, %v952
        %954 = vmatprep.mubr.bf16.mxu0 0
        %955 = vmatmul.mubr.bf16.gmra.mxu0 %v478
        %v956 = vpop.f32.mrf.mxu0
        %v957 = vadd.f32 %v358, %v956
        %v958 = vpop.f32.mrf.mxu0
        %v959 = vadd.f32 %v362, %v958
        %v960 = vpop.f32.mrf.mxu0
        %v961 = vadd.f32 %v358, %v960
        %v962 = vpop.f32.mrf.mxu0
        %v963 = vadd.f32 %v362, %v962
        %964 = vmatprep.mubr.bf16.mxu0 0
        %965 = vmatmul.mubr.bf16.gmra.mxu0 %v481
        %v966 = vpop.f32.mrf.mxu0
        %v967 = vadd.f32 %v358, %v966
        %v968 = vpop.f32.mrf.mxu0
        %v969 = vadd.f32 %v362, %v968
        %v970 = vpop.f32.mrf.mxu0
        %v971 = vadd.f32 %v358, %v970
        %v972 = vpop.f32.mrf.mxu0
        %v973 = vadd.f32 %v362, %v972
        %974 = vdwg.mxu0
        %975 = vmatprep.subr.bf16.mxu0 0
        %976 = vmatpush1.bf16.msra.mxu0 0
        %977 = vmatprep.subr.bf16.mxu0 0
        %978 = vmatpush1.bf16.msra.mxu0 0
        %979 = vmatprep.subr.bf16.mxu0 0
        %980 = vmatpush1.bf16.msra.mxu0 0
        %981 = vmatprep.subr.bf16.mxu0 0
        %982 = vmatpush1.bf16.msra.mxu0 0
        %983 = vmatprep.subr.bf16.mxu0 0
        %984 = vmatpush1.bf16.msra.mxu0 0
        %985 = vmatprep.subr.bf16.mxu0 0
        %986 = vmatpush1.bf16.msra.mxu0 0
        %987 = vmatprep.subr.bf16.mxu0 0
        %988 = vmatpush1.bf16.msra.mxu0 0
        %989 = vmatprep.subr.bf16.mxu0 %v512
        %990 = vmatpush1.bf16.msra.mxu0 %v509
        %991 = vmatprep.subr.bf16.mxu0 0
        %992 = vmatpush2.bf16.msra.mxu0 0
        %993 = vmatprep.subr.bf16.mxu0 0
        %994 = vmatpush2.bf16.msra.mxu0 0
        %995 = vmatprep.subr.bf16.mxu0 0
        %996 = vmatpush2.bf16.msra.mxu0 0
        %997 = vmatprep.subr.bf16.mxu0 0
        %998 = vmatpush2.bf16.msra.mxu0 0
        %999 = vmatprep.subr.bf16.mxu0 0
        %1000 = vmatpush2.bf16.msra.mxu0 0
        %1001 = vmatprep.subr.bf16.mxu0 0
        %1002 = vmatpush2.bf16.msra.mxu0 0
        %1003 = vmatprep.subr.bf16.mxu0 0
        %1004 = vmatpush2.bf16.msra.mxu0 0
        %1005 = vmatprep.subr.bf16.mxu0 0
        %1006 = vmatpush2.bf16.msra.mxu0 0
        %1007 = vmatprep.mubr.bf16.mxu0 0
        %1008 = vmatmul.mubr.bf16.gmra.mxu0 %v460
        %v1009 = vpop.f32.mrf.mxu0
        %v1010 = vadd.f32 %v366, %v1009
        %v1011 = vpop.f32.mrf.mxu0
        %v1012 = vadd.f32 %v370, %v1011
        %v1013 = vpop.f32.mrf.mxu0
        %v1014 = vadd.f32 %v366, %v1013
        %v1015 = vpop.f32.mrf.mxu0
        %v1016 = vadd.f32 %v370, %v1015
        %1017 = vmatprep.mubr.bf16.mxu0 0
        %1018 = vmatmul.mubr.bf16.gmra.mxu0 %v463
        %v1019 = vpop.f32.mrf.mxu0
        %v1020 = vadd.f32 %v366, %v1019
        %v1021 = vpop.f32.mrf.mxu0
        %v1022 = vadd.f32 %v370, %v1021
        %v1023 = vpop.f32.mrf.mxu0
        %v1024 = vadd.f32 %v366, %v1023
        %v1025 = vpop.f32.mrf.mxu0
        %v1026 = vadd.f32 %v370, %v1025
        %1027 = vmatprep.mubr.bf16.mxu0 0
        %1028 = vmatmul.mubr.bf16.gmra.mxu0 %v466
        %v1029 = vpop.f32.mrf.mxu0
        %v1030 = vadd.f32 %v366, %v1029
        %v1031 = vpop.f32.mrf.mxu0
        %v1032 = vadd.f32 %v370, %v1031
        %v1033 = vpop.f32.mrf.mxu0
        %v1034 = vadd.f32 %v366, %v1033
        %v1035 = vpop.f32.mrf.mxu0
        %v1036 = vadd.f32 %v370, %v1035
        %1037 = vmatprep.mubr.bf16.mxu0 0
        %1038 = vmatmul.mubr.bf16.gmra.mxu0 %v469
        %v1039 = vpop.f32.mrf.mxu0
        %v1040 = vadd.f32 %v366, %v1039
        %v1041 = vpop.f32.mrf.mxu0
        %v1042 = vadd.f32 %v370, %v1041
        %v1043 = vpop.f32.mrf.mxu0
        %v1044 = vadd.f32 %v366, %v1043
        %v1045 = vpop.f32.mrf.mxu0
        %v1046 = vadd.f32 %v370, %v1045
        %1047 = vmatprep.mubr.bf16.mxu0 0
        %1048 = vmatmul.mubr.bf16.gmra.mxu0 %v472
        %v1049 = vpop.f32.mrf.mxu0
        %v1050 = vadd.f32 %v366, %v1049
        %v1051 = vpop.f32.mrf.mxu0
        %v1052 = vadd.f32 %v370, %v1051
        %v1053 = vpop.f32.mrf.mxu0
        %v1054 = vadd.f32 %v366, %v1053
        %v1055 = vpop.f32.mrf.mxu0
        %v1056 = vadd.f32 %v370, %v1055
        %1057 = vmatprep.mubr.bf16.mxu0 0
        %1058 = vmatmul.mubr.bf16.gmra.mxu0 %v475
        %v1059 = vpop.f32.mrf.mxu0
        %v1060 = vadd.f32 %v366, %v1059
        %v1061 = vpop.f32.mrf.mxu0
        %v1062 = vadd.f32 %v370, %v1061
        %v1063 = vpop.f32.mrf.mxu0
        %v1064 = vadd.f32 %v366, %v1063
        %v1065 = vpop.f32.mrf.mxu0
        %v1066 = vadd.f32 %v370, %v1065
        %1067 = vmatprep.mubr.bf16.mxu0 0
        %1068 = vmatmul.mubr.bf16.gmra.mxu0 %v478
        %v1069 = vpop.f32.mrf.mxu0
        %v1070 = vadd.f32 %v366, %v1069
        %v1071 = vpop.f32.mrf.mxu0
        %v1072 = vadd.f32 %v370, %v1071
        %v1073 = vpop.f32.mrf.mxu0
        %v1074 = vadd.f32 %v366, %v1073
        %v1075 = vpop.f32.mrf.mxu0
        %v1076 = vadd.f32 %v370, %v1075
        %1077 = vmatprep.mubr.bf16.mxu0 0
        %1078 = vmatmul.mubr.bf16.gmra.mxu0 %v481
        %v1079 = vpop.f32.mrf.mxu0
        %v1080 = vadd.f32 %v366, %v1079
        %v1081 = vpop.f32.mrf.mxu0
        %v1082 = vadd.f32 %v370, %v1081
        %v1083 = vpop.f32.mrf.mxu0
        %v1084 = vadd.f32 %v366, %v1083
        %v1085 = vpop.f32.mrf.mxu0
        %v1086 = vadd.f32 %v370, %v1085
        %1087 = vdwg.mxu0
        %1088 = vmatprep.subr.bf16.mxu0 0
        %1089 = vmatpush1.bf16.msra.mxu0 0
        %1090 = vmatprep.subr.bf16.mxu0 0
        %1091 = vmatpush1.bf16.msra.mxu0 0
        %1092 = vmatprep.subr.bf16.mxu0 0
        %1093 = vmatpush1.bf16.msra.mxu0 0
        %1094 = vmatprep.subr.bf16.mxu0 0
        %1095 = vmatpush1.bf16.msra.mxu0 0
        %1096 = vmatprep.subr.bf16.mxu0 0
        %1097 = vmatpush1.bf16.msra.mxu0 0
        %1098 = vmatprep.subr.bf16.mxu0 0
        %1099 = vmatpush1.bf16.msra.mxu0 0
        %1100 = vmatprep.subr.bf16.mxu0 0
        %1101 = vmatpush1.bf16.msra.mxu0 0
        %1102 = vmatprep.subr.bf16.mxu0 %v518
        %1103 = vmatpush1.bf16.msra.mxu0 %v515
        %1104 = vmatprep.subr.bf16.mxu0 0
        %1105 = vmatpush2.bf16.msra.mxu0 0
        %1106 = vmatprep.subr.bf16.mxu0 0
        %1107 = vmatpush2.bf16.msra.mxu0 0
        %1108 = vmatprep.subr.bf16.mxu0 0
        %1109 = vmatpush2.bf16.msra.mxu0 0
        %1110 = vmatprep.subr.bf16.mxu0 0
        %1111 = vmatpush2.bf16.msra.mxu0 0
        %1112 = vmatprep.subr.bf16.mxu0 0
        %1113 = vmatpush2.bf16.msra.mxu0 0
        %1114 = vmatprep.subr.bf16.mxu0 0
        %1115 = vmatpush2.bf16.msra.mxu0 0
        %1116 = vmatprep.subr.bf16.mxu0 0
        %1117 = vmatpush2.bf16.msra.mxu0 0
        %1118 = vmatprep.subr.bf16.mxu0 0
        %1119 = vmatpush2.bf16.msra.mxu0 0
        %1120 = vmatprep.mubr.bf16.mxu0 0
        %1121 = vmatmul.mubr.bf16.gmra.mxu0 %v460
        %v1122 = vpop.f32.mrf.mxu0
        %v1123 = vadd.f32 %v374, %v1122
        %v1124 = vpop.f32.mrf.mxu0
        %v1125 = vadd.f32 %v378, %v1124
        %v1126 = vpop.f32.mrf.mxu0
        %v1127 = vadd.f32 %v374, %v1126
        %v1128 = vpop.f32.mrf.mxu0
        %v1129 = vadd.f32 %v378, %v1128
        %1130 = vmatprep.mubr.bf16.mxu0 0
        %1131 = vmatmul.mubr.bf16.gmra.mxu0 %v463
        %v1132 = vpop.f32.mrf.mxu0
        %v1133 = vadd.f32 %v374, %v1132
        %v1134 = vpop.f32.mrf.mxu0
        %v1135 = vadd.f32 %v378, %v1134
        %v1136 = vpop.f32.mrf.mxu0
        %v1137 = vadd.f32 %v374, %v1136
        %v1138 = vpop.f32.mrf.mxu0
        %v1139 = vadd.f32 %v378, %v1138
        %1140 = vmatprep.mubr.bf16.mxu0 0
        %1141 = vmatmul.mubr.bf16.gmra.mxu0 %v466
        %v1142 = vpop.f32.mrf.mxu0
        %v1143 = vadd.f32 %v374, %v1142
        %v1144 = vpop.f32.mrf.mxu0
        %v1145 = vadd.f32 %v378, %v1144
        %v1146 = vpop.f32.mrf.mxu0
        %v1147 = vadd.f32 %v374, %v1146
        %v1148 = vpop.f32.mrf.mxu0
        %v1149 = vadd.f32 %v378, %v1148
        %1150 = vmatprep.mubr.bf16.mxu0 0
        %1151 = vmatmul.mubr.bf16.gmra.mxu0 %v469
        %v1152 = vpop.f32.mrf.mxu0
        %v1153 = vadd.f32 %v374, %v1152
        %v1154 = vpop.f32.mrf.mxu0
        %v1155 = vadd.f32 %v378, %v1154
        %v1156 = vpop.f32.mrf.mxu0
        %v1157 = vadd.f32 %v374, %v1156
        %v1158 = vpop.f32.mrf.mxu0
        %v1159 = vadd.f32 %v378, %v1158
        %1160 = vmatprep.mubr.bf16.mxu0 0
        %1161 = vmatmul.mubr.bf16.gmra.mxu0 %v472
        %v1162 = vpop.f32.mrf.mxu0
        %v1163 = vadd.f32 %v374, %v1162
        %v1164 = vpop.f32.mrf.mxu0
        %v1165 = vadd.f32 %v378, %v1164
        %v1166 = vpop.f32.mrf.mxu0
        %v1167 = vadd.f32 %v374, %v1166
        %v1168 = vpop.f32.mrf.mxu0
        %v1169 = vadd.f32 %v378, %v1168
        %1170 = vmatprep.mubr.bf16.mxu0 0
        %1171 = vmatmul.mubr.bf16.gmra.mxu0 %v475
        %v1172 = vpop.f32.mrf.mxu0
        %v1173 = vadd.f32 %v374, %v1172
        %v1174 = vpop.f32.mrf.mxu0
        %v1175 = vadd.f32 %v378, %v1174
        %v1176 = vpop.f32.mrf.mxu0
        %v1177 = vadd.f32 %v374, %v1176
        %v1178 = vpop.f32.mrf.mxu0
        %v1179 = vadd.f32 %v378, %v1178
        %1180 = vmatprep.mubr.bf16.mxu0 0
        %1181 = vmatmul.mubr.bf16.gmra.mxu0 %v478
        %v1182 = vpop.f32.mrf.mxu0
        %v1183 = vadd.f32 %v374, %v1182
        %v1184 = vpop.f32.mrf.mxu0
        %v1185 = vadd.f32 %v378, %v1184
        %v1186 = vpop.f32.mrf.mxu0
        %v1187 = vadd.f32 %v374, %v1186
        %v1188 = vpop.f32.mrf.mxu0
        %v1189 = vadd.f32 %v378, %v1188
        %1190 = vmatprep.mubr.bf16.mxu0 0
        %1191 = vmatmul.mubr.bf16.gmra.mxu0 %v481
        %v1192 = vpop.f32.mrf.mxu0
        %v1193 = vadd.f32 %v374, %v1192
        %v1194 = vpop.f32.mrf.mxu0
        %v1195 = vadd.f32 %v378, %v1194
        %v1196 = vpop.f32.mrf.mxu0
        %v1197 = vadd.f32 %v374, %v1196
        %v1198 = vpop.f32.mrf.mxu0
        %v1199 = vadd.f32 %v378, %v1198
        %1200 = vdwg.mxu0
        %1201 = vmatprep.subr.bf16.mxu0 0
        %1202 = vmatpush1.bf16.msra.mxu0 0
        %1203 = vmatprep.subr.bf16.mxu0 0
        %1204 = vmatpush1.bf16.msra.mxu0 0
        %1205 = vmatprep.subr.bf16.mxu0 0
        %1206 = vmatpush1.bf16.msra.mxu0 0
        %1207 = vmatprep.subr.bf16.mxu0 0
        %1208 = vmatpush1.bf16.msra.mxu0 0
        %1209 = vmatprep.subr.bf16.mxu0 0
        %1210 = vmatpush1.bf16.msra.mxu0 0
        %1211 = vmatprep.subr.bf16.mxu0 0
        %1212 = vmatpush1.bf16.msra.mxu0 0
        %1213 = vmatprep.subr.bf16.mxu0 0
        %1214 = vmatpush1.bf16.msra.mxu0 0
        %1215 = vmatprep.subr.bf16.mxu0 0
        %1216 = vmatpush1.bf16.msra.mxu0 %v521
        %1217 = vmatprep.subr.bf16.mxu0 0
        %1218 = vmatpush2.bf16.msra.mxu0 0
        %1219 = vmatprep.subr.bf16.mxu0 0
        %1220 = vmatpush2.bf16.msra.mxu0 0
        %1221 = vmatprep.subr.bf16.mxu0 0
        %1222 = vmatpush2.bf16.msra.mxu0 0
        %1223 = vmatprep.subr.bf16.mxu0 0
        %1224 = vmatpush2.bf16.msra.mxu0 0
        %1225 = vmatprep.subr.bf16.mxu0 0
        %1226 = vmatpush2.bf16.msra.mxu0 0
        %1227 = vmatprep.subr.bf16.mxu0 0
        %1228 = vmatpush2.bf16.msra.mxu0 0
        %1229 = vmatprep.subr.bf16.mxu0 0
        %1230 = vmatpush2.bf16.msra.mxu0 0
        %1231 = vmatprep.subr.bf16.mxu0 0
        %1232 = vmatpush2.bf16.msra.mxu0 0
        %1233 = vmatprep.mubr.bf16.mxu0 0
        %1234 = vmatmul.mubr.bf16.gmra.mxu0 %v460
        %v1235 = vpop.f32.mrf.mxu0
        %v1236 = vadd.f32 %v382, %v1235
        %v1237 = vpop.f32.mrf.mxu0
        %v1238 = vpop.f32.mrf.mxu0
        %v1239 = vadd.f32 %v382, %v1238
        %v1240 = vpop.f32.mrf.mxu0
        %1241 = vmatprep.mubr.bf16.mxu0 0
        %1242 = vmatmul.mubr.bf16.gmra.mxu0 %v463
        %v1243 = vpop.f32.mrf.mxu0
        %v1244 = vadd.f32 %v382, %v1243
        %v1245 = vpop.f32.mrf.mxu0
        %v1246 = vpop.f32.mrf.mxu0
        %v1247 = vadd.f32 %v382, %v1246
        %v1248 = vpop.f32.mrf.mxu0
        %1249 = vmatprep.mubr.bf16.mxu0 0
        %1250 = vmatmul.mubr.bf16.gmra.mxu0 %v466
        %v1251 = vpop.f32.mrf.mxu0
        %v1252 = vadd.f32 %v382, %v1251
        %v1253 = vpop.f32.mrf.mxu0
        %v1254 = vpop.f32.mrf.mxu0
        %v1255 = vadd.f32 %v382, %v1254
        %v1256 = vpop.f32.mrf.mxu0
        %1257 = vmatprep.mubr.bf16.mxu0 0
        %1258 = vmatmul.mubr.bf16.gmra.mxu0 %v469
        %v1259 = vpop.f32.mrf.mxu0
        %v1260 = vadd.f32 %v382, %v1259
        %v1261 = vpop.f32.mrf.mxu0
        %v1262 = vpop.f32.mrf.mxu0
        %v1263 = vadd.f32 %v382, %v1262
        %v1264 = vpop.f32.mrf.mxu0
        %1265 = vmatprep.mubr.bf16.mxu0 0
        %1266 = vmatmul.mubr.bf16.gmra.mxu0 %v472
        %v1267 = vpop.f32.mrf.mxu0
        %v1268 = vadd.f32 %v382, %v1267
        %v1269 = vpop.f32.mrf.mxu0
        %v1270 = vpop.f32.mrf.mxu0
        %v1271 = vadd.f32 %v382, %v1270
        %v1272 = vpop.f32.mrf.mxu0
        %1273 = vmatprep.mubr.bf16.mxu0 0
        %1274 = vmatmul.mubr.bf16.gmra.mxu0 %v475
        %v1275 = vpop.f32.mrf.mxu0
        %v1276 = vadd.f32 %v382, %v1275
        %v1277 = vpop.f32.mrf.mxu0
        %v1278 = vpop.f32.mrf.mxu0
        %v1279 = vadd.f32 %v382, %v1278
        %v1280 = vpop.f32.mrf.mxu0
        %1281 = vmatprep.mubr.bf16.mxu0 0
        %1282 = vmatmul.mubr.bf16.gmra.mxu0 %v478
        %v1283 = vpop.f32.mrf.mxu0
        %v1284 = vadd.f32 %v382, %v1283
        %v1285 = vpop.f32.mrf.mxu0
        %v1286 = vpop.f32.mrf.mxu0
        %v1287 = vadd.f32 %v382, %v1286
        %v1288 = vpop.f32.mrf.mxu0
        %1289 = vmatprep.mubr.bf16.mxu0 0
        %1290 = vmatmul.mubr.bf16.gmra.mxu0 %v481
        %v1291 = vpop.f32.mrf.mxu0
        %v1292 = vadd.f32 %v382, %v1291
        %v1293 = vpop.f32.mrf.mxu0
        %v1294 = vpop.f32.mrf.mxu0
        %v1295 = vadd.f32 %v382, %v1294
        %v1296 = vpop.f32.mrf.mxu0
        %1297 = vdwg.mxu0
        %v1298 = vpack.c.bf16 %v562, %v558
        %v1299 = vpack.c.bf16 %v572, %v568
        %v1300 = vpack.c.bf16 %v582, %v578
        %v1301 = vpack.c.bf16 %v592, %v588
        %v1302 = vpack.c.bf16 %v602, %v598
        %v1303 = vpack.c.bf16 %v612, %v608
        %v1304 = vpack.c.bf16 %v622, %v618
        %v1305 = vpack.c.bf16 %v632, %v628
        %v1306 = vld [vmem:[#allocation3] sm:$0xff]
        %v1307 = vld [vmem:[#allocation3 + $0x8] sm:$0xf]
        %v1308 = vld [vmem:[#allocation3 + $0xc] sm:$0xff]
        %v1309 = vld [vmem:[#allocation3 + $0x14] sm:$0xf]
        %v1310 = vld [vmem:[#allocation3 + $0x18] sm:$0xff]
        %v1311 = vld [vmem:[#allocation3 + $0x20] sm:$0xf]
        %v1312 = vld [vmem:[#allocation3 + $0x24] sm:$0xff]
        %v1313 = vld [vmem:[#allocation3 + $0x2c] sm:$0xf]
        %v1314 = vld [vmem:[#allocation3 + $0x30] sm:$0xff]
        %v1315 = vld [vmem:[#allocation3 + $0x38] sm:$0xf]
        %v1316 = vld [vmem:[#allocation3 + $0x3c] sm:$0xff]
        %v1317 = vld [vmem:[#allocation3 + $0x44] sm:$0xf]
        %v1318 = vld [vmem:[#allocation3 + $0x48] sm:$0xff]
        %v1319 = vld [vmem:[#allocation3 + $0x50] sm:$0xf]
        %v1320 = vld [vmem:[#allocation3 + $0x54] sm:$0xff]
        %v1321 = vld [vmem:[#allocation3 + $0x5c] sm:$0xf]
        %v1322 = vld [vmem:[#allocation3 + $0x60] sm:$0xff]
        %v1323 = vld [vmem:[#allocation3 + $0x68] sm:$0xf]
        %v1324 = vld [vmem:[#allocation3 + $0x6c] sm:$0xff]
        %v1325 = vld [vmem:[#allocation3 + $0x74] sm:$0xf]
        %v1326 = vld [vmem:[#allocation3 + $0x78] sm:$0xff]
        %v1327 = vld [vmem:[#allocation3 + $0x80] sm:$0xf]
        %v1328 = vld [vmem:[#allocation3 + $0x84] sm:$0xff]
        %v1329 = vld [vmem:[#allocation3 + $0x8c] sm:$0xf]
        %v1330 = vld [vmem:[#allocation3 + $0x90] sm:$0xff]
        %v1331 = vld [vmem:[#allocation3 + $0x98] sm:$0xf]
        %v1332 = vld [vmem:[#allocation3 + $0x9c] sm:$0xff]
        %v1333 = vld [vmem:[#allocation3 + $0xa4] sm:$0xf]
        %v1334 = vld [vmem:[#allocation3 + $0xa8] sm:$0xff]
        %v1335 = vld [vmem:[#allocation3 + $0xb0] sm:$0xf]
        %v1336 = vld [vmem:[#allocation3 + $0xb4] sm:$0xff]
        %v1337 = vld [vmem:[#allocation3 + $0xbc] sm:$0xf]
        %v1370 = vunpack.c.l.b16 %v1306
        %v1371 = vunpack.c.h.b16 %v1306
        %v1372 = vunpack.c.l.b16 %v1307
        %v1373 = vunpack.c.l.b16 %v1308
        %v1374 = vunpack.c.h.b16 %v1308
        %v1375 = vunpack.c.l.b16 %v1309
        %v1376 = vunpack.c.l.b16 %v1310
        %v1377 = vunpack.c.h.b16 %v1310
        %v1378 = vunpack.c.l.b16 %v1311
        %v1379 = vunpack.c.l.b16 %v1312
        %v1380 = vunpack.c.h.b16 %v1312
        %v1381 = vunpack.c.l.b16 %v1313
        %v1382 = vunpack.c.l.b16 %v1314
        %v1383 = vunpack.c.h.b16 %v1314
        %v1384 = vunpack.c.l.b16 %v1315
        %v1385 = vunpack.c.l.b16 %v1316
        %v1386 = vunpack.c.h.b16 %v1316
        %v1387 = vunpack.c.l.b16 %v1317
        %v1388 = vunpack.c.l.b16 %v1318
        %v1389 = vunpack.c.h.b16 %v1318
        %v1390 = vunpack.c.l.b16 %v1319
        %v1391 = vunpack.c.l.b16 %v1320
        %v1392 = vunpack.c.h.b16 %v1320
        %v1393 = vunpack.c.l.b16 %v1321
        %v1394 = vunpack.c.l.b16 %v1322
        %v1395 = vunpack.c.h.b16 %v1322
        %v1396 = vunpack.c.l.b16 %v1323
        %v1397 = vunpack.c.l.b16 %v1324
        %v1398 = vunpack.c.h.b16 %v1324
        %v1399 = vunpack.c.l.b16 %v1325
        %v1400 = vunpack.c.l.b16 %v1326
        %v1401 = vunpack.c.h.b16 %v1326
        %v1402 = vunpack.c.l.b16 %v1327
        %v1403 = vunpack.c.l.b16 %v1328
        %v1404 = vunpack.c.h.b16 %v1328
        %v1405 = vunpack.c.l.b16 %v1329
        %v1406 = vunpack.c.l.b16 %v1330
        %v1407 = vunpack.c.h.b16 %v1330
        %v1408 = vunpack.c.l.b16 %v1331
        %v1409 = vunpack.c.l.b16 %v1332
        %v1410 = vunpack.c.h.b16 %v1332
        %v1411 = vunpack.c.l.b16 %v1333
        %v1412 = vunpack.c.l.b16 %v1334
        %v1413 = vunpack.c.h.b16 %v1334
        %v1414 = vunpack.c.l.b16 %v1335
        %v1415 = vunpack.c.l.b16 %v1336
        %v1416 = vunpack.c.h.b16 %v1336
        %v1417 = vunpack.c.l.b16 %v1337
        %v1418 = vpack.c.b16 %v1373, %v1370
        %v1419 = vpack.c.b16 %v1374, %v1371
        %v1420 = vpack.c.b16 %v1375, %v1372
        %v1421 = vpack.c.b16 %v1379, %v1376
        %v1422 = vpack.c.b16 %v1380, %v1377
        %v1423 = vpack.c.b16 %v1381, %v1378
        %v1424 = vpack.c.b16 %v1385, %v1382
        %v1425 = vpack.c.b16 %v1386, %v1383
        %v1426 = vpack.c.b16 %v1387, %v1384
        %v1427 = vpack.c.b16 %v1391, %v1388
        %v1428 = vpack.c.b16 %v1392, %v1389
        %v1429 = vpack.c.b16 %v1393, %v1390
        %v1430 = vpack.c.b16 %v1397, %v1394
        %v1431 = vpack.c.b16 %v1398, %v1395
        %v1432 = vpack.c.b16 %v1399, %v1396
        %v1433 = vpack.c.b16 %v1403, %v1400
        %v1434 = vpack.c.b16 %v1404, %v1401
        %v1435 = vpack.c.b16 %v1405, %v1402
        %v1436 = vpack.c.b16 %v1409, %v1406
        %v1437 = vpack.c.b16 %v1410, %v1407
        %v1438 = vpack.c.b16 %v1411, %v1408
        %v1439 = vpack.c.b16 %v1415, %v1412
        %v1440 = vpack.c.b16 %v1416, %v1413
        %v1441 = vpack.c.b16 %v1417, %v1414
        %1466 = vmatprep.subr.bf16.mxu0 %v1440
        %1467 = vmatpush1.bf16.msra.mxu0 %v1439
        %1468 = vmatprep.subr.bf16.mxu0 %v1437
        %1469 = vmatpush1.bf16.msra.mxu0 %v1436
        %1470 = vmatprep.subr.bf16.mxu0 %v1434
        %1471 = vmatpush1.bf16.msra.mxu0 %v1433
        %1472 = vmatprep.subr.bf16.mxu0 %v1431
        %1473 = vmatpush1.bf16.msra.mxu0 %v1430
        %1474 = vmatprep.subr.bf16.mxu0 %v1428
        %1475 = vmatpush1.bf16.msra.mxu0 %v1427
        %1476 = vmatprep.subr.bf16.mxu0 %v1425
        %1477 = vmatpush1.bf16.msra.mxu0 %v1424
        %1478 = vmatprep.subr.bf16.mxu0 %v1422
        %1479 = vmatpush1.bf16.msra.mxu0 %v1421
        %1480 = vmatprep.subr.bf16.mxu0 %v1419
        %1481 = vmatpush1.bf16.msra.mxu0 %v1418
        %1482 = vmatprep.subr.bf16.mxu0 0
        %1483 = vmatpush2.bf16.msra.mxu0 0
        %1484 = vmatprep.subr.bf16.mxu0 0
        %1485 = vmatpush2.bf16.msra.mxu0 0
        %1486 = vmatprep.subr.bf16.mxu0 0
        %1487 = vmatpush2.bf16.msra.mxu0 0
        %1488 = vmatprep.subr.bf16.mxu0 0
        %1489 = vmatpush2.bf16.msra.mxu0 0
        %1490 = vmatprep.subr.bf16.mxu0 0
        %1491 = vmatpush2.bf16.msra.mxu0 0
        %1492 = vmatprep.subr.bf16.mxu0 0
        %1493 = vmatpush2.bf16.msra.mxu0 0
        %1494 = vmatprep.subr.bf16.mxu0 0
        %1495 = vmatpush2.bf16.msra.mxu0 0
        %1496 = vmatprep.subr.bf16.mxu0 0
        %1497 = vmatpush2.bf16.msra.mxu0 0
        %1498 = vmatprep.mubr.bf16.mxu0 0
        %1499 = vmatmul.mubr.bf16.gmra.mxu0 %v1298
        %v1500 = vpop.f32.mrf.mxu0
        %v1501 = vadd.f32 0.0, %v1500
        %v1502 = vpop.f32.mrf.mxu0
        %v1503 = vadd.f32 0.0, %v1502
        %v1504 = vpop.f32.mrf.mxu0
        %v1505 = vadd.f32 0.0, %v1504
        %v1506 = vpop.f32.mrf.mxu0
        %v1507 = vadd.f32 0.0, %v1506
        %1508 = vmatprep.mubr.bf16.mxu0 0
        %1509 = vmatmul.mubr.bf16.gmra.mxu0 %v1299
        %v1510 = vpop.f32.mrf.mxu0
        %v1511 = vadd.f32 0.0, %v1510
        %v1512 = vpop.f32.mrf.mxu0
        %v1513 = vadd.f32 0.0, %v1512
        %v1514 = vpop.f32.mrf.mxu0
        %v1515 = vadd.f32 0.0, %v1514
        %v1516 = vpop.f32.mrf.mxu0
        %v1517 = vadd.f32 0.0, %v1516
        %1518 = vmatprep.mubr.bf16.mxu0 0
        %1519 = vmatmul.mubr.bf16.gmra.mxu0 %v1300
        %v1520 = vpop.f32.mrf.mxu0
        %v1521 = vadd.f32 0.0, %v1520
        %v1522 = vpop.f32.mrf.mxu0
        %v1523 = vadd.f32 0.0, %v1522
        %v1524 = vpop.f32.mrf.mxu0
        %v1525 = vadd.f32 0.0, %v1524
        %v1526 = vpop.f32.mrf.mxu0
        %v1527 = vadd.f32 0.0, %v1526
        %1528 = vmatprep.mubr.bf16.mxu0 0
        %1529 = vmatmul.mubr.bf16.gmra.mxu0 %v1301
        %v1530 = vpop.f32.mrf.mxu0
        %v1531 = vadd.f32 0.0, %v1530
        %v1532 = vpop.f32.mrf.mxu0
        %v1533 = vadd.f32 0.0, %v1532
        %v1534 = vpop.f32.mrf.mxu0
        %v1535 = vadd.f32 0.0, %v1534
        %v1536 = vpop.f32.mrf.mxu0
        %v1537 = vadd.f32 0.0, %v1536
        %1538 = vmatprep.mubr.bf16.mxu0 0
        %1539 = vmatmul.mubr.bf16.gmra.mxu0 %v1302
        %v1540 = vpop.f32.mrf.mxu0
        %v1541 = vadd.f32 0.0, %v1540
        %v1542 = vpop.f32.mrf.mxu0
        %v1543 = vadd.f32 0.0, %v1542
        %v1544 = vpop.f32.mrf.mxu0
        %v1545 = vadd.f32 0.0, %v1544
        %v1546 = vpop.f32.mrf.mxu0
        %v1547 = vadd.f32 0.0, %v1546
        %1548 = vmatprep.mubr.bf16.mxu0 0
        %1549 = vmatmul.mubr.bf16.gmra.mxu0 %v1303
        %v1550 = vpop.f32.mrf.mxu0
        %v1551 = vadd.f32 0.0, %v1550
        %v1552 = vpop.f32.mrf.mxu0
        %v1553 = vadd.f32 0.0, %v1552
        %v1554 = vpop.f32.mrf.mxu0
        %v1555 = vadd.f32 0.0, %v1554
        %v1556 = vpop.f32.mrf.mxu0
        %v1557 = vadd.f32 0.0, %v1556
        %1558 = vmatprep.mubr.bf16.mxu0 0
        %1559 = vmatmul.mubr.bf16.gmra.mxu0 %v1304
        %v1560 = vpop.f32.mrf.mxu0
        %v1561 = vadd.f32 0.0, %v1560
        %v1562 = vpop.f32.mrf.mxu0
        %v1563 = vadd.f32 0.0, %v1562
        %v1564 = vpop.f32.mrf.mxu0
        %v1565 = vadd.f32 0.0, %v1564
        %v1566 = vpop.f32.mrf.mxu0
        %v1567 = vadd.f32 0.0, %v1566
        %1568 = vmatprep.mubr.bf16.mxu0 0
        %1569 = vmatmul.mubr.bf16.gmra.mxu0 %v1305
        %v1570 = vpop.f32.mrf.mxu0
        %v1571 = vadd.f32 0.0, %v1570
        %v1572 = vpop.f32.mrf.mxu0
        %v1573 = vadd.f32 0.0, %v1572
        %v1574 = vpop.f32.mrf.mxu0
        %v1575 = vadd.f32 0.0, %v1574
        %v1576 = vpop.f32.mrf.mxu0
        %v1577 = vadd.f32 0.0, %v1576
        %1578 = vdwg.mxu0
        %1579 = vmatprep.subr.bf16.mxu0 0
        %1580 = vmatpush1.bf16.msra.mxu0 %v1441
        %1581 = vmatprep.subr.bf16.mxu0 0
        %1582 = vmatpush1.bf16.msra.mxu0 %v1438
        %1583 = vmatprep.subr.bf16.mxu0 0
        %1584 = vmatpush1.bf16.msra.mxu0 %v1435
        %1585 = vmatprep.subr.bf16.mxu0 0
        %1586 = vmatpush1.bf16.msra.mxu0 %v1432
        %1587 = vmatprep.subr.bf16.mxu0 0
        %1588 = vmatpush1.bf16.msra.mxu0 %v1429
        %1589 = vmatprep.subr.bf16.mxu0 0
        %1590 = vmatpush1.bf16.msra.mxu0 %v1426
        %1591 = vmatprep.subr.bf16.mxu0 0
        %1592 = vmatpush1.bf16.msra.mxu0 %v1423
        %1593 = vmatprep.subr.bf16.mxu0 0
        %1594 = vmatpush1.bf16.msra.mxu0 %v1420
        %1595 = vmatprep.subr.bf16.mxu0 0
        %1596 = vmatpush2.bf16.msra.mxu0 0
        %1597 = vmatprep.subr.bf16.mxu0 0
        %1598 = vmatpush2.bf16.msra.mxu0 0
        %1599 = vmatprep.subr.bf16.mxu0 0
        %1600 = vmatpush2.bf16.msra.mxu0 0
        %1601 = vmatprep.subr.bf16.mxu0 0
        %1602 = vmatpush2.bf16.msra.mxu0 0
        %1603 = vmatprep.subr.bf16.mxu0 0
        %1604 = vmatpush2.bf16.msra.mxu0 0
        %1605 = vmatprep.subr.bf16.mxu0 0
        %1606 = vmatpush2.bf16.msra.mxu0 0
        %1607 = vmatprep.subr.bf16.mxu0 0
        %1608 = vmatpush2.bf16.msra.mxu0 0
        %1609 = vmatprep.subr.bf16.mxu0 0
        %1610 = vmatpush2.bf16.msra.mxu0 0
        %1611 = vmatprep.mubr.bf16.mxu0 0
        %1612 = vmatmul.mubr.bf16.gmra.mxu0 %v1298
        %v1613 = vpop.f32.mrf.mxu0
        %v1614 = vadd.f32 0.0, %v1613
        %v1615 = vpop.f32.mrf.mxu0
        %v1616 = vpop.f32.mrf.mxu0
        %v1617 = vadd.f32 0.0, %v1616
        %v1618 = vpop.f32.mrf.mxu0
        %1619 = vmatprep.mubr.bf16.mxu0 0
        %1620 = vmatmul.mubr.bf16.gmra.mxu0 %v1299
        %v1621 = vpop.f32.mrf.mxu0
        %v1622 = vadd.f32 0.0, %v1621
        %v1623 = vpop.f32.mrf.mxu0
        %v1624 = vpop.f32.mrf.mxu0
        %v1625 = vadd.f32 0.0, %v1624
        %v1626 = vpop.f32.mrf.mxu0
        %1627 = vmatprep.mubr.bf16.mxu0 0
        %1628 = vmatmul.mubr.bf16.gmra.mxu0 %v1300
        %v1629 = vpop.f32.mrf.mxu0
        %v1630 = vadd.f32 0.0, %v1629
        %v1631 = vpop.f32.mrf.mxu0
        %v1632 = vpop.f32.mrf.mxu0
        %v1633 = vadd.f32 0.0, %v1632
        %v1634 = vpop.f32.mrf.mxu0
        %1635 = vmatprep.mubr.bf16.mxu0 0
        %1636 = vmatmul.mubr.bf16.gmra.mxu0 %v1301
        %v1637 = vpop.f32.mrf.mxu0
        %v1638 = vadd.f32 0.0, %v1637
        %v1639 = vpop.f32.mrf.mxu0
        %v1640 = vpop.f32.mrf.mxu0
        %v1641 = vadd.f32 0.0, %v1640
        %v1642 = vpop.f32.mrf.mxu0
        %1643 = vmatprep.mubr.bf16.mxu0 0
        %1644 = vmatmul.mubr.bf16.gmra.mxu0 %v1302
        %v1645 = vpop.f32.mrf.mxu0
        %v1646 = vadd.f32 0.0, %v1645
        %v1647 = vpop.f32.mrf.mxu0
        %v1648 = vpop.f32.mrf.mxu0
        %v1649 = vadd.f32 0.0, %v1648
        %v1650 = vpop.f32.mrf.mxu0
        %1651 = vmatprep.mubr.bf16.mxu0 0
        %1652 = vmatmul.mubr.bf16.gmra.mxu0 %v1303
        %v1653 = vpop.f32.mrf.mxu0
        %v1654 = vadd.f32 0.0, %v1653
        %v1655 = vpop.f32.mrf.mxu0
        %v1656 = vpop.f32.mrf.mxu0
        %v1657 = vadd.f32 0.0, %v1656
        %v1658 = vpop.f32.mrf.mxu0
        %1659 = vmatprep.mubr.bf16.mxu0 0
        %1660 = vmatmul.mubr.bf16.gmra.mxu0 %v1304
        %v1661 = vpop.f32.mrf.mxu0
        %v1662 = vadd.f32 0.0, %v1661
        %v1663 = vpop.f32.mrf.mxu0
        %v1664 = vpop.f32.mrf.mxu0
        %v1665 = vadd.f32 0.0, %v1664
        %v1666 = vpop.f32.mrf.mxu0
        %1667 = vmatprep.mubr.bf16.mxu0 0
        %1668 = vmatmul.mubr.bf16.gmra.mxu0 %v1305
        %v1669 = vpop.f32.mrf.mxu0
        %v1670 = vadd.f32 0.0, %v1669
        %v1671 = vpop.f32.mrf.mxu0
        %v1672 = vpop.f32.mrf.mxu0
        %v1673 = vadd.f32 0.0, %v1672
        %v1674 = vpop.f32.mrf.mxu0
        %1675 = vdwg.mxu0
        %v1676 = vadd.f32 %v560, %v1501
        %v1677 = vadd.f32 %v671, %v1503
        %v1678 = vadd.f32 %v673, %v1614
        %v1679 = vadd.f32 %v564, %v1505
        %v1680 = vadd.f32 %v675, %v1507
        %v1681 = vadd.f32 %v677, %v1617
        %v1682 = vadd.f32 %v570, %v1511
        %v1683 = vadd.f32 %v681, %v1513
        %v1684 = vadd.f32 %v683, %v1622
        %v1685 = vadd.f32 %v574, %v1515
        %v1686 = vadd.f32 %v685, %v1517
        %v1687 = vadd.f32 %v687, %v1625
        %v1688 = vadd.f32 %v580, %v1521
        %v1689 = vadd.f32 %v691, %v1523
        %v1690 = vadd.f32 %v693, %v1630
        %v1691 = vadd.f32 %v584, %v1525
        %v1692 = vadd.f32 %v695, %v1527
        %v1693 = vadd.f32 %v697, %v1633
        %v1694 = vadd.f32 %v590, %v1531
        %v1695 = vadd.f32 %v701, %v1533
        %v1696 = vadd.f32 %v703, %v1638
        %v1697 = vadd.f32 %v594, %v1535
        %v1698 = vadd.f32 %v705, %v1537
        %v1699 = vadd.f32 %v707, %v1641
        %v1700 = vadd.f32 %v600, %v1541
        %v1701 = vadd.f32 %v711, %v1543
        %v1702 = vadd.f32 %v713, %v1646
        %v1703 = vadd.f32 %v604, %v1545
        %v1704 = vadd.f32 %v715, %v1547
        %v1705 = vadd.f32 %v717, %v1649
        %v1706 = vadd.f32 %v610, %v1551
        %v1707 = vadd.f32 %v721, %v1553
        %v1708 = vadd.f32 %v723, %v1654
        %v1709 = vadd.f32 %v614, %v1555
        %v1710 = vadd.f32 %v725, %v1557
        %v1711 = vadd.f32 %v727, %v1657
        %v1712 = vadd.f32 %v620, %v1561
        %v1713 = vadd.f32 %v731, %v1563
        %v1714 = vadd.f32 %v733, %v1662
        %v1715 = vadd.f32 %v624, %v1565
        %v1716 = vadd.f32 %v735, %v1567
        %v1717 = vadd.f32 %v737, %v1665
        %v1718 = vadd.f32 %v630, %v1571
        %v1719 = vadd.f32 %v741, %v1573
        %v1720 = vadd.f32 %v743, %v1670
        %v1721 = vadd.f32 %v634, %v1575
        %v1722 = vadd.f32 %v745, %v1577
        %v1723 = vadd.f32 %v747, %v1673
        %v1724 = vtanh.pop %v1676
        %v1725 = vtanh.pop %v1677
        %v1726 = vtanh.pop %v1678
        %v1727 = vtanh.pop %v1679
        %v1728 = vtanh.pop %v1680
        %v1729 = vtanh.pop %v1681
        %v1730 = vtanh.pop %v1682
        %v1731 = vtanh.pop %v1683
        %v1732 = vtanh.pop %v1684
        %v1733 = vtanh.pop %v1685
        %v1734 = vtanh.pop %v1686
        %v1735 = vtanh.pop %v1687
        %v1736 = vtanh.pop %v1688
        %v1737 = vtanh.pop %v1689
        %v1738 = vtanh.pop %v1690
        %v1739 = vtanh.pop %v1691
        %v1740 = vtanh.pop %v1692
        %v1741 = vtanh.pop %v1693
        %v1742 = vtanh.pop %v1694
        %v1743 = vtanh.pop %v1695
        %v1744 = vtanh.pop %v1696
        %v1745 = vtanh.pop %v1697
        %v1746 = vtanh.pop %v1698
        %v1747 = vtanh.pop %v1699
        %v1748 = vtanh.pop %v1700
        %v1749 = vtanh.pop %v1701
        %v1750 = vtanh.pop %v1702
        %v1751 = vtanh.pop %v1703
        %v1752 = vtanh.pop %v1704
        %v1753 = vtanh.pop %v1705
        %v1754 = vtanh.pop %v1706
        %v1755 = vtanh.pop %v1707
        %v1756 = vtanh.pop %v1708
        %v1757 = vtanh.pop %v1709
        %v1758 = vtanh.pop %v1710
        %v1759 = vtanh.pop %v1711
        %v1760 = vtanh.pop %v1712
        %v1761 = vtanh.pop %v1713
        %v1762 = vtanh.pop %v1714
        %v1763 = vtanh.pop %v1715
        %v1764 = vtanh.pop %v1716
        %v1765 = vtanh.pop %v1717
        %v1766 = vtanh.pop %v1718
        %v1767 = vtanh.pop %v1719
        %v1768 = vtanh.pop %v1720
        %v1769 = vtanh.pop %v1721
        %v1770 = vtanh.pop %v1722
        %v1771 = vtanh.pop %v1723
        %v1772 = vmul.f32 %v558, %v1726
        %v1773 = vmul.f32 %v562, %v1729
        %v1774 = vmul.f32 %v568, %v1732
        %v1775 = vmul.f32 %v572, %v1735
        %v1776 = vmul.f32 %v578, %v1738
        %v1777 = vmul.f32 %v582, %v1741
        %v1778 = vmul.f32 %v588, %v1744
        %v1779 = vmul.f32 %v592, %v1747
        %v1780 = vmul.f32 %v598, %v1750
        %v1781 = vmul.f32 %v602, %v1753
        %v1782 = vmul.f32 %v608, %v1756
        %v1783 = vmul.f32 %v612, %v1759
        %v1784 = vmul.f32 %v618, %v1762
        %v1785 = vmul.f32 %v622, %v1765
        %v1786 = vmul.f32 %v628, %v1768
        %v1787 = vmul.f32 %v632, %v1771
        %v1788 = vpack.c.bf16 %v1773, %v1772
        %v1789 = vpack.c.bf16 %v1775, %v1774
        %v1790 = vpack.c.bf16 %v1777, %v1776
        %v1791 = vpack.c.bf16 %v1779, %v1778
        %v1792 = vpack.c.bf16 %v1781, %v1780
        %v1793 = vpack.c.bf16 %v1783, %v1782
        %v1794 = vpack.c.bf16 %v1785, %v1784
        %v1795 = vpack.c.bf16 %v1787, %v1786
        %v1796 = vld [vmem:[%s4] sm:$0xf]
        %v1797 = vld [vmem:[%s4 + $0x4] sm:$0xf]
        %v1798 = vld [vmem:[%s4 + $0x8] sm:$0xf]
        %v1799 = vld [vmem:[%s4 + $0xc] sm:$0xf]
        %v1800 = vld [vmem:[%s4 + $0x10] sm:$0xf]
        %v1801 = vld [vmem:[%s4 + $0x14] sm:$0xf]
        %v1802 = vld [vmem:[%s4 + $0x18] sm:$0xf]
        %v1803 = vld [vmem:[%s4 + $0x1c] sm:$0xf]
        %v1804 = vld [vmem:[%s4 + $0x20] sm:$0xf]
        %v1805 = vld [vmem:[%s4 + $0x24] sm:$0xf]
        %v1806 = vld [vmem:[%s4 + $0x28] sm:$0xf]
        %v1807 = vld [vmem:[%s4 + $0x2c] sm:$0xf]
        %v1808 = vld [vmem:[%s4 + $0x30] sm:$0xf]
        %v1809 = vld [vmem:[%s4 + $0x34] sm:$0xf]
        %v1810 = vld [vmem:[%s4 + $0x38] sm:$0xf]
        %v1811 = vld [vmem:[%s4 + $0x3c] sm:$0xf]
        %v1828 = vunpack.c.l.b16 %v1796
        %v1829 = vunpack.c.l.b16 %v1797
        %v1830 = vunpack.c.l.b16 %v1798
        %v1831 = vunpack.c.l.b16 %v1799
        %v1832 = vunpack.c.l.b16 %v1800
        %v1833 = vunpack.c.l.b16 %v1801
        %v1834 = vunpack.c.l.b16 %v1802
        %v1835 = vunpack.c.l.b16 %v1803
        %v1836 = vunpack.c.l.b16 %v1804
        %v1837 = vunpack.c.l.b16 %v1805
        %v1838 = vunpack.c.l.b16 %v1806
        %v1839 = vunpack.c.l.b16 %v1807
        %v1840 = vunpack.c.l.b16 %v1808
        %v1841 = vunpack.c.l.b16 %v1809
        %v1842 = vunpack.c.l.b16 %v1810
        %v1843 = vunpack.c.l.b16 %v1811
        %v1844 = vpack.c.b16 %v1829, %v1828
        %v1845 = vpack.c.b16 %v1831, %v1830
        %v1846 = vpack.c.b16 %v1833, %v1832
        %v1847 = vpack.c.b16 %v1835, %v1834
        %v1848 = vpack.c.b16 %v1837, %v1836
        %v1849 = vpack.c.b16 %v1839, %v1838
        %v1850 = vpack.c.b16 %v1841, %v1840
        %v1851 = vpack.c.b16 %v1843, %v1842
        %1860 = vmatprep.subr.bf16.mxu0 0
        %1861 = vmatpush1.bf16.msra.mxu0 %v1851
        %1862 = vmatprep.subr.bf16.mxu0 0
        %1863 = vmatpush1.bf16.msra.mxu0 %v1850
        %1864 = vmatprep.subr.bf16.mxu0 0
        %1865 = vmatpush1.bf16.msra.mxu0 %v1849
        %1866 = vmatprep.subr.bf16.mxu0 0
        %1867 = vmatpush1.bf16.msra.mxu0 %v1848
        %1868 = vmatprep.subr.bf16.mxu0 0
        %1869 = vmatpush1.bf16.msra.mxu0 %v1847
        %1870 = vmatprep.subr.bf16.mxu0 0
        %1871 = vmatpush1.bf16.msra.mxu0 %v1846
        %1872 = vmatprep.subr.bf16.mxu0 0
        %1873 = vmatpush1.bf16.msra.mxu0 %v1845
        %1874 = vmatprep.subr.bf16.mxu0 0
        %1875 = vmatpush1.bf16.msra.mxu0 %v1844
        %1876 = vmatprep.subr.bf16.mxu0 0
        %1877 = vmatpush2.bf16.msra.mxu0 0
        %1878 = vmatprep.subr.bf16.mxu0 0
        %1879 = vmatpush2.bf16.msra.mxu0 0
        %1880 = vmatprep.subr.bf16.mxu0 0
        %1881 = vmatpush2.bf16.msra.mxu0 0
        %1882 = vmatprep.subr.bf16.mxu0 0
        %1883 = vmatpush2.bf16.msra.mxu0 0
        %1884 = vmatprep.subr.bf16.mxu0 0
        %1885 = vmatpush2.bf16.msra.mxu0 0
        %1886 = vmatprep.subr.bf16.mxu0 0
        %1887 = vmatpush2.bf16.msra.mxu0 0
        %1888 = vmatprep.subr.bf16.mxu0 0
        %1889 = vmatpush2.bf16.msra.mxu0 0
        %1890 = vmatprep.subr.bf16.mxu0 0
        %1891 = vmatpush2.bf16.msra.mxu0 0
        %1892 = vmatprep.mubr.bf16.mxu0 0
        %1893 = vmatmul.mubr.bf16.gmra.mxu0 %v1788
        %v1894 = vpop.f32.mrf.mxu0
        %v1895 = vadd.f32 0.0, %v1894
        %v1896 = vpop.f32.mrf.mxu0
        %v1897 = vpop.f32.mrf.mxu0
        %v1898 = vadd.f32 0.0, %v1897
        %v1899 = vpop.f32.mrf.mxu0
        %1900 = vmatprep.mubr.bf16.mxu0 0
        %1901 = vmatmul.mubr.bf16.gmra.mxu0 %v1789
        %v1902 = vpop.f32.mrf.mxu0
        %v1903 = vadd.f32 0.0, %v1902
        %v1904 = vpop.f32.mrf.mxu0
        %v1905 = vpop.f32.mrf.mxu0
        %v1906 = vadd.f32 0.0, %v1905
        %v1907 = vpop.f32.mrf.mxu0
        %1908 = vmatprep.mubr.bf16.mxu0 0
        %1909 = vmatmul.mubr.bf16.gmra.mxu0 %v1790
        %v1910 = vpop.f32.mrf.mxu0
        %v1911 = vadd.f32 0.0, %v1910
        %v1912 = vpop.f32.mrf.mxu0
        %v1913 = vpop.f32.mrf.mxu0
        %v1914 = vadd.f32 0.0, %v1913
        %v1915 = vpop.f32.mrf.mxu0
        %1916 = vmatprep.mubr.bf16.mxu0 0
        %1917 = vmatmul.mubr.bf16.gmra.mxu0 %v1791
        %v1918 = vpop.f32.mrf.mxu0
        %v1919 = vadd.f32 0.0, %v1918
        %v1920 = vpop.f32.mrf.mxu0
        %v1921 = vpop.f32.mrf.mxu0
        %v1922 = vadd.f32 0.0, %v1921
        %v1923 = vpop.f32.mrf.mxu0
        %1924 = vmatprep.mubr.bf16.mxu0 0
        %1925 = vmatmul.mubr.bf16.gmra.mxu0 %v1792
        %v1926 = vpop.f32.mrf.mxu0
        %v1927 = vadd.f32 0.0, %v1926
        %v1928 = vpop.f32.mrf.mxu0
        %v1929 = vpop.f32.mrf.mxu0
        %v1930 = vadd.f32 0.0, %v1929
        %v1931 = vpop.f32.mrf.mxu0
        %1932 = vmatprep.mubr.bf16.mxu0 0
        %1933 = vmatmul.mubr.bf16.gmra.mxu0 %v1793
        %v1934 = vpop.f32.mrf.mxu0
        %v1935 = vadd.f32 0.0, %v1934
        %v1936 = vpop.f32.mrf.mxu0
        %v1937 = vpop.f32.mrf.mxu0
        %v1938 = vadd.f32 0.0, %v1937
        %v1939 = vpop.f32.mrf.mxu0
        %1940 = vmatprep.mubr.bf16.mxu0 0
        %1941 = vmatmul.mubr.bf16.gmra.mxu0 %v1794
        %v1942 = vpop.f32.mrf.mxu0
        %v1943 = vadd.f32 0.0, %v1942
        %v1944 = vpop.f32.mrf.mxu0
        %v1945 = vpop.f32.mrf.mxu0
        %v1946 = vadd.f32 0.0, %v1945
        %v1947 = vpop.f32.mrf.mxu0
        %1948 = vmatprep.mubr.bf16.mxu0 0
        %1949 = vmatmul.mubr.bf16.gmra.mxu0 %v1795
        %v1950 = vpop.f32.mrf.mxu0
        %v1951 = vadd.f32 0.0, %v1950
        %v1952 = vpop.f32.mrf.mxu0
        %v1953 = vpop.f32.mrf.mxu0
        %v1954 = vadd.f32 0.0, %v1953
        %v1955 = vpop.f32.mrf.mxu0
        %1956 = vdwg.mxu0
        %v1957 = vadd.f32 %v784, %v1895
        %v1958 = vadd.f32 %v788, %v1898
        %v1959 = vadd.f32 %v794, %v1903
        %v1960 = vadd.f32 %v798, %v1906
        %v1961 = vadd.f32 %v804, %v1911
        %v1962 = vadd.f32 %v808, %v1914
        %v1963 = vadd.f32 %v814, %v1919
        %v1964 = vadd.f32 %v818, %v1922
        %v1965 = vadd.f32 %v824, %v1927
        %v1966 = vadd.f32 %v828, %v1930
        %v1967 = vadd.f32 %v834, %v1935
        %v1968 = vadd.f32 %v838, %v1938
        %v1969 = vadd.f32 %v844, %v1943
        %v1970 = vadd.f32 %v848, %v1946
        %v1971 = vadd.f32 %v854, %v1951
        %v1972 = vadd.f32 %v858, %v1954
        %v1973 = vtanh.pop %v1957
        %v1974 = vtanh.pop %v1958
        %v1975 = vtanh.pop %v1959
        %v1976 = vtanh.pop %v1960
        %v1977 = vtanh.pop %v1961
        %v1978 = vtanh.pop %v1962
        %v1979 = vtanh.pop %v1963
        %v1980 = vtanh.pop %v1964
        %v1981 = vtanh.pop %v1965
        %v1982 = vtanh.pop %v1966
        %v1983 = vtanh.pop %v1967
        %v1984 = vtanh.pop %v1968
        %v1985 = vtanh.pop %v1969
        %v1986 = vtanh.pop %v1970
        %v1987 = vtanh.pop %v1971
        %v1988 = vtanh.pop %v1972
        %v1989 = vsub.f32 1.0, %v1725
        %v1990 = vsub.f32 1.0, %v1728
        %v1991 = vsub.f32 1.0, %v1731
        %v1992 = vsub.f32 1.0, %v1734
        %v1993 = vsub.f32 1.0, %v1737
        %v1994 = vsub.f32 1.0, %v1740
        %v1995 = vsub.f32 1.0, %v1743
        %v1996 = vsub.f32 1.0, %v1746
        %v1997 = vsub.f32 1.0, %v1749
        %v1998 = vsub.f32 1.0, %v1752
        %v1999 = vsub.f32 1.0, %v1755
        %v2000 = vsub.f32 1.0, %v1758
        %v2001 = vsub.f32 1.0, %v1761
        %v2002 = vsub.f32 1.0, %v1764
        %v2003 = vsub.f32 1.0, %v1767
        %v2004 = vsub.f32 1.0, %v1770
        %v2005 = vmul.f32 %v1989, %v1973
        %v2006 = vmul.f32 %v1990, %v1974
        %v2007 = vmul.f32 %v1991, %v1975
        %v2008 = vmul.f32 %v1992, %v1976
        %v2009 = vmul.f32 %v1993, %v1977
        %v2010 = vmul.f32 %v1994, %v1978
        %v2011 = vmul.f32 %v1995, %v1979
        %v2012 = vmul.f32 %v1996, %v1980
        %v2013 = vmul.f32 %v1997, %v1981
        %v2014 = vmul.f32 %v1998, %v1982
        %v2015 = vmul.f32 %v1999, %v1983
        %v2016 = vmul.f32 %v2000, %v1984
        %v2017 = vmul.f32 %v2001, %v1985
        %v2018 = vmul.f32 %v2002, %v1986
        %v2019 = vmul.f32 %v2003, %v1987
        %v2020 = vmul.f32 %v2004, %v1988
        %v2021 = vmul.f32 %v1724, %v558
        %v2022 = vmul.f32 %v1727, %v562
        %v2023 = vmul.f32 %v1730, %v568
        %v2024 = vmul.f32 %v1733, %v572
        %v2025 = vmul.f32 %v1736, %v578
        %v2026 = vmul.f32 %v1739, %v582
        %v2027 = vmul.f32 %v1742, %v588
        %v2028 = vmul.f32 %v1745, %v592
        %v2029 = vmul.f32 %v1748, %v598
        %v2030 = vmul.f32 %v1751, %v602
        %v2031 = vmul.f32 %v1754, %v608
        %v2032 = vmul.f32 %v1757, %v612
        %v2033 = vmul.f32 %v1760, %v618
        %v2034 = vmul.f32 %v1763, %v622
        %v2035 = vmul.f32 %v1766, %v628
        %v2036 = vmul.f32 %v1769, %v632
        %v2037 = vadd.f32 %v2005, %v2021
        %v2038 = vadd.f32 %v2006, %v2022
        %v2039 = vadd.f32 %v2007, %v2023
        %v2040 = vadd.f32 %v2008, %v2024
        %v2041 = vadd.f32 %v2009, %v2025
        %v2042 = vadd.f32 %v2010, %v2026
        %v2043 = vadd.f32 %v2011, %v2027
        %v2044 = vadd.f32 %v2012, %v2028
        %v2045 = vadd.f32 %v2013, %v2029
        %v2046 = vadd.f32 %v2014, %v2030
        %v2047 = vadd.f32 %v2015, %v2031
        %v2048 = vadd.f32 %v2016, %v2032
        %v2049 = vadd.f32 %v2017, %v2033
        %v2050 = vadd.f32 %v2018, %v2034
        %v2051 = vadd.f32 %v2019, %v2035
        %v2052 = vadd.f32 %v2020, %v2036
        %v2053 = vpack.c.bf16 %v2038, %v2037
        %v2054 = vpack.c.bf16 %v2040, %v2039
        %v2055 = vpack.c.bf16 %v2042, %v2041
        %v2056 = vpack.c.bf16 %v2044, %v2043
        %v2057 = vpack.c.bf16 %v2046, %v2045
        %v2058 = vpack.c.bf16 %v2048, %v2047
        %v2059 = vpack.c.bf16 %v2050, %v2049
        %v2060 = vpack.c.bf16 %v2052, %v2051
        %s2061 = scalar_lea.vmem [#allocation3], 192
        %v2062 = vld [vmem:[%s2061] sm:$0xff]
        %v2063 = vld [vmem:[%s2061 + $0x8] sm:$0xf]
        %v2064 = vld [vmem:[%s2061 + $0xc] sm:$0xff]
        %v2065 = vld [vmem:[%s2061 + $0x14] sm:$0xf]
        %v2066 = vld [vmem:[%s2061 + $0x18] sm:$0xff]
        %v2067 = vld [vmem:[%s2061 + $0x20] sm:$0xf]
        %v2068 = vld [vmem:[%s2061 + $0x24] sm:$0xff]
        %v2069 = vld [vmem:[%s2061 + $0x2c] sm:$0xf]
        %v2070 = vld [vmem:[%s2061 + $0x30] sm:$0xff]
        %v2071 = vld [vmem:[%s2061 + $0x38] sm:$0xf]
        %v2072 = vld [vmem:[%s2061 + $0x3c] sm:$0xff]
        %v2073 = vld [vmem:[%s2061 + $0x44] sm:$0xf]
        %v2074 = vld [vmem:[%s2061 + $0x48] sm:$0xff]
        %v2075 = vld [vmem:[%s2061 + $0x50] sm:$0xf]
        %v2076 = vld [vmem:[%s2061 + $0x54] sm:$0xff]
        %v2077 = vld [vmem:[%s2061 + $0x5c] sm:$0xf]
        %v2078 = vld [vmem:[%s2061 + $0x60] sm:$0xff]
        %v2079 = vld [vmem:[%s2061 + $0x68] sm:$0xf]
        %v2080 = vld [vmem:[%s2061 + $0x6c] sm:$0xff]
        %v2081 = vld [vmem:[%s2061 + $0x74] sm:$0xf]
        %v2082 = vld [vmem:[%s2061 + $0x78] sm:$0xff]
        %v2083 = vld [vmem:[%s2061 + $0x80] sm:$0xf]
        %v2084 = vld [vmem:[%s2061 + $0x84] sm:$0xff]
        %v2085 = vld [vmem:[%s2061 + $0x8c] sm:$0xf]
        %v2086 = vld [vmem:[%s2061 + $0x90] sm:$0xff]
        %v2087 = vld [vmem:[%s2061 + $0x98] sm:$0xf]
        %v2088 = vld [vmem:[%s2061 + $0x9c] sm:$0xff]
        %v2089 = vld [vmem:[%s2061 + $0xa4] sm:$0xf]
        %v2090 = vld [vmem:[%s2061 + $0xa8] sm:$0xff]
        %v2091 = vld [vmem:[%s2061 + $0xb0] sm:$0xf]
        %v2092 = vld [vmem:[%s2061 + $0xb4] sm:$0xff]
        %v2093 = vld [vmem:[%s2061 + $0xbc] sm:$0xf]
        %v2126 = vunpack.c.l.b16 %v2062
        %v2127 = vunpack.c.h.b16 %v2062
        %v2128 = vunpack.c.l.b16 %v2063
        %v2129 = vunpack.c.l.b16 %v2064
        %v2130 = vunpack.c.h.b16 %v2064
        %v2131 = vunpack.c.l.b16 %v2065
        %v2132 = vunpack.c.l.b16 %v2066
        %v2133 = vunpack.c.h.b16 %v2066
        %v2134 = vunpack.c.l.b16 %v2067
        %v2135 = vunpack.c.l.b16 %v2068
        %v2136 = vunpack.c.h.b16 %v2068
        %v2137 = vunpack.c.l.b16 %v2069
        %v2138 = vunpack.c.l.b16 %v2070
        %v2139 = vunpack.c.h.b16 %v2070
        %v2140 = vunpack.c.l.b16 %v2071
        %v2141 = vunpack.c.l.b16 %v2072
        %v2142 = vunpack.c.h.b16 %v2072
        %v2143 = vunpack.c.l.b16 %v2073
        %v2144 = vunpack.c.l.b16 %v2074
        %v2145 = vunpack.c.h.b16 %v2074
        %v2146 = vunpack.c.l.b16 %v2075
        %v2147 = vunpack.c.l.b16 %v2076
        %v2148 = vunpack.c.h.b16 %v2076
        %v2149 = vunpack.c.l.b16 %v2077
        %v2150 = vunpack.c.l.b16 %v2078
        %v2151 = vunpack.c.h.b16 %v2078
        %v2152 = vunpack.c.l.b16 %v2079
        %v2153 = vunpack.c.l.b16 %v2080
        %v2154 = vunpack.c.h.b16 %v2080
        %v2155 = vunpack.c.l.b16 %v2081
        %v2156 = vunpack.c.l.b16 %v2082
        %v2157 = vunpack.c.h.b16 %v2082
        %v2158 = vunpack.c.l.b16 %v2083
        %v2159 = vunpack.c.l.b16 %v2084
        %v2160 = vunpack.c.h.b16 %v2084
        %v2161 = vunpack.c.l.b16 %v2085
        %v2162 = vunpack.c.l.b16 %v2086
        %v2163 = vunpack.c.h.b16 %v2086
        %v2164 = vunpack.c.l.b16 %v2087
        %v2165 = vunpack.c.l.b16 %v2088
        %v2166 = vunpack.c.h.b16 %v2088
        %v2167 = vunpack.c.l.b16 %v2089
        %v2168 = vunpack.c.l.b16 %v2090
        %v2169 = vunpack.c.h.b16 %v2090
        %v2170 = vunpack.c.l.b16 %v2091
        %v2171 = vunpack.c.l.b16 %v2092
        %v2172 = vunpack.c.h.b16 %v2092
        %v2173 = vunpack.c.l.b16 %v2093
        %v2174 = vpack.c.b16 %v2129, %v2126
        %v2175 = vpack.c.b16 %v2130, %v2127
        %v2176 = vpack.c.b16 %v2131, %v2128
        %v2177 = vpack.c.b16 %v2135, %v2132
        %v2178 = vpack.c.b16 %v2136, %v2133
        %v2179 = vpack.c.b16 %v2137, %v2134
        %v2180 = vpack.c.b16 %v2141, %v2138
        %v2181 = vpack.c.b16 %v2142, %v2139
        %v2182 = vpack.c.b16 %v2143, %v2140
        %v2183 = vpack.c.b16 %v2147, %v2144
        %v2184 = vpack.c.b16 %v2148, %v2145
        %v2185 = vpack.c.b16 %v2149, %v2146
        %v2186 = vpack.c.b16 %v2153, %v2150
        %v2187 = vpack.c.b16 %v2154, %v2151
        %v2188 = vpack.c.b16 %v2155, %v2152
        %v2189 = vpack.c.b16 %v2159, %v2156
        %v2190 = vpack.c.b16 %v2160, %v2157
        %v2191 = vpack.c.b16 %v2161, %v2158
        %v2192 = vpack.c.b16 %v2165, %v2162
        %v2193 = vpack.c.b16 %v2166, %v2163
        %v2194 = vpack.c.b16 %v2167, %v2164
        %v2195 = vpack.c.b16 %v2171, %v2168
        %v2196 = vpack.c.b16 %v2172, %v2169
        %v2197 = vpack.c.b16 %v2173, %v2170
        %2222 = vmatprep.subr.bf16.mxu0 %v2196
        %2223 = vmatpush1.bf16.msra.mxu0 %v2195
        %2224 = vmatprep.subr.bf16.mxu0 %v2193
        %2225 = vmatpush1.bf16.msra.mxu0 %v2192
        %2226 = vmatprep.subr.bf16.mxu0 %v2190
        %2227 = vmatpush1.bf16.msra.mxu0 %v2189
        %2228 = vmatprep.subr.bf16.mxu0 %v2187
        %2229 = vmatpush1.bf16.msra.mxu0 %v2186
        %2230 = vmatprep.subr.bf16.mxu0 %v2184
        %2231 = vmatpush1.bf16.msra.mxu0 %v2183
        %2232 = vmatprep.subr.bf16.mxu0 %v2181
        %2233 = vmatpush1.bf16.msra.mxu0 %v2180
        %2234 = vmatprep.subr.bf16.mxu0 %v2178
        %2235 = vmatpush1.bf16.msra.mxu0 %v2177
        %2236 = vmatprep.subr.bf16.mxu0 %v2175
        %2237 = vmatpush1.bf16.msra.mxu0 %v2174
        %2238 = vmatprep.subr.bf16.mxu0 0
        %2239 = vmatpush2.bf16.msra.mxu0 0
        %2240 = vmatprep.subr.bf16.mxu0 0
        %2241 = vmatpush2.bf16.msra.mxu0 0
        %2242 = vmatprep.subr.bf16.mxu0 0
        %2243 = vmatpush2.bf16.msra.mxu0 0
        %2244 = vmatprep.subr.bf16.mxu0 0
        %2245 = vmatpush2.bf16.msra.mxu0 0
        %2246 = vmatprep.subr.bf16.mxu0 0
        %2247 = vmatpush2.bf16.msra.mxu0 0
        %2248 = vmatprep.subr.bf16.mxu0 0
        %2249 = vmatpush2.bf16.msra.mxu0 0
        %2250 = vmatprep.subr.bf16.mxu0 0
        %2251 = vmatpush2.bf16.msra.mxu0 0
        %2252 = vmatprep.subr.bf16.mxu0 0
        %2253 = vmatpush2.bf16.msra.mxu0 0
        %2254 = vmatprep.mubr.bf16.mxu0 0
        %2255 = vmatmul.mubr.bf16.gmra.mxu0 %v2053
        %v2256 = vpop.f32.mrf.mxu0
        %v2257 = vadd.f32 0.0, %v2256
        %v2258 = vpop.f32.mrf.mxu0
        %v2259 = vadd.f32 0.0, %v2258
        %v2260 = vpop.f32.mrf.mxu0
        %v2261 = vadd.f32 0.0, %v2260
        %v2262 = vpop.f32.mrf.mxu0
        %v2263 = vadd.f32 0.0, %v2262
        %2264 = vmatprep.mubr.bf16.mxu0 0
        %2265 = vmatmul.mubr.bf16.gmra.mxu0 %v2054
        %v2266 = vpop.f32.mrf.mxu0
        %v2267 = vadd.f32 0.0, %v2266
        %v2268 = vpop.f32.mrf.mxu0
        %v2269 = vadd.f32 0.0, %v2268
        %v2270 = vpop.f32.mrf.mxu0
        %v2271 = vadd.f32 0.0, %v2270
        %v2272 = vpop.f32.mrf.mxu0
        %v2273 = vadd.f32 0.0, %v2272
        %2274 = vmatprep.mubr.bf16.mxu0 0
        %2275 = vmatmul.mubr.bf16.gmra.mxu0 %v2055
        %v2276 = vpop.f32.mrf.mxu0
        %v2277 = vadd.f32 0.0, %v2276
        %v2278 = vpop.f32.mrf.mxu0
        %v2279 = vadd.f32 0.0, %v2278
        %v2280 = vpop.f32.mrf.mxu0
        %v2281 = vadd.f32 0.0, %v2280
        %v2282 = vpop.f32.mrf.mxu0
        %v2283 = vadd.f32 0.0, %v2282
        %2284 = vmatprep.mubr.bf16.mxu0 0
        %2285 = vmatmul.mubr.bf16.gmra.mxu0 %v2056
        %v2286 = vpop.f32.mrf.mxu0
        %v2287 = vadd.f32 0.0, %v2286
        %v2288 = vpop.f32.mrf.mxu0
        %v2289 = vadd.f32 0.0, %v2288
        %v2290 = vpop.f32.mrf.mxu0
        %v2291 = vadd.f32 0.0, %v2290
        %v2292 = vpop.f32.mrf.mxu0
        %v2293 = vadd.f32 0.0, %v2292
        %2294 = vmatprep.mubr.bf16.mxu0 0
        %2295 = vmatmul.mubr.bf16.gmra.mxu0 %v2057
        %v2296 = vpop.f32.mrf.mxu0
        %v2297 = vadd.f32 0.0, %v2296
        %v2298 = vpop.f32.mrf.mxu0
        %v2299 = vadd.f32 0.0, %v2298
        %v2300 = vpop.f32.mrf.mxu0
        %v2301 = vadd.f32 0.0, %v2300
        %v2302 = vpop.f32.mrf.mxu0
        %v2303 = vadd.f32 0.0, %v2302
        %2304 = vmatprep.mubr.bf16.mxu0 0
        %2305 = vmatmul.mubr.bf16.gmra.mxu0 %v2058
        %v2306 = vpop.f32.mrf.mxu0
        %v2307 = vadd.f32 0.0, %v2306
        %v2308 = vpop.f32.mrf.mxu0
        %v2309 = vadd.f32 0.0, %v2308
        %v2310 = vpop.f32.mrf.mxu0
        %v2311 = vadd.f32 0.0, %v2310
        %v2312 = vpop.f32.mrf.mxu0
        %v2313 = vadd.f32 0.0, %v2312
        %2314 = vmatprep.mubr.bf16.mxu0 0
        %2315 = vmatmul.mubr.bf16.gmra.mxu0 %v2059
        %v2316 = vpop.f32.mrf.mxu0
        %v2317 = vadd.f32 0.0, %v2316
        %v2318 = vpop.f32.mrf.mxu0
        %v2319 = vadd.f32 0.0, %v2318
        %v2320 = vpop.f32.mrf.mxu0
        %v2321 = vadd.f32 0.0, %v2320
        %v2322 = vpop.f32.mrf.mxu0
        %v2323 = vadd.f32 0.0, %v2322
        %2324 = vmatprep.mubr.bf16.mxu0 0
        %2325 = vmatmul.mubr.bf16.gmra.mxu0 %v2060
        %v2326 = vpop.f32.mrf.mxu0
        %v2327 = vadd.f32 0.0, %v2326
        %v2328 = vpop.f32.mrf.mxu0
        %v2329 = vadd.f32 0.0, %v2328
        %v2330 = vpop.f32.mrf.mxu0
        %v2331 = vadd.f32 0.0, %v2330
        %v2332 = vpop.f32.mrf.mxu0
        %v2333 = vadd.f32 0.0, %v2332
        %2334 = vdwg.mxu0
        %2335 = vmatprep.subr.bf16.mxu0 0
        %2336 = vmatpush1.bf16.msra.mxu0 %v2197
        %2337 = vmatprep.subr.bf16.mxu0 0
        %2338 = vmatpush1.bf16.msra.mxu0 %v2194
        %2339 = vmatprep.subr.bf16.mxu0 0
        %2340 = vmatpush1.bf16.msra.mxu0 %v2191
        %2341 = vmatprep.subr.bf16.mxu0 0
        %2342 = vmatpush1.bf16.msra.mxu0 %v2188
        %2343 = vmatprep.subr.bf16.mxu0 0
        %2344 = vmatpush1.bf16.msra.mxu0 %v2185
        %2345 = vmatprep.subr.bf16.mxu0 0
        %2346 = vmatpush1.bf16.msra.mxu0 %v2182
        %2347 = vmatprep.subr.bf16.mxu0 0
        %2348 = vmatpush1.bf16.msra.mxu0 %v2179
        %2349 = vmatprep.subr.bf16.mxu0 0
        %2350 = vmatpush1.bf16.msra.mxu0 %v2176
        %2351 = vmatprep.subr.bf16.mxu0 0
        %2352 = vmatpush2.bf16.msra.mxu0 0
        %2353 = vmatprep.subr.bf16.mxu0 0
        %2354 = vmatpush2.bf16.msra.mxu0 0
        %2355 = vmatprep.subr.bf16.mxu0 0
        %2356 = vmatpush2.bf16.msra.mxu0 0
        %2357 = vmatprep.subr.bf16.mxu0 0
        %2358 = vmatpush2.bf16.msra.mxu0 0
        %2359 = vmatprep.subr.bf16.mxu0 0
        %2360 = vmatpush2.bf16.msra.mxu0 0
        %2361 = vmatprep.subr.bf16.mxu0 0
        %2362 = vmatpush2.bf16.msra.mxu0 0
        %2363 = vmatprep.subr.bf16.mxu0 0
        %2364 = vmatpush2.bf16.msra.mxu0 0
        %2365 = vmatprep.subr.bf16.mxu0 0
        %2366 = vmatpush2.bf16.msra.mxu0 0
        %2367 = vmatprep.mubr.bf16.mxu0 0
        %2368 = vmatmul.mubr.bf16.gmra.mxu0 %v2053
        %v2369 = vpop.f32.mrf.mxu0
        %v2370 = vadd.f32 0.0, %v2369
        %v2371 = vpop.f32.mrf.mxu0
        %v2372 = vpop.f32.mrf.mxu0
        %v2373 = vadd.f32 0.0, %v2372
        %v2374 = vpop.f32.mrf.mxu0
        %2375 = vmatprep.mubr.bf16.mxu0 0
        %2376 = vmatmul.mubr.bf16.gmra.mxu0 %v2054
        %v2377 = vpop.f32.mrf.mxu0
        %v2378 = vadd.f32 0.0, %v2377
        %v2379 = vpop.f32.mrf.mxu0
        %v2380 = vpop.f32.mrf.mxu0
        %v2381 = vadd.f32 0.0, %v2380
        %v2382 = vpop.f32.mrf.mxu0
        %2383 = vmatprep.mubr.bf16.mxu0 0
        %2384 = vmatmul.mubr.bf16.gmra.mxu0 %v2055
        %v2385 = vpop.f32.mrf.mxu0
        %v2386 = vadd.f32 0.0, %v2385
        %v2387 = vpop.f32.mrf.mxu0
        %v2388 = vpop.f32.mrf.mxu0
        %v2389 = vadd.f32 0.0, %v2388
        %v2390 = vpop.f32.mrf.mxu0
        %2391 = vmatprep.mubr.bf16.mxu0 0
        %2392 = vmatmul.mubr.bf16.gmra.mxu0 %v2056
        %v2393 = vpop.f32.mrf.mxu0
        %v2394 = vadd.f32 0.0, %v2393
        %v2395 = vpop.f32.mrf.mxu0
        %v2396 = vpop.f32.mrf.mxu0
        %v2397 = vadd.f32 0.0, %v2396
        %v2398 = vpop.f32.mrf.mxu0
        %2399 = vmatprep.mubr.bf16.mxu0 0
        %2400 = vmatmul.mubr.bf16.gmra.mxu0 %v2057
        %v2401 = vpop.f32.mrf.mxu0
        %v2402 = vadd.f32 0.0, %v2401
        %v2403 = vpop.f32.mrf.mxu0
        %v2404 = vpop.f32.mrf.mxu0
        %v2405 = vadd.f32 0.0, %v2404
        %v2406 = vpop.f32.mrf.mxu0
        %2407 = vmatprep.mubr.bf16.mxu0 0
        %2408 = vmatmul.mubr.bf16.gmra.mxu0 %v2058
        %v2409 = vpop.f32.mrf.mxu0
        %v2410 = vadd.f32 0.0, %v2409
        %v2411 = vpop.f32.mrf.mxu0
        %v2412 = vpop.f32.mrf.mxu0
        %v2413 = vadd.f32 0.0, %v2412
        %v2414 = vpop.f32.mrf.mxu0
        %2415 = vmatprep.mubr.bf16.mxu0 0
        %2416 = vmatmul.mubr.bf16.gmra.mxu0 %v2059
        %v2417 = vpop.f32.mrf.mxu0
        %v2418 = vadd.f32 0.0, %v2417
        %v2419 = vpop.f32.mrf.mxu0
        %v2420 = vpop.f32.mrf.mxu0
        %v2421 = vadd.f32 0.0, %v2420
        %v2422 = vpop.f32.mrf.mxu0
        %2423 = vmatprep.mubr.bf16.mxu0 0
        %2424 = vmatmul.mubr.bf16.gmra.mxu0 %v2060
        %v2425 = vpop.f32.mrf.mxu0
        %v2426 = vadd.f32 0.0, %v2425
        %v2427 = vpop.f32.mrf.mxu0
        %v2428 = vpop.f32.mrf.mxu0
        %v2429 = vadd.f32 0.0, %v2428
        %v2430 = vpop.f32.mrf.mxu0
        %2431 = vdwg.mxu0
        %v2432 = vadd.f32 %v786, %v2257
        %v2433 = vadd.f32 %v897, %v2259
        %v2434 = vadd.f32 %v899, %v2370
        %v2435 = vadd.f32 %v790, %v2261
        %v2436 = vadd.f32 %v901, %v2263
        %v2437 = vadd.f32 %v903, %v2373
        %v2438 = vadd.f32 %v796, %v2267
        %v2439 = vadd.f32 %v907, %v2269
        %v2440 = vadd.f32 %v909, %v2378
        %v2441 = vadd.f32 %v800, %v2271
        %v2442 = vadd.f32 %v911, %v2273
        %v2443 = vadd.f32 %v913, %v2381
        %v2444 = vadd.f32 %v806, %v2277
        %v2445 = vadd.f32 %v917, %v2279
        %v2446 = vadd.f32 %v919, %v2386
        %v2447 = vadd.f32 %v810, %v2281
        %v2448 = vadd.f32 %v921, %v2283
        %v2449 = vadd.f32 %v923, %v2389
        %v2450 = vadd.f32 %v816, %v2287
        %v2451 = vadd.f32 %v927, %v2289
        %v2452 = vadd.f32 %v929, %v2394
        %v2453 = vadd.f32 %v820, %v2291
        %v2454 = vadd.f32 %v931, %v2293
        %v2455 = vadd.f32 %v933, %v2397
        %v2456 = vadd.f32 %v826, %v2297
        %v2457 = vadd.f32 %v937, %v2299
        %v2458 = vadd.f32 %v939, %v2402
        %v2459 = vadd.f32 %v830, %v2301
        %v2460 = vadd.f32 %v941, %v2303
        %v2461 = vadd.f32 %v943, %v2405
        %v2462 = vadd.f32 %v836, %v2307
        %v2463 = vadd.f32 %v947, %v2309
        %v2464 = vadd.f32 %v949, %v2410
        %v2465 = vadd.f32 %v840, %v2311
        %v2466 = vadd.f32 %v951, %v2313
        %v2467 = vadd.f32 %v953, %v2413
        %v2468 = vadd.f32 %v846, %v2317
        %v2469 = vadd.f32 %v957, %v2319
        %v2470 = vadd.f32 %v959, %v2418
        %v2471 = vadd.f32 %v850, %v2321
        %v2472 = vadd.f32 %v961, %v2323
        %v2473 = vadd.f32 %v963, %v2421
        %v2474 = vadd.f32 %v856, %v2327
        %v2475 = vadd.f32 %v967, %v2329
        %v2476 = vadd.f32 %v969, %v2426
        %v2477 = vadd.f32 %v860, %v2331
        %v2478 = vadd.f32 %v971, %v2333
        %v2479 = vadd.f32 %v973, %v2429
        %v2480 = vtanh.pop %v2432
        %v2481 = vtanh.pop %v2433
        %v2482 = vtanh.pop %v2434
        %v2483 = vtanh.pop %v2435
        %v2484 = vtanh.pop %v2436
        %v2485 = vtanh.pop %v2437
        %v2486 = vtanh.pop %v2438
        %v2487 = vtanh.pop %v2439
        %v2488 = vtanh.pop %v2440
        %v2489 = vtanh.pop %v2441
        %v2490 = vtanh.pop %v2442
        %v2491 = vtanh.pop %v2443
        %v2492 = vtanh.pop %v2444
        %v2493 = vtanh.pop %v2445
        %v2494 = vtanh.pop %v2446
        %v2495 = vtanh.pop %v2447
        %v2496 = vtanh.pop %v2448
        %v2497 = vtanh.pop %v2449
        %v2498 = vtanh.pop %v2450
        %v2499 = vtanh.pop %v2451
        %v2500 = vtanh.pop %v2452
        %v2501 = vtanh.pop %v2453
        %v2502 = vtanh.pop %v2454
        %v2503 = vtanh.pop %v2455
        %v2504 = vtanh.pop %v2456
        %v2505 = vtanh.pop %v2457
        %v2506 = vtanh.pop %v2458
        %v2507 = vtanh.pop %v2459
        %v2508 = vtanh.pop %v2460
        %v2509 = vtanh.pop %v2461
        %v2510 = vtanh.pop %v2462
        %v2511 = vtanh.pop %v2463
        %v2512 = vtanh.pop %v2464
        %v2513 = vtanh.pop %v2465
        %v2514 = vtanh.pop %v2466
        %v2515 = vtanh.pop %v2467
        %v2516 = vtanh.pop %v2468
        %v2517 = vtanh.pop %v2469
        %v2518 = vtanh.pop %v2470
        %v2519 = vtanh.pop %v2471
        %v2520 = vtanh.pop %v2472
        %v2521 = vtanh.pop %v2473
        %v2522 = vtanh.pop %v2474
        %v2523 = vtanh.pop %v2475
        %v2524 = vtanh.pop %v2476
        %v2525 = vtanh.pop %v2477
        %v2526 = vtanh.pop %v2478
        %v2527 = vtanh.pop %v2479
        %v2528 = vmul.f32 %v2037, %v2482
        %v2529 = vmul.f32 %v2038, %v2485
        %v2530 = vmul.f32 %v2039, %v2488
        %v2531 = vmul.f32 %v2040, %v2491
        %v2532 = vmul.f32 %v2041, %v2494
        %v2533 = vmul.f32 %v2042, %v2497
        %v2534 = vmul.f32 %v2043, %v2500
        %v2535 = vmul.f32 %v2044, %v2503
        %v2536 = vmul.f32 %v2045, %v2506
        %v2537 = vmul.f32 %v2046, %v2509
        %v2538 = vmul.f32 %v2047, %v2512
        %v2539 = vmul.f32 %v2048, %v2515
        %v2540 = vmul.f32 %v2049, %v2518
        %v2541 = vmul.f32 %v2050, %v2521
        %v2542 = vmul.f32 %v2051, %v2524
        %v2543 = vmul.f32 %v2052, %v2527
        %v2544 = vpack.c.bf16 %v2529, %v2528
        %v2545 = vpack.c.bf16 %v2531, %v2530
        %v2546 = vpack.c.bf16 %v2533, %v2532
        %v2547 = vpack.c.bf16 %v2535, %v2534
        %v2548 = vpack.c.bf16 %v2537, %v2536
        %v2549 = vpack.c.bf16 %v2539, %v2538
        %v2550 = vpack.c.bf16 %v2541, %v2540
        %v2551 = vpack.c.bf16 %v2543, %v2542
        %s2552 = scalar_lea.vmem %s4, 64
        %v2553 = vld [vmem:[%s2552] sm:$0xf]
        %v2554 = vld [vmem:[%s2552 + $0x4] sm:$0xf]
        %v2555 = vld [vmem:[%s2552 + $0x8] sm:$0xf]
        %v2556 = vld [vmem:[%s2552 + $0xc] sm:$0xf]
        %v2557 = vld [vmem:[%s2552 + $0x10] sm:$0xf]
        %v2558 = vld [vmem:[%s2552 + $0x14] sm:$0xf]
        %v2559 = vld [vmem:[%s2552 + $0x18] sm:$0xf]
        %v2560 = vld [vmem:[%s2552 + $0x1c] sm:$0xf]
        %v2561 = vld [vmem:[%s2552 + $0x20] sm:$0xf]
        %v2562 = vld [vmem:[%s2552 + $0x24] sm:$0xf]
        %v2563 = vld [vmem:[%s2552 + $0x28] sm:$0xf]
        %v2564 = vld [vmem:[%s2552 + $0x2c] sm:$0xf]
        %v2565 = vld [vmem:[%s2552 + $0x30] sm:$0xf]
        %v2566 = vld [vmem:[%s2552 + $0x34] sm:$0xf]
        %v2567 = vld [vmem:[%s2552 + $0x38] sm:$0xf]
        %v2568 = vld [vmem:[%s2552 + $0x3c] sm:$0xf]
        %v2585 = vunpack.c.l.b16 %v2553
        %v2586 = vunpack.c.l.b16 %v2554
        %v2587 = vunpack.c.l.b16 %v2555
        %v2588 = vunpack.c.l.b16 %v2556
        %v2589 = vunpack.c.l.b16 %v2557
        %v2590 = vunpack.c.l.b16 %v2558
        %v2591 = vunpack.c.l.b16 %v2559
        %v2592 = vunpack.c.l.b16 %v2560
        %v2593 = vunpack.c.l.b16 %v2561
        %v2594 = vunpack.c.l.b16 %v2562
        %v2595 = vunpack.c.l.b16 %v2563
        %v2596 = vunpack.c.l.b16 %v2564
        %v2597 = vunpack.c.l.b16 %v2565
        %v2598 = vunpack.c.l.b16 %v2566
        %v2599 = vunpack.c.l.b16 %v2567
        %v2600 = vunpack.c.l.b16 %v2568
        %v2601 = vpack.c.b16 %v2586, %v2585
        %v2602 = vpack.c.b16 %v2588, %v2587
        %v2603 = vpack.c.b16 %v2590, %v2589
        %v2604 = vpack.c.b16 %v2592, %v2591
        %v2605 = vpack.c.b16 %v2594, %v2593
        %v2606 = vpack.c.b16 %v2596, %v2595
        %v2607 = vpack.c.b16 %v2598, %v2597
        %v2608 = vpack.c.b16 %v2600, %v2599
        %2617 = vmatprep.subr.bf16.mxu0 0
        %2618 = vmatpush1.bf16.msra.mxu0 %v2608
        %2619 = vmatprep.subr.bf16.mxu0 0
        %2620 = vmatpush1.bf16.msra.mxu0 %v2607
        %2621 = vmatprep.subr.bf16.mxu0 0
        %2622 = vmatpush1.bf16.msra.mxu0 %v2606
        %2623 = vmatprep.subr.bf16.mxu0 0
        %2624 = vmatpush1.bf16.msra.mxu0 %v2605
        %2625 = vmatprep.subr.bf16.mxu0 0
        %2626 = vmatpush1.bf16.msra.mxu0 %v2604
        %2627 = vmatprep.subr.bf16.mxu0 0
        %2628 = vmatpush1.bf16.msra.mxu0 %v2603
        %2629 = vmatprep.subr.bf16.mxu0 0
        %2630 = vmatpush1.bf16.msra.mxu0 %v2602
        %2631 = vmatprep.subr.bf16.mxu0 0
        %2632 = vmatpush1.bf16.msra.mxu0 %v2601
        %2633 = vmatprep.subr.bf16.mxu0 0
        %2634 = vmatpush2.bf16.msra.mxu0 0
        %2635 = vmatprep.subr.bf16.mxu0 0
        %2636 = vmatpush2.bf16.msra.mxu0 0
        %2637 = vmatprep.subr.bf16.mxu0 0
        %2638 = vmatpush2.bf16.msra.mxu0 0
        %2639 = vmatprep.subr.bf16.mxu0 0
        %2640 = vmatpush2.bf16.msra.mxu0 0
        %2641 = vmatprep.subr.bf16.mxu0 0
        %2642 = vmatpush2.bf16.msra.mxu0 0
        %2643 = vmatprep.subr.bf16.mxu0 0
        %2644 = vmatpush2.bf16.msra.mxu0 0
        %2645 = vmatprep.subr.bf16.mxu0 0
        %2646 = vmatpush2.bf16.msra.mxu0 0
        %2647 = vmatprep.subr.bf16.mxu0 0
        %2648 = vmatpush2.bf16.msra.mxu0 0
        %2649 = vmatprep.mubr.bf16.mxu0 0
        %2650 = vmatmul.mubr.bf16.gmra.mxu0 %v2544
        %v2651 = vpop.f32.mrf.mxu0
        %v2652 = vadd.f32 0.0, %v2651
        %v2653 = vpop.f32.mrf.mxu0
        %v2654 = vpop.f32.mrf.mxu0
        %v2655 = vadd.f32 0.0, %v2654
        %v2656 = vpop.f32.mrf.mxu0
        %2657 = vmatprep.mubr.bf16.mxu0 0
        %2658 = vmatmul.mubr.bf16.gmra.mxu0 %v2545
        %v2659 = vpop.f32.mrf.mxu0
        %v2660 = vadd.f32 0.0, %v2659
        %v2661 = vpop.f32.mrf.mxu0
        %v2662 = vpop.f32.mrf.mxu0
        %v2663 = vadd.f32 0.0, %v2662
        %v2664 = vpop.f32.mrf.mxu0
        %2665 = vmatprep.mubr.bf16.mxu0 0
        %2666 = vmatmul.mubr.bf16.gmra.mxu0 %v2546
        %v2667 = vpop.f32.mrf.mxu0
        %v2668 = vadd.f32 0.0, %v2667
        %v2669 = vpop.f32.mrf.mxu0
        %v2670 = vpop.f32.mrf.mxu0
        %v2671 = vadd.f32 0.0, %v2670
        %v2672 = vpop.f32.mrf.mxu0
        %2673 = vmatprep.mubr.bf16.mxu0 0
        %2674 = vmatmul.mubr.bf16.gmra.mxu0 %v2547
        %v2675 = vpop.f32.mrf.mxu0
        %v2676 = vadd.f32 0.0, %v2675
        %v2677 = vpop.f32.mrf.mxu0
        %v2678 = vpop.f32.mrf.mxu0
        %v2679 = vadd.f32 0.0, %v2678
        %v2680 = vpop.f32.mrf.mxu0
        %2681 = vmatprep.mubr.bf16.mxu0 0
        %2682 = vmatmul.mubr.bf16.gmra.mxu0 %v2548
        %v2683 = vpop.f32.mrf.mxu0
        %v2684 = vadd.f32 0.0, %v2683
        %v2685 = vpop.f32.mrf.mxu0
        %v2686 = vpop.f32.mrf.mxu0
        %v2687 = vadd.f32 0.0, %v2686
        %v2688 = vpop.f32.mrf.mxu0
        %2689 = vmatprep.mubr.bf16.mxu0 0
        %2690 = vmatmul.mubr.bf16.gmra.mxu0 %v2549
        %v2691 = vpop.f32.mrf.mxu0
        %v2692 = vadd.f32 0.0, %v2691
        %v2693 = vpop.f32.mrf.mxu0
        %v2694 = vpop.f32.mrf.mxu0
        %v2695 = vadd.f32 0.0, %v2694
        %v2696 = vpop.f32.mrf.mxu0
        %2697 = vmatprep.mubr.bf16.mxu0 0
        %2698 = vmatmul.mubr.bf16.gmra.mxu0 %v2550
        %v2699 = vpop.f32.mrf.mxu0
        %v2700 = vadd.f32 0.0, %v2699
        %v2701 = vpop.f32.mrf.mxu0
        %v2702 = vpop.f32.mrf.mxu0
        %v2703 = vadd.f32 0.0, %v2702
        %v2704 = vpop.f32.mrf.mxu0
        %2705 = vmatprep.mubr.bf16.mxu0 0
        %2706 = vmatmul.mubr.bf16.gmra.mxu0 %v2551
        %v2707 = vpop.f32.mrf.mxu0
        %v2708 = vadd.f32 0.0, %v2707
        %v2709 = vpop.f32.mrf.mxu0
        %v2710 = vpop.f32.mrf.mxu0
        %v2711 = vadd.f32 0.0, %v2710
        %v2712 = vpop.f32.mrf.mxu0
        %2713 = vdwg.mxu0
        %v2714 = vadd.f32 %v1010, %v2652
        %v2715 = vadd.f32 %v1014, %v2655
        %v2716 = vadd.f32 %v1020, %v2660
        %v2717 = vadd.f32 %v1024, %v2663
        %v2718 = vadd.f32 %v1030, %v2668
        %v2719 = vadd.f32 %v1034, %v2671
        %v2720 = vadd.f32 %v1040, %v2676
        %v2721 = vadd.f32 %v1044, %v2679
        %v2722 = vadd.f32 %v1050, %v2684
        %v2723 = vadd.f32 %v1054, %v2687
        %v2724 = vadd.f32 %v1060, %v2692
        %v2725 = vadd.f32 %v1064, %v2695
        %v2726 = vadd.f32 %v1070, %v2700
        %v2727 = vadd.f32 %v1074, %v2703
        %v2728 = vadd.f32 %v1080, %v2708
        %v2729 = vadd.f32 %v1084, %v2711
        %v2730 = vtanh.pop %v2714
        %v2731 = vtanh.pop %v2715
        %v2732 = vtanh.pop %v2716
        %v2733 = vtanh.pop %v2717
        %v2734 = vtanh.pop %v2718
        %v2735 = vtanh.pop %v2719
        %v2736 = vtanh.pop %v2720
        %v2737 = vtanh.pop %v2721
        %v2738 = vtanh.pop %v2722
        %v2739 = vtanh.pop %v2723
        %v2740 = vtanh.pop %v2724
        %v2741 = vtanh.pop %v2725
        %v2742 = vtanh.pop %v2726
        %v2743 = vtanh.pop %v2727
        %v2744 = vtanh.pop %v2728
        %v2745 = vtanh.pop %v2729
        %v2746 = vsub.f32 1.0, %v2481
        %v2747 = vsub.f32 1.0, %v2484
        %v2748 = vsub.f32 1.0, %v2487
        %v2749 = vsub.f32 1.0, %v2490
        %v2750 = vsub.f32 1.0, %v2493
        %v2751 = vsub.f32 1.0, %v2496
        %v2752 = vsub.f32 1.0, %v2499
        %v2753 = vsub.f32 1.0, %v2502
        %v2754 = vsub.f32 1.0, %v2505
        %v2755 = vsub.f32 1.0, %v2508
        %v2756 = vsub.f32 1.0, %v2511
        %v2757 = vsub.f32 1.0, %v2514
        %v2758 = vsub.f32 1.0, %v2517
        %v2759 = vsub.f32 1.0, %v2520
        %v2760 = vsub.f32 1.0, %v2523
        %v2761 = vsub.f32 1.0, %v2526
        %v2762 = vmul.f32 %v2746, %v2730
        %v2763 = vmul.f32 %v2747, %v2731
        %v2764 = vmul.f32 %v2748, %v2732
        %v2765 = vmul.f32 %v2749, %v2733
        %v2766 = vmul.f32 %v2750, %v2734
        %v2767 = vmul.f32 %v2751, %v2735
        %v2768 = vmul.f32 %v2752, %v2736
        %v2769 = vmul.f32 %v2753, %v2737
        %v2770 = vmul.f32 %v2754, %v2738
        %v2771 = vmul.f32 %v2755, %v2739
        %v2772 = vmul.f32 %v2756, %v2740
        %v2773 = vmul.f32 %v2757, %v2741
        %v2774 = vmul.f32 %v2758, %v2742
        %v2775 = vmul.f32 %v2759, %v2743
        %v2776 = vmul.f32 %v2760, %v2744
        %v2777 = vmul.f32 %v2761, %v2745
        %v2778 = vmul.f32 %v2480, %v2037
        %v2779 = vmul.f32 %v2483, %v2038
        %v2780 = vmul.f32 %v2486, %v2039
        %v2781 = vmul.f32 %v2489, %v2040
        %v2782 = vmul.f32 %v2492, %v2041
        %v2783 = vmul.f32 %v2495, %v2042
        %v2784 = vmul.f32 %v2498, %v2043
        %v2785 = vmul.f32 %v2501, %v2044
        %v2786 = vmul.f32 %v2504, %v2045
        %v2787 = vmul.f32 %v2507, %v2046
        %v2788 = vmul.f32 %v2510, %v2047
        %v2789 = vmul.f32 %v2513, %v2048
        %v2790 = vmul.f32 %v2516, %v2049
        %v2791 = vmul.f32 %v2519, %v2050
        %v2792 = vmul.f32 %v2522, %v2051
        %v2793 = vmul.f32 %v2525, %v2052
        %v2794 = vadd.f32 %v2762, %v2778
        %v2795 = vadd.f32 %v2763, %v2779
        %v2796 = vadd.f32 %v2764, %v2780
        %v2797 = vadd.f32 %v2765, %v2781
        %v2798 = vadd.f32 %v2766, %v2782
        %v2799 = vadd.f32 %v2767, %v2783
        %v2800 = vadd.f32 %v2768, %v2784
        %v2801 = vadd.f32 %v2769, %v2785
        %v2802 = vadd.f32 %v2770, %v2786
        %v2803 = vadd.f32 %v2771, %v2787
        %v2804 = vadd.f32 %v2772, %v2788
        %v2805 = vadd.f32 %v2773, %v2789
        %v2806 = vadd.f32 %v2774, %v2790
        %v2807 = vadd.f32 %v2775, %v2791
        %v2808 = vadd.f32 %v2776, %v2792
        %v2809 = vadd.f32 %v2777, %v2793
        %v2810 = vpack.c.bf16 %v2795, %v2794
        %v2811 = vpack.c.bf16 %v2797, %v2796
        %v2812 = vpack.c.bf16 %v2799, %v2798
        %v2813 = vpack.c.bf16 %v2801, %v2800
        %v2814 = vpack.c.bf16 %v2803, %v2802
        %v2815 = vpack.c.bf16 %v2805, %v2804
        %v2816 = vpack.c.bf16 %v2807, %v2806
        %v2817 = vpack.c.bf16 %v2809, %v2808
        %s2818 = scalar_lea.vmem [#allocation3], 384
        %v2819 = vld [vmem:[%s2818] sm:$0xff]
        %v2820 = vld [vmem:[%s2818 + $0x8] sm:$0xf]
        %v2821 = vld [vmem:[%s2818 + $0xc] sm:$0xff]
        %v2822 = vld [vmem:[%s2818 + $0x14] sm:$0xf]
        %v2823 = vld [vmem:[%s2818 + $0x18] sm:$0xff]
        %v2824 = vld [vmem:[%s2818 + $0x20] sm:$0xf]
        %v2825 = vld [vmem:[%s2818 + $0x24] sm:$0xff]
        %v2826 = vld [vmem:[%s2818 + $0x2c] sm:$0xf]
        %v2827 = vld [vmem:[%s2818 + $0x30] sm:$0xff]
        %v2828 = vld [vmem:[%s2818 + $0x38] sm:$0xf]
        %v2829 = vld [vmem:[%s2818 + $0x3c] sm:$0xff]
        %v2830 = vld [vmem:[%s2818 + $0x44] sm:$0xf]
        %v2831 = vld [vmem:[%s2818 + $0x48] sm:$0xff]
        %v2832 = vld [vmem:[%s2818 + $0x50] sm:$0xf]
        %v2833 = vld [vmem:[%s2818 + $0x54] sm:$0xff]
        %v2834 = vld [vmem:[%s2818 + $0x5c] sm:$0xf]
        %v2835 = vld [vmem:[%s2818 + $0x60] sm:$0xff]
        %v2836 = vld [vmem:[%s2818 + $0x68] sm:$0xf]
        %v2837 = vld [vmem:[%s2818 + $0x6c] sm:$0xff]
        %v2838 = vld [vmem:[%s2818 + $0x74] sm:$0xf]
        %v2839 = vld [vmem:[%s2818 + $0x78] sm:$0xff]
        %v2840 = vld [vmem:[%s2818 + $0x80] sm:$0xf]
        %v2841 = vld [vmem:[%s2818 + $0x84] sm:$0xff]
        %v2842 = vld [vmem:[%s2818 + $0x8c] sm:$0xf]
        %v2843 = vld [vmem:[%s2818 + $0x90] sm:$0xff]
        %v2844 = vld [vmem:[%s2818 + $0x98] sm:$0xf]
        %v2845 = vld [vmem:[%s2818 + $0x9c] sm:$0xff]
        %v2846 = vld [vmem:[%s2818 + $0xa4] sm:$0xf]
        %v2847 = vld [vmem:[%s2818 + $0xa8] sm:$0xff]
        %v2848 = vld [vmem:[%s2818 + $0xb0] sm:$0xf]
        %v2849 = vld [vmem:[%s2818 + $0xb4] sm:$0xff]
        %v2850 = vld [vmem:[%s2818 + $0xbc] sm:$0xf]
        %v2883 = vunpack.c.l.b16 %v2819
        %v2884 = vunpack.c.h.b16 %v2819
        %v2885 = vunpack.c.l.b16 %v2820
        %v2886 = vunpack.c.l.b16 %v2821
        %v2887 = vunpack.c.h.b16 %v2821
        %v2888 = vunpack.c.l.b16 %v2822
        %v2889 = vunpack.c.l.b16 %v2823
        %v2890 = vunpack.c.h.b16 %v2823
        %v2891 = vunpack.c.l.b16 %v2824
        %v2892 = vunpack.c.l.b16 %v2825
        %v2893 = vunpack.c.h.b16 %v2825
        %v2894 = vunpack.c.l.b16 %v2826
        %v2895 = vunpack.c.l.b16 %v2827
        %v2896 = vunpack.c.h.b16 %v2827
        %v2897 = vunpack.c.l.b16 %v2828
        %v2898 = vunpack.c.l.b16 %v2829
        %v2899 = vunpack.c.h.b16 %v2829
        %v2900 = vunpack.c.l.b16 %v2830
        %v2901 = vunpack.c.l.b16 %v2831
        %v2902 = vunpack.c.h.b16 %v2831
        %v2903 = vunpack.c.l.b16 %v2832
        %v2904 = vunpack.c.l.b16 %v2833
        %v2905 = vunpack.c.h.b16 %v2833
        %v2906 = vunpack.c.l.b16 %v2834
        %v2907 = vunpack.c.l.b16 %v2835
        %v2908 = vunpack.c.h.b16 %v2835
        %v2909 = vunpack.c.l.b16 %v2836
        %v2910 = vunpack.c.l.b16 %v2837
        %v2911 = vunpack.c.h.b16 %v2837
        %v2912 = vunpack.c.l.b16 %v2838
        %v2913 = vunpack.c.l.b16 %v2839
        %v2914 = vunpack.c.h.b16 %v2839
        %v2915 = vunpack.c.l.b16 %v2840
        %v2916 = vunpack.c.l.b16 %v2841
        %v2917 = vunpack.c.h.b16 %v2841
        %v2918 = vunpack.c.l.b16 %v2842
        %v2919 = vunpack.c.l.b16 %v2843
        %v2920 = vunpack.c.h.b16 %v2843
        %v2921 = vunpack.c.l.b16 %v2844
        %v2922 = vunpack.c.l.b16 %v2845
        %v2923 = vunpack.c.h.b16 %v2845
        %v2924 = vunpack.c.l.b16 %v2846
        %v2925 = vunpack.c.l.b16 %v2847
        %v2926 = vunpack.c.h.b16 %v2847
        %v2927 = vunpack.c.l.b16 %v2848
        %v2928 = vunpack.c.l.b16 %v2849
        %v2929 = vunpack.c.h.b16 %v2849
        %v2930 = vunpack.c.l.b16 %v2850
        %v2931 = vpack.c.b16 %v2886, %v2883
        %v2932 = vpack.c.b16 %v2887, %v2884
        %v2933 = vpack.c.b16 %v2888, %v2885
        %v2934 = vpack.c.b16 %v2892, %v2889
        %v2935 = vpack.c.b16 %v2893, %v2890
        %v2936 = vpack.c.b16 %v2894, %v2891
        %v2937 = vpack.c.b16 %v2898, %v2895
        %v2938 = vpack.c.b16 %v2899, %v2896
        %v2939 = vpack.c.b16 %v2900, %v2897
        %v2940 = vpack.c.b16 %v2904, %v2901
        %v2941 = vpack.c.b16 %v2905, %v2902
        %v2942 = vpack.c.b16 %v2906, %v2903
        %v2943 = vpack.c.b16 %v2910, %v2907
        %v2944 = vpack.c.b16 %v2911, %v2908
        %v2945 = vpack.c.b16 %v2912, %v2909
        %v2946 = vpack.c.b16 %v2916, %v2913
        %v2947 = vpack.c.b16 %v2917, %v2914
        %v2948 = vpack.c.b16 %v2918, %v2915
        %v2949 = vpack.c.b16 %v2922, %v2919
        %v2950 = vpack.c.b16 %v2923, %v2920
        %v2951 = vpack.c.b16 %v2924, %v2921
        %v2952 = vpack.c.b16 %v2928, %v2925
        %v2953 = vpack.c.b16 %v2929, %v2926
        %v2954 = vpack.c.b16 %v2930, %v2927
        %2979 = vmatprep.subr.bf16.mxu0 %v2953
        %2980 = vmatpush1.bf16.msra.mxu0 %v2952
        %2981 = vmatprep.subr.bf16.mxu0 %v2950
        %2982 = vmatpush1.bf16.msra.mxu0 %v2949
        %2983 = vmatprep.subr.bf16.mxu0 %v2947
        %2984 = vmatpush1.bf16.msra.mxu0 %v2946
        %2985 = vmatprep.subr.bf16.mxu0 %v2944
        %2986 = vmatpush1.bf16.msra.mxu0 %v2943
        %2987 = vmatprep.subr.bf16.mxu0 %v2941
        %2988 = vmatpush1.bf16.msra.mxu0 %v2940
        %2989 = vmatprep.subr.bf16.mxu0 %v2938
        %2990 = vmatpush1.bf16.msra.mxu0 %v2937
        %2991 = vmatprep.subr.bf16.mxu0 %v2935
        %2992 = vmatpush1.bf16.msra.mxu0 %v2934
        %2993 = vmatprep.subr.bf16.mxu0 %v2932
        %2994 = vmatpush1.bf16.msra.mxu0 %v2931
        %2995 = vmatprep.subr.bf16.mxu0 0
        %2996 = vmatpush2.bf16.msra.mxu0 0
        %2997 = vmatprep.subr.bf16.mxu0 0
        %2998 = vmatpush2.bf16.msra.mxu0 0
        %2999 = vmatprep.subr.bf16.mxu0 0
        %3000 = vmatpush2.bf16.msra.mxu0 0
        %3001 = vmatprep.subr.bf16.mxu0 0
        %3002 = vmatpush2.bf16.msra.mxu0 0
        %3003 = vmatprep.subr.bf16.mxu0 0
        %3004 = vmatpush2.bf16.msra.mxu0 0
        %3005 = vmatprep.subr.bf16.mxu0 0
        %3006 = vmatpush2.bf16.msra.mxu0 0
        %3007 = vmatprep.subr.bf16.mxu0 0
        %3008 = vmatpush2.bf16.msra.mxu0 0
        %3009 = vmatprep.subr.bf16.mxu0 0
        %3010 = vmatpush2.bf16.msra.mxu0 0
        %3011 = vmatprep.mubr.bf16.mxu0 0
        %3012 = vmatmul.mubr.bf16.gmra.mxu0 %v2810
        %v3013 = vpop.f32.mrf.mxu0
        %v3014 = vadd.f32 0.0, %v3013
        %v3015 = vpop.f32.mrf.mxu0
        %v3016 = vadd.f32 0.0, %v3015
        %v3017 = vpop.f32.mrf.mxu0
        %v3018 = vadd.f32 0.0, %v3017
        %v3019 = vpop.f32.mrf.mxu0
        %v3020 = vadd.f32 0.0, %v3019
        %3021 = vmatprep.mubr.bf16.mxu0 0
        %3022 = vmatmul.mubr.bf16.gmra.mxu0 %v2811
        %v3023 = vpop.f32.mrf.mxu0
        %v3024 = vadd.f32 0.0, %v3023
        %v3025 = vpop.f32.mrf.mxu0
        %v3026 = vadd.f32 0.0, %v3025
        %v3027 = vpop.f32.mrf.mxu0
        %v3028 = vadd.f32 0.0, %v3027
        %v3029 = vpop.f32.mrf.mxu0
        %v3030 = vadd.f32 0.0, %v3029
        %3031 = vmatprep.mubr.bf16.mxu0 0
        %3032 = vmatmul.mubr.bf16.gmra.mxu0 %v2812
        %v3033 = vpop.f32.mrf.mxu0
        %v3034 = vadd.f32 0.0, %v3033
        %v3035 = vpop.f32.mrf.mxu0
        %v3036 = vadd.f32 0.0, %v3035
        %v3037 = vpop.f32.mrf.mxu0
        %v3038 = vadd.f32 0.0, %v3037
        %v3039 = vpop.f32.mrf.mxu0
        %v3040 = vadd.f32 0.0, %v3039
        %3041 = vmatprep.mubr.bf16.mxu0 0
        %3042 = vmatmul.mubr.bf16.gmra.mxu0 %v2813
        %v3043 = vpop.f32.mrf.mxu0
        %v3044 = vadd.f32 0.0, %v3043
        %v3045 = vpop.f32.mrf.mxu0
        %v3046 = vadd.f32 0.0, %v3045
        %v3047 = vpop.f32.mrf.mxu0
        %v3048 = vadd.f32 0.0, %v3047
        %v3049 = vpop.f32.mrf.mxu0
        %v3050 = vadd.f32 0.0, %v3049
        %3051 = vmatprep.mubr.bf16.mxu0 0
        %3052 = vmatmul.mubr.bf16.gmra.mxu0 %v2814
        %v3053 = vpop.f32.mrf.mxu0
        %v3054 = vadd.f32 0.0, %v3053
        %v3055 = vpop.f32.mrf.mxu0
        %v3056 = vadd.f32 0.0, %v3055
        %v3057 = vpop.f32.mrf.mxu0
        %v3058 = vadd.f32 0.0, %v3057
        %v3059 = vpop.f32.mrf.mxu0
        %v3060 = vadd.f32 0.0, %v3059
        %3061 = vmatprep.mubr.bf16.mxu0 0
        %3062 = vmatmul.mubr.bf16.gmra.mxu0 %v2815
        %v3063 = vpop.f32.mrf.mxu0
        %v3064 = vadd.f32 0.0, %v3063
        %v3065 = vpop.f32.mrf.mxu0
        %v3066 = vadd.f32 0.0, %v3065
        %v3067 = vpop.f32.mrf.mxu0
        %v3068 = vadd.f32 0.0, %v3067
        %v3069 = vpop.f32.mrf.mxu0
        %v3070 = vadd.f32 0.0, %v3069
        %3071 = vmatprep.mubr.bf16.mxu0 0
        %3072 = vmatmul.mubr.bf16.gmra.mxu0 %v2816
        %v3073 = vpop.f32.mrf.mxu0
        %v3074 = vadd.f32 0.0, %v3073
        %v3075 = vpop.f32.mrf.mxu0
        %v3076 = vadd.f32 0.0, %v3075
        %v3077 = vpop.f32.mrf.mxu0
        %v3078 = vadd.f32 0.0, %v3077
        %v3079 = vpop.f32.mrf.mxu0
        %v3080 = vadd.f32 0.0, %v3079
        %3081 = vmatprep.mubr.bf16.mxu0 0
        %3082 = vmatmul.mubr.bf16.gmra.mxu0 %v2817
        %v3083 = vpop.f32.mrf.mxu0
        %v3084 = vadd.f32 0.0, %v3083
        %v3085 = vpop.f32.mrf.mxu0
        %v3086 = vadd.f32 0.0, %v3085
        %v3087 = vpop.f32.mrf.mxu0
        %v3088 = vadd.f32 0.0, %v3087
        %v3089 = vpop.f32.mrf.mxu0
        %v3090 = vadd.f32 0.0, %v3089
        %3091 = vdwg.mxu0
        %3092 = vmatprep.subr.bf16.mxu0 0
        %3093 = vmatpush1.bf16.msra.mxu0 %v2954
        %3094 = vmatprep.subr.bf16.mxu0 0
        %3095 = vmatpush1.bf16.msra.mxu0 %v2951
        %3096 = vmatprep.subr.bf16.mxu0 0
        %3097 = vmatpush1.bf16.msra.mxu0 %v2948
        %3098 = vmatprep.subr.bf16.mxu0 0
        %3099 = vmatpush1.bf16.msra.mxu0 %v2945
        %3100 = vmatprep.subr.bf16.mxu0 0
        %3101 = vmatpush1.bf16.msra.mxu0 %v2942
        %3102 = vmatprep.subr.bf16.mxu0 0
        %3103 = vmatpush1.bf16.msra.mxu0 %v2939
        %3104 = vmatprep.subr.bf16.mxu0 0
        %3105 = vmatpush1.bf16.msra.mxu0 %v2936
        %3106 = vmatprep.subr.bf16.mxu0 0
        %3107 = vmatpush1.bf16.msra.mxu0 %v2933
        %3108 = vmatprep.subr.bf16.mxu0 0
        %3109 = vmatpush2.bf16.msra.mxu0 0
        %3110 = vmatprep.subr.bf16.mxu0 0
        %3111 = vmatpush2.bf16.msra.mxu0 0
        %3112 = vmatprep.subr.bf16.mxu0 0
        %3113 = vmatpush2.bf16.msra.mxu0 0
        %3114 = vmatprep.subr.bf16.mxu0 0
        %3115 = vmatpush2.bf16.msra.mxu0 0
        %3116 = vmatprep.subr.bf16.mxu0 0
        %3117 = vmatpush2.bf16.msra.mxu0 0
        %3118 = vmatprep.subr.bf16.mxu0 0
        %3119 = vmatpush2.bf16.msra.mxu0 0
        %3120 = vmatprep.subr.bf16.mxu0 0
        %3121 = vmatpush2.bf16.msra.mxu0 0
        %3122 = vmatprep.subr.bf16.mxu0 0
        %3123 = vmatpush2.bf16.msra.mxu0 0
        %3124 = vmatprep.mubr.bf16.mxu0 0
        %3125 = vmatmul.mubr.bf16.gmra.mxu0 %v2810
        %v3126 = vpop.f32.mrf.mxu0
        %v3127 = vadd.f32 0.0, %v3126
        %v3128 = vpop.f32.mrf.mxu0
        %v3129 = vpop.f32.mrf.mxu0
        %v3130 = vadd.f32 0.0, %v3129
        %v3131 = vpop.f32.mrf.mxu0
        %3132 = vmatprep.mubr.bf16.mxu0 0
        %3133 = vmatmul.mubr.bf16.gmra.mxu0 %v2811
        %v3134 = vpop.f32.mrf.mxu0
        %v3135 = vadd.f32 0.0, %v3134
        %v3136 = vpop.f32.mrf.mxu0
        %v3137 = vpop.f32.mrf.mxu0
        %v3138 = vadd.f32 0.0, %v3137
        %v3139 = vpop.f32.mrf.mxu0
        %3140 = vmatprep.mubr.bf16.mxu0 0
        %3141 = vmatmul.mubr.bf16.gmra.mxu0 %v2812
        %v3142 = vpop.f32.mrf.mxu0
        %v3143 = vadd.f32 0.0, %v3142
        %v3144 = vpop.f32.mrf.mxu0
        %v3145 = vpop.f32.mrf.mxu0
        %v3146 = vadd.f32 0.0, %v3145
        %v3147 = vpop.f32.mrf.mxu0
        %3148 = vmatprep.mubr.bf16.mxu0 0
        %3149 = vmatmul.mubr.bf16.gmra.mxu0 %v2813
        %v3150 = vpop.f32.mrf.mxu0
        %v3151 = vadd.f32 0.0, %v3150
        %v3152 = vpop.f32.mrf.mxu0
        %v3153 = vpop.f32.mrf.mxu0
        %v3154 = vadd.f32 0.0, %v3153
        %v3155 = vpop.f32.mrf.mxu0
        %3156 = vmatprep.mubr.bf16.mxu0 0
        %3157 = vmatmul.mubr.bf16.gmra.mxu0 %v2814
        %v3158 = vpop.f32.mrf.mxu0
        %v3159 = vadd.f32 0.0, %v3158
        %v3160 = vpop.f32.mrf.mxu0
        %v3161 = vpop.f32.mrf.mxu0
        %v3162 = vadd.f32 0.0, %v3161
        %v3163 = vpop.f32.mrf.mxu0
        %3164 = vmatprep.mubr.bf16.mxu0 0
        %3165 = vmatmul.mubr.bf16.gmra.mxu0 %v2815
        %v3166 = vpop.f32.mrf.mxu0
        %v3167 = vadd.f32 0.0, %v3166
        %v3168 = vpop.f32.mrf.mxu0
        %v3169 = vpop.f32.mrf.mxu0
        %v3170 = vadd.f32 0.0, %v3169
        %v3171 = vpop.f32.mrf.mxu0
        %3172 = vmatprep.mubr.bf16.mxu0 0
        %3173 = vmatmul.mubr.bf16.gmra.mxu0 %v2816
        %v3174 = vpop.f32.mrf.mxu0
        %v3175 = vadd.f32 0.0, %v3174
        %v3176 = vpop.f32.mrf.mxu0
        %v3177 = vpop.f32.mrf.mxu0
        %v3178 = vadd.f32 0.0, %v3177
        %v3179 = vpop.f32.mrf.mxu0
        %3180 = vmatprep.mubr.bf16.mxu0 0
        %3181 = vmatmul.mubr.bf16.gmra.mxu0 %v2817
        %v3182 = vpop.f32.mrf.mxu0
        %v3183 = vadd.f32 0.0, %v3182
        %v3184 = vpop.f32.mrf.mxu0
        %v3185 = vpop.f32.mrf.mxu0
        %v3186 = vadd.f32 0.0, %v3185
        %v3187 = vpop.f32.mrf.mxu0
        %3188 = vdwg.mxu0
        %v3189 = vadd.f32 %v1012, %v3014
        %v3190 = vadd.f32 %v1123, %v3016
        %v3191 = vadd.f32 %v1125, %v3127
        %v3192 = vadd.f32 %v1016, %v3018
        %v3193 = vadd.f32 %v1127, %v3020
        %v3194 = vadd.f32 %v1129, %v3130
        %v3195 = vadd.f32 %v1022, %v3024
        %v3196 = vadd.f32 %v1133, %v3026
        %v3197 = vadd.f32 %v1135, %v3135
        %v3198 = vadd.f32 %v1026, %v3028
        %v3199 = vadd.f32 %v1137, %v3030
        %v3200 = vadd.f32 %v1139, %v3138
        %v3201 = vadd.f32 %v1032, %v3034
        %v3202 = vadd.f32 %v1143, %v3036
        %v3203 = vadd.f32 %v1145, %v3143
        %v3204 = vadd.f32 %v1036, %v3038
        %v3205 = vadd.f32 %v1147, %v3040
        %v3206 = vadd.f32 %v1149, %v3146
        %v3207 = vadd.f32 %v1042, %v3044
        %v3208 = vadd.f32 %v1153, %v3046
        %v3209 = vadd.f32 %v1155, %v3151
        %v3210 = vadd.f32 %v1046, %v3048
        %v3211 = vadd.f32 %v1157, %v3050
        %v3212 = vadd.f32 %v1159, %v3154
        %v3213 = vadd.f32 %v1052, %v3054
        %v3214 = vadd.f32 %v1163, %v3056
        %v3215 = vadd.f32 %v1165, %v3159
        %v3216 = vadd.f32 %v1056, %v3058
        %v3217 = vadd.f32 %v1167, %v3060
        %v3218 = vadd.f32 %v1169, %v3162
        %v3219 = vadd.f32 %v1062, %v3064
        %v3220 = vadd.f32 %v1173, %v3066
        %v3221 = vadd.f32 %v1175, %v3167
        %v3222 = vadd.f32 %v1066, %v3068
        %v3223 = vadd.f32 %v1177, %v3070
        %v3224 = vadd.f32 %v1179, %v3170
        %v3225 = vadd.f32 %v1072, %v3074
        %v3226 = vadd.f32 %v1183, %v3076
        %v3227 = vadd.f32 %v1185, %v3175
        %v3228 = vadd.f32 %v1076, %v3078
        %v3229 = vadd.f32 %v1187, %v3080
        %v3230 = vadd.f32 %v1189, %v3178
        %v3231 = vadd.f32 %v1082, %v3084
        %v3232 = vadd.f32 %v1193, %v3086
        %v3233 = vadd.f32 %v1195, %v3183
        %v3234 = vadd.f32 %v1086, %v3088
        %v3235 = vadd.f32 %v1197, %v3090
        %v3236 = vadd.f32 %v1199, %v3186
        %v3237 = vtanh.pop %v3189
        %v3238 = vtanh.pop %v3190
        %v3239 = vtanh.pop %v3191
        %v3240 = vtanh.pop %v3192
        %v3241 = vtanh.pop %v3193
        %v3242 = vtanh.pop %v3194
        %v3243 = vtanh.pop %v3195
        %v3244 = vtanh.pop %v3196
        %v3245 = vtanh.pop %v3197
        %v3246 = vtanh.pop %v3198
        %v3247 = vtanh.pop %v3199
        %v3248 = vtanh.pop %v3200
        %v3249 = vtanh.pop %v3201
        %v3250 = vtanh.pop %v3202
        %v3251 = vtanh.pop %v3203
        %v3252 = vtanh.pop %v3204
        %v3253 = vtanh.pop %v3205
        %v3254 = vtanh.pop %v3206
        %v3255 = vtanh.pop %v3207
        %v3256 = vtanh.pop %v3208
        %v3257 = vtanh.pop %v3209
        %v3258 = vtanh.pop %v3210
        %v3259 = vtanh.pop %v3211
        %v3260 = vtanh.pop %v3212
        %v3261 = vtanh.pop %v3213
        %v3262 = vtanh.pop %v3214
        %v3263 = vtanh.pop %v3215
        %v3264 = vtanh.pop %v3216
        %v3265 = vtanh.pop %v3217
        %v3266 = vtanh.pop %v3218
        %v3267 = vtanh.pop %v3219
        %v3268 = vtanh.pop %v3220
        %v3269 = vtanh.pop %v3221
        %v3270 = vtanh.pop %v3222
        %v3271 = vtanh.pop %v3223
        %v3272 = vtanh.pop %v3224
        %v3273 = vtanh.pop %v3225
        %v3274 = vtanh.pop %v3226
        %v3275 = vtanh.pop %v3227
        %v3276 = vtanh.pop %v3228
        %v3277 = vtanh.pop %v3229
        %v3278 = vtanh.pop %v3230
        %v3279 = vtanh.pop %v3231
        %v3280 = vtanh.pop %v3232
        %v3281 = vtanh.pop %v3233
        %v3282 = vtanh.pop %v3234
        %v3283 = vtanh.pop %v3235
        %v3284 = vtanh.pop %v3236
        %v3285 = vmul.f32 %v2794, %v3239
        %v3286 = vmul.f32 %v2795, %v3242
        %v3287 = vmul.f32 %v2796, %v3245
        %v3288 = vmul.f32 %v2797, %v3248
        %v3289 = vmul.f32 %v2798, %v3251
        %v3290 = vmul.f32 %v2799, %v3254
        %v3291 = vmul.f32 %v2800, %v3257
        %v3292 = vmul.f32 %v2801, %v3260
        %v3293 = vmul.f32 %v2802, %v3263
        %v3294 = vmul.f32 %v2803, %v3266
        %v3295 = vmul.f32 %v2804, %v3269
        %v3296 = vmul.f32 %v2805, %v3272
        %v3297 = vmul.f32 %v2806, %v3275
        %v3298 = vmul.f32 %v2807, %v3278
        %v3299 = vmul.f32 %v2808, %v3281
        %v3300 = vmul.f32 %v2809, %v3284
        %v3301 = vpack.c.bf16 %v3286, %v3285
        %v3302 = vpack.c.bf16 %v3288, %v3287
        %v3303 = vpack.c.bf16 %v3290, %v3289
        %v3304 = vpack.c.bf16 %v3292, %v3291
        %v3305 = vpack.c.bf16 %v3294, %v3293
        %v3306 = vpack.c.bf16 %v3296, %v3295
        %v3307 = vpack.c.bf16 %v3298, %v3297
        %v3308 = vpack.c.bf16 %v3300, %v3299
        %s3309 = scalar_lea.vmem %s4, 128
        %v3310 = vld [vmem:[%s3309] sm:$0xf]
        %v3311 = vld [vmem:[%s3309 + $0x4] sm:$0xf]
        %v3312 = vld [vmem:[%s3309 + $0x8] sm:$0xf]
        %v3313 = vld [vmem:[%s3309 + $0xc] sm:$0xf]
        %v3314 = vld [vmem:[%s3309 + $0x10] sm:$0xf]
        %v3315 = vld [vmem:[%s3309 + $0x14] sm:$0xf]
        %v3316 = vld [vmem:[%s3309 + $0x18] sm:$0xf]
        %v3317 = vld [vmem:[%s3309 + $0x1c] sm:$0xf]
        %v3318 = vld [vmem:[%s3309 + $0x20] sm:$0xf]
        %v3319 = vld [vmem:[%s3309 + $0x24] sm:$0xf]
        %v3320 = vld [vmem:[%s3309 + $0x28] sm:$0xf]
        %v3321 = vld [vmem:[%s3309 + $0x2c] sm:$0xf]
        %v3322 = vld [vmem:[%s3309 + $0x30] sm:$0xf]
        %v3323 = vld [vmem:[%s3309 + $0x34] sm:$0xf]
        %v3324 = vld [vmem:[%s3309 + $0x38] sm:$0xf]
        %v3325 = vld [vmem:[%s3309 + $0x3c] sm:$0xf]
        %v3342 = vunpack.c.l.b16 %v3310
        %v3343 = vunpack.c.l.b16 %v3311
        %v3344 = vunpack.c.l.b16 %v3312
        %v3345 = vunpack.c.l.b16 %v3313
        %v3346 = vunpack.c.l.b16 %v3314
        %v3347 = vunpack.c.l.b16 %v3315
        %v3348 = vunpack.c.l.b16 %v3316
        %v3349 = vunpack.c.l.b16 %v3317
        %v3350 = vunpack.c.l.b16 %v3318
        %v3351 = vunpack.c.l.b16 %v3319
        %v3352 = vunpack.c.l.b16 %v3320
        %v3353 = vunpack.c.l.b16 %v3321
        %v3354 = vunpack.c.l.b16 %v3322
        %v3355 = vunpack.c.l.b16 %v3323
        %v3356 = vunpack.c.l.b16 %v3324
        %v3357 = vunpack.c.l.b16 %v3325
        %v3358 = vpack.c.b16 %v3343, %v3342
        %v3359 = vpack.c.b16 %v3345, %v3344
        %v3360 = vpack.c.b16 %v3347, %v3346
        %v3361 = vpack.c.b16 %v3349, %v3348
        %v3362 = vpack.c.b16 %v3351, %v3350
        %v3363 = vpack.c.b16 %v3353, %v3352
        %v3364 = vpack.c.b16 %v3355, %v3354
        %v3365 = vpack.c.b16 %v3357, %v3356
        %3374 = vmatprep.subr.bf16.mxu0 0
        %3375 = vmatpush1.bf16.msra.mxu0 %v3365
        %3376 = vmatprep.subr.bf16.mxu0 0
        %3377 = vmatpush1.bf16.msra.mxu0 %v3364
        %3378 = vmatprep.subr.bf16.mxu0 0
        %3379 = vmatpush1.bf16.msra.mxu0 %v3363
        %3380 = vmatprep.subr.bf16.mxu0 0
        %3381 = vmatpush1.bf16.msra.mxu0 %v3362
        %3382 = vmatprep.subr.bf16.mxu0 0
        %3383 = vmatpush1.bf16.msra.mxu0 %v3361
        %3384 = vmatprep.subr.bf16.mxu0 0
        %3385 = vmatpush1.bf16.msra.mxu0 %v3360
        %3386 = vmatprep.subr.bf16.mxu0 0
        %3387 = vmatpush1.bf16.msra.mxu0 %v3359
        %3388 = vmatprep.subr.bf16.mxu0 0
        %3389 = vmatpush1.bf16.msra.mxu0 %v3358
        %3390 = vmatprep.subr.bf16.mxu0 0
        %3391 = vmatpush2.bf16.msra.mxu0 0
        %3392 = vmatprep.subr.bf16.mxu0 0
        %3393 = vmatpush2.bf16.msra.mxu0 0
        %3394 = vmatprep.subr.bf16.mxu0 0
        %3395 = vmatpush2.bf16.msra.mxu0 0
        %3396 = vmatprep.subr.bf16.mxu0 0
        %3397 = vmatpush2.bf16.msra.mxu0 0
        %3398 = vmatprep.subr.bf16.mxu0 0
        %3399 = vmatpush2.bf16.msra.mxu0 0
        %3400 = vmatprep.subr.bf16.mxu0 0
        %3401 = vmatpush2.bf16.msra.mxu0 0
        %3402 = vmatprep.subr.bf16.mxu0 0
        %3403 = vmatpush2.bf16.msra.mxu0 0
        %3404 = vmatprep.subr.bf16.mxu0 0
        %3405 = vmatpush2.bf16.msra.mxu0 0
        %3406 = vmatprep.mubr.bf16.mxu0 0
        %3407 = vmatmul.mubr.bf16.gmra.mxu0 %v3301
        %v3408 = vpop.f32.mrf.mxu0
        %v3409 = vadd.f32 0.0, %v3408
        %v3410 = vpop.f32.mrf.mxu0
        %v3411 = vpop.f32.mrf.mxu0
        %v3412 = vadd.f32 0.0, %v3411
        %v3413 = vpop.f32.mrf.mxu0
        %3414 = vmatprep.mubr.bf16.mxu0 0
        %3415 = vmatmul.mubr.bf16.gmra.mxu0 %v3302
        %v3416 = vpop.f32.mrf.mxu0
        %v3417 = vadd.f32 0.0, %v3416
        %v3418 = vpop.f32.mrf.mxu0
        %v3419 = vpop.f32.mrf.mxu0
        %v3420 = vadd.f32 0.0, %v3419
        %v3421 = vpop.f32.mrf.mxu0
        %3422 = vmatprep.mubr.bf16.mxu0 0
        %3423 = vmatmul.mubr.bf16.gmra.mxu0 %v3303
        %v3424 = vpop.f32.mrf.mxu0
        %v3425 = vadd.f32 0.0, %v3424
        %v3426 = vpop.f32.mrf.mxu0
        %v3427 = vpop.f32.mrf.mxu0
        %v3428 = vadd.f32 0.0, %v3427
        %v3429 = vpop.f32.mrf.mxu0
        %3430 = vmatprep.mubr.bf16.mxu0 0
        %3431 = vmatmul.mubr.bf16.gmra.mxu0 %v3304
        %v3432 = vpop.f32.mrf.mxu0
        %v3433 = vadd.f32 0.0, %v3432
        %v3434 = vpop.f32.mrf.mxu0
        %v3435 = vpop.f32.mrf.mxu0
        %v3436 = vadd.f32 0.0, %v3435
        %v3437 = vpop.f32.mrf.mxu0
        %3438 = vmatprep.mubr.bf16.mxu0 0
        %3439 = vmatmul.mubr.bf16.gmra.mxu0 %v3305
        %v3440 = vpop.f32.mrf.mxu0
        %v3441 = vadd.f32 0.0, %v3440
        %v3442 = vpop.f32.mrf.mxu0
        %v3443 = vpop.f32.mrf.mxu0
        %v3444 = vadd.f32 0.0, %v3443
        %v3445 = vpop.f32.mrf.mxu0
        %3446 = vmatprep.mubr.bf16.mxu0 0
        %3447 = vmatmul.mubr.bf16.gmra.mxu0 %v3306
        %v3448 = vpop.f32.mrf.mxu0
        %v3449 = vadd.f32 0.0, %v3448
        %v3450 = vpop.f32.mrf.mxu0
        %v3451 = vpop.f32.mrf.mxu0
        %v3452 = vadd.f32 0.0, %v3451
        %v3453 = vpop.f32.mrf.mxu0
        %3454 = vmatprep.mubr.bf16.mxu0 0
        %3455 = vmatmul.mubr.bf16.gmra.mxu0 %v3307
        %v3456 = vpop.f32.mrf.mxu0
        %v3457 = vadd.f32 0.0, %v3456
        %v3458 = vpop.f32.mrf.mxu0
        %v3459 = vpop.f32.mrf.mxu0
        %v3460 = vadd.f32 0.0, %v3459
        %v3461 = vpop.f32.mrf.mxu0
        %3462 = vmatprep.mubr.bf16.mxu0 0
        %3463 = vmatmul.mubr.bf16.gmra.mxu0 %v3308
        %v3464 = vpop.f32.mrf.mxu0
        %v3465 = vadd.f32 0.0, %v3464
        %v3466 = vpop.f32.mrf.mxu0
        %v3467 = vpop.f32.mrf.mxu0
        %v3468 = vadd.f32 0.0, %v3467
        %v3469 = vpop.f32.mrf.mxu0
        %3470 = vdwg.mxu0
        %v3471 = vadd.f32 %v1236, %v3409
        %v3472 = vadd.f32 %v1239, %v3412
        %v3473 = vadd.f32 %v1244, %v3417
        %v3474 = vadd.f32 %v1247, %v3420
        %v3475 = vadd.f32 %v1252, %v3425
        %v3476 = vadd.f32 %v1255, %v3428
        %v3477 = vadd.f32 %v1260, %v3433
        %v3478 = vadd.f32 %v1263, %v3436
        %v3479 = vadd.f32 %v1268, %v3441
        %v3480 = vadd.f32 %v1271, %v3444
        %v3481 = vadd.f32 %v1276, %v3449
        %v3482 = vadd.f32 %v1279, %v3452
        %v3483 = vadd.f32 %v1284, %v3457
        %v3484 = vadd.f32 %v1287, %v3460
        %v3485 = vadd.f32 %v1292, %v3465
        %v3486 = vadd.f32 %v1295, %v3468
        %v3487 = vtanh.pop %v3471
        %v3488 = vtanh.pop %v3472
        %v3489 = vtanh.pop %v3473
        %v3490 = vtanh.pop %v3474
        %v3491 = vtanh.pop %v3475
        %v3492 = vtanh.pop %v3476
        %v3493 = vtanh.pop %v3477
        %v3494 = vtanh.pop %v3478
        %v3495 = vtanh.pop %v3479
        %v3496 = vtanh.pop %v3480
        %v3497 = vtanh.pop %v3481
        %v3498 = vtanh.pop %v3482
        %v3499 = vtanh.pop %v3483
        %v3500 = vtanh.pop %v3484
        %v3501 = vtanh.pop %v3485
        %v3502 = vtanh.pop %v3486
        %v3503 = vsub.f32 1.0, %v3238
        %v3504 = vsub.f32 1.0, %v3241
        %v3505 = vsub.f32 1.0, %v3244
        %v3506 = vsub.f32 1.0, %v3247
        %v3507 = vsub.f32 1.0, %v3250
        %v3508 = vsub.f32 1.0, %v3253
        %v3509 = vsub.f32 1.0, %v3256
        %v3510 = vsub.f32 1.0, %v3259
        %v3511 = vsub.f32 1.0, %v3262
        %v3512 = vsub.f32 1.0, %v3265
        %v3513 = vsub.f32 1.0, %v3268
        %v3514 = vsub.f32 1.0, %v3271
        %v3515 = vsub.f32 1.0, %v3274
        %v3516 = vsub.f32 1.0, %v3277
        %v3517 = vsub.f32 1.0, %v3280
        %v3518 = vsub.f32 1.0, %v3283
        %v3519 = vmul.f32 %v3503, %v3487
        %v3520 = vmul.f32 %v3504, %v3488
        %v3521 = vmul.f32 %v3505, %v3489
        %v3522 = vmul.f32 %v3506, %v3490
        %v3523 = vmul.f32 %v3507, %v3491
        %v3524 = vmul.f32 %v3508, %v3492
        %v3525 = vmul.f32 %v3509, %v3493
        %v3526 = vmul.f32 %v3510, %v3494
        %v3527 = vmul.f32 %v3511, %v3495
        %v3528 = vmul.f32 %v3512, %v3496
        %v3529 = vmul.f32 %v3513, %v3497
        %v3530 = vmul.f32 %v3514, %v3498
        %v3531 = vmul.f32 %v3515, %v3499
        %v3532 = vmul.f32 %v3516, %v3500
        %v3533 = vmul.f32 %v3517, %v3501
        %v3534 = vmul.f32 %v3518, %v3502
        %v3535 = vmul.f32 %v3237, %v2794
        %v3536 = vmul.f32 %v3240, %v2795
        %v3537 = vmul.f32 %v3243, %v2796
        %v3538 = vmul.f32 %v3246, %v2797
        %v3539 = vmul.f32 %v3249, %v2798
        %v3540 = vmul.f32 %v3252, %v2799
        %v3541 = vmul.f32 %v3255, %v2800
        %v3542 = vmul.f32 %v3258, %v2801
        %v3543 = vmul.f32 %v3261, %v2802
        %v3544 = vmul.f32 %v3264, %v2803
        %v3545 = vmul.f32 %v3267, %v2804
        %v3546 = vmul.f32 %v3270, %v2805
        %v3547 = vmul.f32 %v3273, %v2806
        %v3548 = vmul.f32 %v3276, %v2807
        %v3549 = vmul.f32 %v3279, %v2808
        %v3550 = vmul.f32 %v3282, %v2809
        %v3551 = vadd.f32 %v3519, %v3535
        %v3552 = vadd.f32 %v3520, %v3536
        %v3553 = vadd.f32 %v3521, %v3537
        %v3554 = vadd.f32 %v3522, %v3538
        %v3555 = vadd.f32 %v3523, %v3539
        %v3556 = vadd.f32 %v3524, %v3540
        %v3557 = vadd.f32 %v3525, %v3541
        %v3558 = vadd.f32 %v3526, %v3542
        %v3559 = vadd.f32 %v3527, %v3543
        %v3560 = vadd.f32 %v3528, %v3544
        %v3561 = vadd.f32 %v3529, %v3545
        %v3562 = vadd.f32 %v3530, %v3546
        %v3563 = vadd.f32 %v3531, %v3547
        %v3564 = vadd.f32 %v3532, %v3548
        %v3565 = vadd.f32 %v3533, %v3549
        %v3566 = vadd.f32 %v3534, %v3550
        %v3567 = vld [vmem:[%s5] sm:$0x1]
        %v3569 = vlaneseq
        %v3570 = vshrl.u32 %v3569, 7
        %v3571 = vsub.s32 0, %v3570
        %v3572 = vrot.slane %v3567, %v3571
        %v3574 = vmul.f32 %v3551, %v3572
        %v3575 = vmul.f32 %v3552, %v3572
        %v3576 = vmul.f32 %v3553, %v3572
        %v3577 = vmul.f32 %v3554, %v3572
        %v3578 = vmul.f32 %v3555, %v3572
        %v3579 = vmul.f32 %v3556, %v3572
        %v3580 = vmul.f32 %v3557, %v3572
        %v3581 = vmul.f32 %v3558, %v3572
        %v3582 = vmul.f32 %v3559, %v3572
        %v3583 = vmul.f32 %v3560, %v3572
        %v3584 = vmul.f32 %v3561, %v3572
        %v3585 = vmul.f32 %v3562, %v3572
        %v3586 = vmul.f32 %v3563, %v3572
        %v3587 = vmul.f32 %v3564, %v3572
        %v3588 = vmul.f32 %v3565, %v3572
        %v3589 = vmul.f32 %v3566, %v3572
        %3590 = vadd.xlane.f32.xlu0 %v3574
        %v3591 = vpop.xlane.xlu0 %3590
        %3592 = vadd.xlane.f32.xlu0 %v3575
        %v3593 = vpop.xlane.xlu0 %3592
        %3594 = vadd.xlane.f32.xlu0 %v3576
        %v3595 = vpop.xlane.xlu0 %3594
        %3596 = vadd.xlane.f32.xlu0 %v3577
        %v3597 = vpop.xlane.xlu0 %3596
        %3598 = vadd.xlane.f32.xlu0 %v3578
        %v3599 = vpop.xlane.xlu0 %3598
        %3600 = vadd.xlane.f32.xlu0 %v3579
        %v3601 = vpop.xlane.xlu0 %3600
        %3602 = vadd.xlane.f32.xlu0 %v3580
        %v3603 = vpop.xlane.xlu0 %3602
        %3604 = vadd.xlane.f32.xlu0 %v3581
        %v3605 = vpop.xlane.xlu0 %3604
        %3606 = vadd.xlane.f32.xlu0 %v3582
        %v3607 = vpop.xlane.xlu0 %3606
        %3608 = vadd.xlane.f32.xlu0 %v3583
        %v3609 = vpop.xlane.xlu0 %3608
        %3610 = vadd.xlane.f32.xlu0 %v3584
        %v3611 = vpop.xlane.xlu0 %3610
        %3612 = vadd.xlane.f32.xlu0 %v3585
        %v3613 = vpop.xlane.xlu0 %3612
        %3614 = vadd.xlane.f32.xlu0 %v3586
        %v3615 = vpop.xlane.xlu0 %3614
        %3616 = vadd.xlane.f32.xlu0 %v3587
        %v3617 = vpop.xlane.xlu0 %3616
        %3618 = vadd.xlane.f32.xlu0 %v3588
        %v3619 = vpop.xlane.xlu0 %3618
        %3620 = vadd.xlane.f32.xlu0 %v3589
        %v3621 = vpop.xlane.xlu0 %3620
        %s3622 = sld [smem:[#allocation2]]
        %v3623 = vstv %s3622
        %v3624 = vadd.f32 %v3591, %v3623
        %v3625 = vadd.f32 %v3593, %v3623
        %v3626 = vadd.f32 %v3595, %v3623
        %v3627 = vadd.f32 %v3597, %v3623
        %v3628 = vadd.f32 %v3599, %v3623
        %v3629 = vadd.f32 %v3601, %v3623
        %v3630 = vadd.f32 %v3603, %v3623
        %v3631 = vadd.f32 %v3605, %v3623
        %v3632 = vadd.f32 %v3607, %v3623
        %v3633 = vadd.f32 %v3609, %v3623
        %v3634 = vadd.f32 %v3611, %v3623
        %v3635 = vadd.f32 %v3613, %v3623
        %v3636 = vadd.f32 %v3615, %v3623
        %v3637 = vadd.f32 %v3617, %v3623
        %v3638 = vadd.f32 %v3619, %v3623
        %v3639 = vadd.f32 %v3621, %v3623
        %vm3640 = vcmask 7168
        %3641 = vst.msk [vmem:[%s296] sm:$0xff] %vm3640, %v3624
        %3642 = vst.msk [vmem:[%s296 + $0x8] sm:$0xff] %vm3640, %v3625
        %3643 = vst.msk [vmem:[%s296 + $0x10] sm:$0xff] %vm3640, %v3626
        %3644 = vst.msk [vmem:[%s296 + $0x18] sm:$0xff] %vm3640, %v3627
        %3645 = vst.msk [vmem:[%s296 + $0x20] sm:$0xff] %vm3640, %v3628
        %3646 = vst.msk [vmem:[%s296 + $0x28] sm:$0xff] %vm3640, %v3629
        %3647 = vst.msk [vmem:[%s296 + $0x30] sm:$0xff] %vm3640, %v3630
        %3648 = vst.msk [vmem:[%s296 + $0x38] sm:$0xff] %vm3640, %v3631
        %3649 = vst.msk [vmem:[%s296 + $0x40] sm:$0xff] %vm3640, %v3632
        %3650 = vst.msk [vmem:[%s296 + $0x48] sm:$0xff] %vm3640, %v3633
        %3651 = vst.msk [vmem:[%s296 + $0x50] sm:$0xff] %vm3640, %v3634
        %3652 = vst.msk [vmem:[%s296 + $0x58] sm:$0xff] %vm3640, %v3635
        %3653 = vst.msk [vmem:[%s296 + $0x60] sm:$0xff] %vm3640, %v3636
        %3654 = vst.msk [vmem:[%s296 + $0x68] sm:$0xff] %vm3640, %v3637
        %3655 = vst.msk [vmem:[%s296 + $0x70] sm:$0xff] %vm3640, %v3638
        %3656 = vst.msk [vmem:[%s296 + $0x78] sm:$0xff] %vm3640, %v3639
        %s3657 = smul.u32 16, %s20
        %p3658 = scmp.lt.s32.totalorder %s3657, 31
        %s3659 = scalar_select %p3658, %s3657, 31
        %s3660 = smul.addr %s3659, 8
        %s3661 = scalar_lea.vmem %s7, %s3660
        // Predicated region
        $region53: #{tpu_custom_call.1} parent=47 // pred_check
          %p3662 = pneg %p190
        $region54: #{tpu_custom_call.1} parent=47 // pred_check_branch
          %3664 = sbr.rel (%p3662) target = $region56
        $region55: #{tpu_custom_call.1} parent=47 // pred_region
          %s3665 = smul.u32 16, %s20
        $region56: #{tpu_custom_call.1} parent=47 // pred_fallthru
          _
      $region48: #{tpu_custom_call.1} parent=5 // pred_fallthru
        _
      %p3666 = scmp.le.s32.totalorder 2, %s15
      // Predicated region
      $region57: #{tpu_custom_call.1} parent=5 // pred_check
        %p3667 = pneg %p3666
      $region58: #{tpu_custom_call.1} parent=5 // pred_check_branch
        %3669 = sbr.rel (%p3667) target = $region60
      $region59: #{tpu_custom_call.1} parent=5 // pred_region
        %s3670 = ssub.s32 %s15, 2
        // Predicated region
        $region61: #{tpu_custom_call.1} parent=59 // pred_check
          %p3671 = pneg %p196
        $region62: #{tpu_custom_call.1} parent=59 // pred_check_branch
          %3673 = sbr.rel (%p3671) target = $region64
        $region63: #{tpu_custom_call.1} parent=59 // pred_region
          %s3674 = smul.u32 16, %s21
          %p3675 = scmp.lt.s32.totalorder %s3674, 31
          %s3676 = scalar_select %p3675, %s3674, 31
          %s3677 = smul.addr %s3676, 8
          %s3678 = scalar_lea.vmem %s7, %s3677
        $region64: #{tpu_custom_call.1} parent=59 // pred_fallthru
          _
      $region60: #{tpu_custom_call.1} parent=5 // pred_fallthru
        _
    $region6: #{tpu_custom_call.1} parent=1 // loop_footer
      %s19 = sadd.s32 1, %s15
    $region7: #{tpu_custom_call.1} parent=1 // loop_footer_branch
      %14 = sbr.rel target = $region3
    $region8: #{tpu_custom_call.1} parent=1 // loop_exit
      _
    %3679 = vsyncpa [#allocation4], 1
    %s3680 = scalar_lea.sflag [#allocation4], 1
    %3681 = vsyncpa %s3680, 1

</llo_original>
